<compile_context>
chip_gen: v7x
topology: tpu7x:2x2x1
jax: 0.10.0
libtpu: 0.0.40
codegen_flags: <defaults>
</compile_context>

<pallas_src>
import jax
import jax.numpy as jnp
from jax.experimental import pallas as pl
from jax.experimental.pallas import tpu as pltpu


# ----------------------------- configuration -----------------------------
BATCH = 2
SEQ = 8
HIDDEN = 32
N_HEADS = 4
HEAD_DIM = HIDDEN // N_HEADS
FFN_DIM = 64
N_LAYERS = 2
NUM_LABELS = 3
OUT_PAD = 128          # lane-dense classifier output width (>= NUM_LABELS)
LN_EPS = 1e-12
DTYPE = jnp.float32


# ----------------------------- in-kernel helpers -----------------------------
def _erf_approx(x):
    # Abramowitz & Stegun 7.1.26, |err| < 1.5e-7.  Uses only exp/abs/where so it
    # lowers on every TPU generation (avoids relying on a lax.erf lowering).
    a1, a2, a3, a4, a5 = 0.254829592, -0.284496736, 1.421413741, -1.453152027, 1.061405429
    p = 0.3275911
    sgn = jnp.where(x >= 0.0, 1.0, -1.0)
    ax = jnp.abs(x)
    t = 1.0 / (1.0 + p * ax)
    poly = ((((a5 * t + a4) * t + a3) * t + a2) * t + a1) * t
    return sgn * (1.0 - poly * jnp.exp(-ax * ax))


def _gelu_exact(x):
    # PyTorch nn.GELU default = exact erf GELU.
    return 0.5 * x * (1.0 + _erf_approx(x * 0.7071067811865476))


def _layernorm(y, g, b):
    mu = jnp.mean(y, axis=-1, keepdims=True)
    var = jnp.mean(jnp.square(y - mu), axis=-1, keepdims=True)
    return (y - mu) * jax.lax.rsqrt(var + LN_EPS) * g + b


# ----------------------------- the fused kernel -----------------------------
def _fused_forward_kernel(
    x_ref, mask_ref,
    wqkv_ref, bqkv_ref, wo_ref, bo_ref, ln1g_ref, ln1b_ref,
    wff1_ref, bff1_ref, wff2_ref, bff2_ref, ln2g_ref, ln2b_ref,
    wout_ref, bout_ref,
    o_ref,
):
    x = x_ref[...].astype(jnp.float32)        # [M, H]   (M = B*S)
    mask_bias = mask_ref[...]                 # [M, M]   0 within batch, -1e30 across
    scale = jnp.float32(1.0 / (HEAD_DIM ** 0.5))

    for l in range(N_LAYERS):                 # unrolled; all operands VMEM-resident
        # --- multi-head self-attention (single fused QKV matmul) ---
        qkv = (jnp.dot(x, wqkv_ref[l], preferred_element_type=jnp.float32)
               + bqkv_ref[l])                 # [M, 3H]
        heads = []
        for h in range(N_HEADS):              # heads = static lane slices, no transpose
            q_h = qkv[:, h * HEAD_DIM:(h + 1) * HEAD_DIM]
            k_h = qkv[:, HIDDEN + h * HEAD_DIM:HIDDEN + (h + 1) * HEAD_DIM]
            v_h = qkv[:, 2 * HIDDEN + h * HEAD_DIM:2 * HIDDEN + (h + 1) * HEAD_DIM]
            s = jax.lax.dot_general(q_h, k_h, (((1,), (1,)), ((), ())),
                                    preferred_element_type=jnp.float32)   # q @ k.T
            s = s * scale + mask_bias         # block-diagonal mask keeps batches apart
            s = s - jnp.max(s, axis=-1, keepdims=True)
            p = jnp.exp(s)
            p = p * pl.reciprocal(jnp.sum(p, axis=-1, keepdims=True), approx=True)
            heads.append(jnp.dot(p, v_h, preferred_element_type=jnp.float32))
        attn = jnp.concatenate(heads, axis=-1)                           # [M, H]
        attn = (jnp.dot(attn, wo_ref[l], preferred_element_type=jnp.float32)
                + bo_ref[l])
        x = _layernorm(attn + x, ln1g_ref[l], ln1b_ref[l])

        # --- feed-forward ---
        ff = (jnp.dot(x, wff1_ref[l], preferred_element_type=jnp.float32)
              + bff1_ref[l])
        ff = _gelu_exact(ff)
        ff = (jnp.dot(ff, wff2_ref[l], preferred_element_type=jnp.float32)
              + bff2_ref[l])
        x = _layernorm(ff + x, ln2g_ref[l], ln2b_ref[l])

    # --- classifier head: Dropout(0.3) is eval-mode identity, then Linear ---
    # TODO(synk): training-mode stochastic dropout would need pltpu.prng_*.
    logits = (jnp.dot(x, wout_ref[...], preferred_element_type=jnp.float32)
              + bout_ref[...])                # [M, OUT_PAD] lane-dense output
    o_ref[...] = logits.astype(o_ref.dtype)


# ----------------------------- parameter setup -----------------------------
def init_params(key):
    def dense(k, shape, scale=0.02):
        return (scale * jax.random.normal(k, shape)).astype(DTYPE)

    params = {"layers": []}
    keys = jax.random.split(key, N_LAYERS + 1)
    for lk in keys[:N_LAYERS]:
        sub = jax.random.split(lk, 8)
        params["layers"].append({
            "wq": dense(sub[0], (HIDDEN, HIDDEN)), "bq": jnp.zeros((HIDDEN,), DTYPE),
            "wk": dense(sub[1], (HIDDEN, HIDDEN)), "bk": jnp.zeros((HIDDEN,), DTYPE),
            "wv": dense(sub[2], (HIDDEN, HIDDEN)), "bv": jnp.zeros((HIDDEN,), DTYPE),
            "wo": dense(sub[3], (HIDDEN, HIDDEN)), "bo": jnp.zeros((HIDDEN,), DTYPE),
            "ln1_g": jnp.ones((HIDDEN,), DTYPE), "ln1_b": jnp.zeros((HIDDEN,), DTYPE),
            "w_ff1": dense(sub[4], (HIDDEN, FFN_DIM)), "b_ff1": jnp.zeros((FFN_DIM,), DTYPE),
            "w_ff2": dense(sub[5], (FFN_DIM, HIDDEN)), "b_ff2": jnp.zeros((HIDDEN,), DTYPE),
            "ln2_g": jnp.ones((HIDDEN,), DTYPE), "ln2_b": jnp.zeros((HIDDEN,), DTYPE),
        })
    hk = jax.random.split(keys[-1], 2)
    params["w_out"] = dense(hk[0], (HIDDEN, NUM_LABELS))
    params["b_out"] = jnp.zeros((NUM_LABELS,), DTYPE)
    return params


def pack_params(params):
    """Stack per-layer weights, fuse QKV, and pad the classifier head lane-dense."""
    L = params["layers"]
    wqkv = jnp.stack([jnp.concatenate([l["wq"], l["wk"], l["wv"]], axis=1) for l in L])
    bqkv = jnp.stack([jnp.concatenate([l["bq"], l["bk"], l["bv"]])[None, :] for l in L])
    wo = jnp.stack([l["wo"] for l in L])
    bo = jnp.stack([l["bo"][None, :] for l in L])
    ln1g = jnp.stack([l["ln1_g"][None, :] for l in L])
    ln1b = jnp.stack([l["ln1_b"][None, :] for l in L])
    wff1 = jnp.stack([l["w_ff1"] for l in L])
    bff1 = jnp.stack([l["b_ff1"][None, :] for l in L])
    wff2 = jnp.stack([l["w_ff2"] for l in L])
    bff2 = jnp.stack([l["b_ff2"][None, :] for l in L])
    ln2g = jnp.stack([l["ln2_g"][None, :] for l in L])
    ln2b = jnp.stack([l["ln2_b"][None, :] for l in L])
    wout = jnp.zeros((HIDDEN, OUT_PAD), DTYPE).at[:, :NUM_LABELS].set(params["w_out"])
    bout = jnp.zeros((1, OUT_PAD), DTYPE).at[:, :NUM_LABELS].set(params["b_out"])
    return (wqkv, bqkv, wo, bo, ln1g, ln1b, wff1, bff1, wff2, bff2, ln2g, ln2b, wout, bout)


# ----------------------------- forward pass -----------------------------
def _full_spec(shape):
    n = len(shape)
    return pl.BlockSpec(shape, lambda i: (0,) * n)


@jax.jit
def distill_bert_classifier_forward(params, x):
    """x: [B, S, H] hidden states -> logits [B, S, NUM_LABELS]."""
    B, S, H = x.shape
    M = B * S
    xf = x.reshape(M, H)

    # Block-diagonal additive attention-mask bias (0 within a batch, -1e30 across).
    batch_ids = jnp.arange(M) // S
    mask_bias = jnp.where(batch_ids[:, None] == batch_ids[None, :],
                          0.0, -1e30).astype(DTYPE)

    args = (xf, mask_bias) + pack_params(params)

    logits_pad = pl.pallas_call(
        _fused_forward_kernel,
        out_shape=jax.ShapeDtypeStruct((M, OUT_PAD), x.dtype),
        grid=(1,),
        in_specs=[_full_spec(a.shape) for a in args],
        out_specs=_full_spec((M, OUT_PAD)),
        compiler_params=pltpu.CompilerParams(dimension_semantics=("arbitrary",)),
    )(*args)

    return logits_pad[:, :NUM_LABELS].reshape(B, S, NUM_LABELS)


# ----------------------------- main -----------------------------
if __name__ == "__main__":
    key = jax.random.PRNGKey(0)
    pkey, xkey = jax.random.split(key)
    params = init_params(pkey)
    x = jax.random.normal(xkey, (BATCH, SEQ, HIDDEN), dtype=DTYPE)

    logits = distill_bert_classifier_forward(params, x)
    jax.block_until_ready(logits)

    assert logits.shape == (BATCH, SEQ, NUM_LABELS)
    assert logits.dtype == DTYPE
    assert bool(jnp.all(jnp.isfinite(logits)))
    print("KERNEL_OK")
</pallas_src>

<mosaic_0001>
module attributes {stable_mosaic.version = 11 : i64} {
  func.func @_fused_forward_kernel(%arg0: i32, %arg1: memref<16x32xf32, #tpu.memory_space<vmem>>, %arg2: memref<16x16xf32, #tpu.memory_space<vmem>>, %arg3: memref<2x32x96xf32, #tpu.memory_space<vmem>>, %arg4: memref<2x1x96xf32, #tpu.memory_space<vmem>>, %arg5: memref<2x32x32xf32, #tpu.memory_space<vmem>>, %arg6: memref<2x1x32xf32, #tpu.memory_space<vmem>>, %arg7: memref<2x1x32xf32, #tpu.memory_space<vmem>>, %arg8: memref<2x1x32xf32, #tpu.memory_space<vmem>>, %arg9: memref<2x32x64xf32, #tpu.memory_space<vmem>>, %arg10: memref<2x1x64xf32, #tpu.memory_space<vmem>>, %arg11: memref<2x64x32xf32, #tpu.memory_space<vmem>>, %arg12: memref<2x1x32xf32, #tpu.memory_space<vmem>>, %arg13: memref<2x1x32xf32, #tpu.memory_space<vmem>>, %arg14: memref<2x1x32xf32, #tpu.memory_space<vmem>>, %arg15: memref<32x128xf32, #tpu.memory_space<vmem>>, %arg16: memref<1x128xf32, #tpu.memory_space<vmem>>, %arg17: memref<16x128xf32, #tpu.memory_space<vmem>>) attributes {dimension_semantics = [#tpu.dimension_semantics<arbitrary>], iteration_bounds = array<i64: 1>, scalar_prefetch = 0 : i64, scratch_operands = 0 : i64, tpu.core_type = #tpu.core_type<tc>, window_params = [{pipeline_mode = #tpu.pipeline_mode<synchronous>, transform_indices = @transform_0, window_bounds = array<i64: 16, 32>}, {pipeline_mode = #tpu.pipeline_mode<synchronous>, transform_indices = @transform_1, window_bounds = array<i64: 16, 16>}, {pipeline_mode = #tpu.pipeline_mode<synchronous>, transform_indices = @transform_2, window_bounds = array<i64: 2, 32, 96>}, {pipeline_mode = #tpu.pipeline_mode<synchronous>, transform_indices = @transform_3, window_bounds = array<i64: 2, 1, 96>}, {pipeline_mode = #tpu.pipeline_mode<synchronous>, transform_indices = @transform_4, window_bounds = array<i64: 2, 32, 32>}, {pipeline_mode = #tpu.pipeline_mode<synchronous>, transform_indices = @transform_5, window_bounds = array<i64: 2, 1, 32>}, {pipeline_mode = #tpu.pipeline_mode<synchronous>, transform_indices = @transform_6, window_bounds = array<i64: 2, 1, 32>}, {pipeline_mode = #tpu.pipeline_mode<synchronous>, transform_indices = @transform_7, window_bounds = array<i64: 2, 1, 32>}, {pipeline_mode = #tpu.pipeline_mode<synchronous>, transform_indices = @transform_8, window_bounds = array<i64: 2, 32, 64>}, {pipeline_mode = #tpu.pipeline_mode<synchronous>, transform_indices = @transform_9, window_bounds = array<i64: 2, 1, 64>}, {pipeline_mode = #tpu.pipeline_mode<synchronous>, transform_indices = @transform_10, window_bounds = array<i64: 2, 64, 32>}, {pipeline_mode = #tpu.pipeline_mode<synchronous>, transform_indices = @transform_11, window_bounds = array<i64: 2, 1, 32>}, {pipeline_mode = #tpu.pipeline_mode<synchronous>, transform_indices = @transform_12, window_bounds = array<i64: 2, 1, 32>}, {pipeline_mode = #tpu.pipeline_mode<synchronous>, transform_indices = @transform_13, window_bounds = array<i64: 2, 1, 32>}, {pipeline_mode = #tpu.pipeline_mode<synchronous>, transform_indices = @transform_14, window_bounds = array<i64: 32, 128>}, {pipeline_mode = #tpu.pipeline_mode<synchronous>, transform_indices = @transform_15, window_bounds = array<i64: 1, 128>}, {pipeline_mode = #tpu.pipeline_mode<synchronous>, transform_indices = @transform_16, window_bounds = array<i64: 16, 128>}]} {
    %c0 = arith.constant 0 : index
    %c0_0 = arith.constant 0 : index
    %0 = vector.load %arg1[%c0, %c0_0] : memref<16x32xf32, #tpu.memory_space<vmem>>, vector<16x32xf32>
    %c0_1 = arith.constant 0 : index
    %c0_2 = arith.constant 0 : index
    %1 = vector.load %arg2[%c0_1, %c0_2] : memref<16x16xf32, #tpu.memory_space<vmem>>, vector<16x16xf32>
    %c0_3 = arith.constant 0 : index
    %c0_4 = arith.constant 0 : index
    %c0_5 = arith.constant 0 : index
    %2 = vector.load %arg3[%c0_3, %c0_4, %c0_5] : memref<2x32x96xf32, #tpu.memory_space<vmem>>, vector<1x32x96xf32>
    %3 = vector.shape_cast %2 : vector<1x32x96xf32> to vector<32x96xf32>
    %cst = arith.constant dense<0.000000e+00> : vector<16x96xf32>
    %4 = tpu.matmul %0, %3, %cst {dimension_numbers = #tpu.dot_dimension_numbers<[1], [0], [0], [1], [0, 0, 1, 1], [], []>} : vector<16x32xf32>, vector<32x96xf32>, vector<16x96xf32> -> vector<16x96xf32>
    %c0_6 = arith.constant 0 : index
    %c0_7 = arith.constant 0 : index
    %c0_8 = arith.constant 0 : index
    %5 = vector.load %arg4[%c0_6, %c0_7, %c0_8] : memref<2x1x96xf32, #tpu.memory_space<vmem>>, vector<1x1x96xf32>
    %6 = vector.shape_cast %5 : vector<1x1x96xf32> to vector<1x96xf32>
    %7 = vector.broadcast %6 : vector<1x96xf32> to vector<16x96xf32>
    %8 = arith.addf %4, %7 : vector<16x96xf32>
    %9 = vector.extract_strided_slice %8 {offsets = [0, 0], sizes = [16, 8], strides = [1, 1]} : vector<16x96xf32> to vector<16x8xf32>
    %10 = vector.extract_strided_slice %8 {offsets = [0, 32], sizes = [16, 8], strides = [1, 1]} : vector<16x96xf32> to vector<16x8xf32>
    %11 = vector.extract_strided_slice %8 {offsets = [0, 64], sizes = [16, 8], strides = [1, 1]} : vector<16x96xf32> to vector<16x8xf32>
    %cst_9 = arith.constant dense<0.000000e+00> : vector<16x16xf32>
    %12 = tpu.matmul %9, %10, %cst_9 {dimension_numbers = #tpu.dot_dimension_numbers<[1], [1], [0], [0], [0, 0, 1, 0], [], []>} : vector<16x8xf32>, vector<16x8xf32>, vector<16x16xf32> -> vector<16x16xf32>
    %cst_10 = arith.constant 0.353553385 : f32
    %13 = vector.broadcast %cst_10 : f32 to vector<16x16xf32>
    %14 = arith.mulf %12, %13 : vector<16x16xf32>
    %15 = arith.addf %14, %1 : vector<16x16xf32>
    %cst_11 = arith.constant dense<0xFF800000> : vector<16xf32>
    %16 = vector.multi_reduction <maximumf>, %15, %cst_11 [1] : vector<16x16xf32> to vector<16xf32>
    %17 = vector.shape_cast %16 : vector<16xf32> to vector<16x1xf32>
    %18 = vector.broadcast %17 : vector<16x1xf32> to vector<16x16xf32>
    %19 = arith.subf %15, %18 : vector<16x16xf32>
    %20 = math.exp %19 : vector<16x16xf32>
    %cst_12 = arith.constant dense<0.000000e+00> : vector<16xf32>
    %21 = vector.multi_reduction <add>, %20, %cst_12 [1] : vector<16x16xf32> to vector<16xf32>
    %22 = vector.shape_cast %21 : vector<16xf32> to vector<16x1xf32>
    %23 = tpu.reciprocal %22 {approx = true} : vector<16x1xf32> -> vector<16x1xf32>
    %24 = vector.broadcast %23 : vector<16x1xf32> to vector<16x16xf32>
    %25 = arith.mulf %20, %24 : vector<16x16xf32>
    %cst_13 = arith.constant dense<0.000000e+00> : vector<16x8xf32>
    %26 = tpu.matmul %25, %11, %cst_13 {dimension_numbers = #tpu.dot_dimension_numbers<[1], [0], [0], [1], [0, 0, 1, 1], [], []>} : vector<16x16xf32>, vector<16x8xf32>, vector<16x8xf32> -> vector<16x8xf32>
    %27 = vector.extract_strided_slice %8 {offsets = [0, 8], sizes = [16, 8], strides = [1, 1]} : vector<16x96xf32> to vector<16x8xf32>
    %28 = vector.extract_strided_slice %8 {offsets = [0, 40], sizes = [16, 8], strides = [1, 1]} : vector<16x96xf32> to vector<16x8xf32>
    %29 = vector.extract_strided_slice %8 {offsets = [0, 72], sizes = [16, 8], strides = [1, 1]} : vector<16x96xf32> to vector<16x8xf32>
    %cst_14 = arith.constant dense<0.000000e+00> : vector<16x16xf32>
    %30 = tpu.matmul %27, %28, %cst_14 {dimension_numbers = #tpu.dot_dimension_numbers<[1], [1], [0], [0], [0, 0, 1, 0], [], []>} : vector<16x8xf32>, vector<16x8xf32>, vector<16x16xf32> -> vector<16x16xf32>
    %cst_15 = arith.constant 0.353553385 : f32
    %31 = vector.broadcast %cst_15 : f32 to vector<16x16xf32>
    %32 = arith.mulf %30, %31 : vector<16x16xf32>
    %33 = arith.addf %32, %1 : vector<16x16xf32>
    %cst_16 = arith.constant dense<0xFF800000> : vector<16xf32>
    %34 = vector.multi_reduction <maximumf>, %33, %cst_16 [1] : vector<16x16xf32> to vector<16xf32>
    %35 = vector.shape_cast %34 : vector<16xf32> to vector<16x1xf32>
    %36 = vector.broadcast %35 : vector<16x1xf32> to vector<16x16xf32>
    %37 = arith.subf %33, %36 : vector<16x16xf32>
    %38 = math.exp %37 : vector<16x16xf32>
    %cst_17 = arith.constant dense<0.000000e+00> : vector<16xf32>
    %39 = vector.multi_reduction <add>, %38, %cst_17 [1] : vector<16x16xf32> to vector<16xf32>
    %40 = vector.shape_cast %39 : vector<16xf32> to vector<16x1xf32>
    %41 = tpu.reciprocal %40 {approx = true} : vector<16x1xf32> -> vector<16x1xf32>
    %42 = vector.broadcast %41 : vector<16x1xf32> to vector<16x16xf32>
    %43 = arith.mulf %38, %42 : vector<16x16xf32>
    %cst_18 = arith.constant dense<0.000000e+00> : vector<16x8xf32>
    %44 = tpu.matmul %43, %29, %cst_18 {dimension_numbers = #tpu.dot_dimension_numbers<[1], [0], [0], [1], [0, 0, 1, 1], [], []>} : vector<16x16xf32>, vector<16x8xf32>, vector<16x8xf32> -> vector<16x8xf32>
    %45 = vector.extract_strided_slice %8 {offsets = [0, 16], sizes = [16, 8], strides = [1, 1]} : vector<16x96xf32> to vector<16x8xf32>
    %46 = vector.extract_strided_slice %8 {offsets = [0, 48], sizes = [16, 8], strides = [1, 1]} : vector<16x96xf32> to vector<16x8xf32>
    %47 = vector.extract_strided_slice %8 {offsets = [0, 80], sizes = [16, 8], strides = [1, 1]} : vector<16x96xf32> to vector<16x8xf32>
    %cst_19 = arith.constant dense<0.000000e+00> : vector<16x16xf32>
    %48 = tpu.matmul %45, %46, %cst_19 {dimension_numbers = #tpu.dot_dimension_numbers<[1], [1], [0], [0], [0, 0, 1, 0], [], []>} : vector<16x8xf32>, vector<16x8xf32>, vector<16x16xf32> -> vector<16x16xf32>
    %cst_20 = arith.constant 0.353553385 : f32
    %49 = vector.broadcast %cst_20 : f32 to vector<16x16xf32>
    %50 = arith.mulf %48, %49 : vector<16x16xf32>
    %51 = arith.addf %50, %1 : vector<16x16xf32>
    %cst_21 = arith.constant dense<0xFF800000> : vector<16xf32>
    %52 = vector.multi_reduction <maximumf>, %51, %cst_21 [1] : vector<16x16xf32> to vector<16xf32>
    %53 = vector.shape_cast %52 : vector<16xf32> to vector<16x1xf32>
    %54 = vector.broadcast %53 : vector<16x1xf32> to vector<16x16xf32>
    %55 = arith.subf %51, %54 : vector<16x16xf32>
    %56 = math.exp %55 : vector<16x16xf32>
    %cst_22 = arith.constant dense<0.000000e+00> : vector<16xf32>
    %57 = vector.multi_reduction <add>, %56, %cst_22 [1] : vector<16x16xf32> to vector<16xf32>
    %58 = vector.shape_cast %57 : vector<16xf32> to vector<16x1xf32>
    %59 = tpu.reciprocal %58 {approx = true} : vector<16x1xf32> -> vector<16x1xf32>
    %60 = vector.broadcast %59 : vector<16x1xf32> to vector<16x16xf32>
    %61 = arith.mulf %56, %60 : vector<16x16xf32>
    %cst_23 = arith.constant dense<0.000000e+00> : vector<16x8xf32>
    %62 = tpu.matmul %61, %47, %cst_23 {dimension_numbers = #tpu.dot_dimension_numbers<[1], [0], [0], [1], [0, 0, 1, 1], [], []>} : vector<16x16xf32>, vector<16x8xf32>, vector<16x8xf32> -> vector<16x8xf32>
    %63 = vector.extract_strided_slice %8 {offsets = [0, 24], sizes = [16, 8], strides = [1, 1]} : vector<16x96xf32> to vector<16x8xf32>
    %64 = vector.extract_strided_slice %8 {offsets = [0, 56], sizes = [16, 8], strides = [1, 1]} : vector<16x96xf32> to vector<16x8xf32>
    %65 = vector.extract_strided_slice %8 {offsets = [0, 88], sizes = [16, 8], strides = [1, 1]} : vector<16x96xf32> to vector<16x8xf32>
    %cst_24 = arith.constant dense<0.000000e+00> : vector<16x16xf32>
    %66 = tpu.matmul %63, %64, %cst_24 {dimension_numbers = #tpu.dot_dimension_numbers<[1], [1], [0], [0], [0, 0, 1, 0], [], []>} : vector<16x8xf32>, vector<16x8xf32>, vector<16x16xf32> -> vector<16x16xf32>
    %cst_25 = arith.constant 0.353553385 : f32
    %67 = vector.broadcast %cst_25 : f32 to vector<16x16xf32>
    %68 = arith.mulf %66, %67 : vector<16x16xf32>
    %69 = arith.addf %68, %1 : vector<16x16xf32>
    %cst_26 = arith.constant dense<0xFF800000> : vector<16xf32>
    %70 = vector.multi_reduction <maximumf>, %69, %cst_26 [1] : vector<16x16xf32> to vector<16xf32>
    %71 = vector.shape_cast %70 : vector<16xf32> to vector<16x1xf32>
    %72 = vector.broadcast %71 : vector<16x1xf32> to vector<16x16xf32>
    %73 = arith.subf %69, %72 : vector<16x16xf32>
    %74 = math.exp %73 : vector<16x16xf32>
    %cst_27 = arith.constant dense<0.000000e+00> : vector<16xf32>
    %75 = vector.multi_reduction <add>, %74, %cst_27 [1] : vector<16x16xf32> to vector<16xf32>
    %76 = vector.shape_cast %75 : vector<16xf32> to vector<16x1xf32>
    %77 = tpu.reciprocal %76 {approx = true} : vector<16x1xf32> -> vector<16x1xf32>
    %78 = vector.broadcast %77 : vector<16x1xf32> to vector<16x16xf32>
    %79 = arith.mulf %74, %78 : vector<16x16xf32>
    %cst_28 = arith.constant dense<0.000000e+00> : vector<16x8xf32>
    %80 = tpu.matmul %79, %65, %cst_28 {dimension_numbers = #tpu.dot_dimension_numbers<[1], [0], [0], [1], [0, 0, 1, 1], [], []>} : vector<16x16xf32>, vector<16x8xf32>, vector<16x8xf32> -> vector<16x8xf32>
    %81 = tpu.concatenate %26, %44, %62, %80 in 1 : vector<16x8xf32>, vector<16x8xf32>, vector<16x8xf32>, vector<16x8xf32> -> vector<16x32xf32>
    %c0_29 = arith.constant 0 : index
    %c0_30 = arith.constant 0 : index
    %c0_31 = arith.constant 0 : index
    %82 = vector.load %arg5[%c0_29, %c0_30, %c0_31] : memref<2x32x32xf32, #tpu.memory_space<vmem>>, vector<1x32x32xf32>
    %83 = vector.shape_cast %82 : vector<1x32x32xf32> to vector<32x32xf32>
    %cst_32 = arith.constant dense<0.000000e+00> : vector<16x32xf32>
    %84 = tpu.matmul %81, %83, %cst_32 {dimension_numbers = #tpu.dot_dimension_numbers<[1], [0], [0], [1], [0, 0, 1, 1], [], []>} : vector<16x32xf32>, vector<32x32xf32>, vector<16x32xf32> -> vector<16x32xf32>
    %c0_33 = arith.constant 0 : index
    %c0_34 = arith.constant 0 : index
    %c0_35 = arith.constant 0 : index
    %85 = vector.load %arg6[%c0_33, %c0_34, %c0_35] : memref<2x1x32xf32, #tpu.memory_space<vmem>>, vector<1x1x32xf32>
    %86 = vector.shape_cast %85 : vector<1x1x32xf32> to vector<1x32xf32>
    %87 = vector.broadcast %86 : vector<1x32xf32> to vector<16x32xf32>
    %88 = arith.addf %84, %87 : vector<16x32xf32>
    %89 = arith.addf %88, %0 : vector<16x32xf32>
    %c0_36 = arith.constant 0 : index
    %c0_37 = arith.constant 0 : index
    %c0_38 = arith.constant 0 : index
    %90 = vector.load %arg7[%c0_36, %c0_37, %c0_38] : memref<2x1x32xf32, #tpu.memory_space<vmem>>, vector<1x1x32xf32>
    %91 = vector.shape_cast %90 : vector<1x1x32xf32> to vector<1x32xf32>
    %c0_39 = arith.constant 0 : index
    %c0_40 = arith.constant 0 : index
    %c0_41 = arith.constant 0 : index
    %92 = vector.load %arg8[%c0_39, %c0_40, %c0_41] : memref<2x1x32xf32, #tpu.memory_space<vmem>>, vector<1x1x32xf32>
    %93 = vector.shape_cast %92 : vector<1x1x32xf32> to vector<1x32xf32>
    %cst_42 = arith.constant dense<0.000000e+00> : vector<16xf32>
    %94 = vector.multi_reduction <add>, %89, %cst_42 [1] : vector<16x32xf32> to vector<16xf32>
    %95 = vector.shape_cast %94 : vector<16xf32> to vector<16x1xf32>
    %cst_43 = arith.constant 3.200000e+01 : f32
    %96 = vector.broadcast %cst_43 : f32 to vector<16x1xf32>
    %97 = arith.divf %95, %96 : vector<16x1xf32>
    %98 = vector.broadcast %97 : vector<16x1xf32> to vector<16x32xf32>
    %99 = arith.subf %89, %98 : vector<16x32xf32>
    %100 = arith.mulf %99, %99 : vector<16x32xf32>
    %cst_44 = arith.constant dense<0.000000e+00> : vector<16xf32>
    %101 = vector.multi_reduction <add>, %100, %cst_44 [1] : vector<16x32xf32> to vector<16xf32>
    %102 = vector.shape_cast %101 : vector<16xf32> to vector<16x1xf32>
    %cst_45 = arith.constant 3.200000e+01 : f32
    %103 = vector.broadcast %cst_45 : f32 to vector<16x1xf32>
    %104 = arith.divf %102, %103 : vector<16x1xf32>
    %105 = vector.broadcast %97 : vector<16x1xf32> to vector<16x32xf32>
    %106 = arith.subf %89, %105 : vector<16x32xf32>
    %cst_46 = arith.constant 9.99999996E-13 : f32
    %107 = vector.broadcast %cst_46 : f32 to vector<16x1xf32>
    %108 = arith.addf %104, %107 : vector<16x1xf32>
    %109 = math.rsqrt %108 : vector<16x1xf32>
    %110 = vector.broadcast %109 : vector<16x1xf32> to vector<16x32xf32>
    %111 = arith.mulf %106, %110 : vector<16x32xf32>
    %112 = vector.broadcast %91 : vector<1x32xf32> to vector<16x32xf32>
    %113 = arith.mulf %111, %112 : vector<16x32xf32>
    %114 = vector.broadcast %93 : vector<1x32xf32> to vector<16x32xf32>
    %115 = arith.addf %113, %114 : vector<16x32xf32>
    %c0_47 = arith.constant 0 : index
    %c0_48 = arith.constant 0 : index
    %c0_49 = arith.constant 0 : index
    %116 = vector.load %arg9[%c0_47, %c0_48, %c0_49] : memref<2x32x64xf32, #tpu.memory_space<vmem>>, vector<1x32x64xf32>
    %117 = vector.shape_cast %116 : vector<1x32x64xf32> to vector<32x64xf32>
    %cst_50 = arith.constant dense<0.000000e+00> : vector<16x64xf32>
    %118 = tpu.matmul %115, %117, %cst_50 {dimension_numbers = #tpu.dot_dimension_numbers<[1], [0], [0], [1], [0, 0, 1, 1], [], []>} : vector<16x32xf32>, vector<32x64xf32>, vector<16x64xf32> -> vector<16x64xf32>
    %c0_51 = arith.constant 0 : index
    %c0_52 = arith.constant 0 : index
    %c0_53 = arith.constant 0 : index
    %119 = vector.load %arg10[%c0_51, %c0_52, %c0_53] : memref<2x1x64xf32, #tpu.memory_space<vmem>>, vector<1x1x64xf32>
    %120 = vector.shape_cast %119 : vector<1x1x64xf32> to vector<1x64xf32>
    %121 = vector.broadcast %120 : vector<1x64xf32> to vector<16x64xf32>
    %122 = arith.addf %118, %121 : vector<16x64xf32>
    %cst_54 = arith.constant 5.000000e-01 : f32
    %123 = vector.broadcast %cst_54 : f32 to vector<16x64xf32>
    %124 = arith.mulf %123, %122 : vector<16x64xf32>
    %cst_55 = arith.constant 0.707106769 : f32
    %125 = vector.broadcast %cst_55 : f32 to vector<16x64xf32>
    %126 = arith.mulf %122, %125 : vector<16x64xf32>
    %cst_56 = arith.constant 0.000000e+00 : f32
    %127 = vector.broadcast %cst_56 : f32 to vector<16x64xf32>
    %128 = arith.cmpf oge, %126, %127 : vector<16x64xf32>
    %cst_57 = arith.constant 1.000000e+00 : f32
    %cst_58 = arith.constant -1.000000e+00 : f32
    %129 = vector.broadcast %cst_57 : f32 to vector<16x64xf32>
    %130 = vector.broadcast %cst_58 : f32 to vector<16x64xf32>
    %131 = arith.select %128, %129, %130 : vector<16x64xi1>, vector<16x64xf32>
    %132 = math.absf %126 : vector<16x64xf32>
    %cst_59 = arith.constant 0.327591091 : f32
    %133 = vector.broadcast %cst_59 : f32 to vector<16x64xf32>
    %134 = arith.mulf %133, %132 : vector<16x64xf32>
    %cst_60 = arith.constant 1.000000e+00 : f32
    %135 = vector.broadcast %cst_60 : f32 to vector<16x64xf32>
    %136 = arith.addf %135, %134 : vector<16x64xf32>
    %cst_61 = arith.constant 1.000000e+00 : f32
    %137 = vector.broadcast %cst_61 : f32 to vector<16x64xf32>
    %138 = arith.divf %137, %136 : vector<16x64xf32>
    %cst_62 = arith.constant 1.06140542 : f32
    %139 = vector.broadcast %cst_62 : f32 to vector<16x64xf32>
    %140 = arith.mulf %139, %138 : vector<16x64xf32>
    %cst_63 = arith.constant -1.45315206 : f32
    %141 = vector.broadcast %cst_63 : f32 to vector<16x64xf32>
    %142 = arith.addf %140, %141 : vector<16x64xf32>
    %143 = arith.mulf %142, %138 : vector<16x64xf32>
    %cst_64 = arith.constant 1.42141378 : f32
    %144 = vector.broadcast %cst_64 : f32 to vector<16x64xf32>
    %145 = arith.addf %143, %144 : vector<16x64xf32>
    %146 = arith.mulf %145, %138 : vector<16x64xf32>
    %cst_65 = arith.constant -0.284496725 : f32
    %147 = vector.broadcast %cst_65 : f32 to vector<16x64xf32>
    %148 = arith.addf %146, %147 : vector<16x64xf32>
    %149 = arith.mulf %148, %138 : vector<16x64xf32>
    %cst_66 = arith.constant 0.254829586 : f32
    %150 = vector.broadcast %cst_66 : f32 to vector<16x64xf32>
    %151 = arith.addf %149, %150 : vector<16x64xf32>
    %152 = arith.mulf %151, %138 : vector<16x64xf32>
    %cst_67 = arith.constant 0.000000e+00 : f32
    %153 = vector.broadcast %cst_67 : f32 to vector<16x64xf32>
    %154 = arith.subf %153, %132 : vector<16x64xf32>
    %155 = arith.mulf %154, %132 : vector<16x64xf32>
    %156 = math.exp %155 : vector<16x64xf32>
    %157 = arith.mulf %152, %156 : vector<16x64xf32>
    %cst_68 = arith.constant 1.000000e+00 : f32
    %158 = vector.broadcast %cst_68 : f32 to vector<16x64xf32>
    %159 = arith.subf %158, %157 : vector<16x64xf32>
    %160 = arith.mulf %131, %159 : vector<16x64xf32>
    %cst_69 = arith.constant 1.000000e+00 : f32
    %161 = vector.broadcast %cst_69 : f32 to vector<16x64xf32>
    %162 = arith.addf %161, %160 : vector<16x64xf32>
    %163 = arith.mulf %124, %162 : vector<16x64xf32>
    %c0_70 = arith.constant 0 : index
    %c0_71 = arith.constant 0 : index
    %c0_72 = arith.constant 0 : index
    %164 = vector.load %arg11[%c0_70, %c0_71, %c0_72] : memref<2x64x32xf32, #tpu.memory_space<vmem>>, vector<1x64x32xf32>
    %165 = vector.shape_cast %164 : vector<1x64x32xf32> to vector<64x32xf32>
    %cst_73 = arith.constant dense<0.000000e+00> : vector<16x32xf32>
    %166 = tpu.matmul %163, %165, %cst_73 {dimension_numbers = #tpu.dot_dimension_numbers<[1], [0], [0], [1], [0, 0, 1, 1], [], []>} : vector<16x64xf32>, vector<64x32xf32>, vector<16x32xf32> -> vector<16x32xf32>
    %c0_74 = arith.constant 0 : index
    %c0_75 = arith.constant 0 : index
    %c0_76 = arith.constant 0 : index
    %167 = vector.load %arg12[%c0_74, %c0_75, %c0_76] : memref<2x1x32xf32, #tpu.memory_space<vmem>>, vector<1x1x32xf32>
    %168 = vector.shape_cast %167 : vector<1x1x32xf32> to vector<1x32xf32>
    %169 = vector.broadcast %168 : vector<1x32xf32> to vector<16x32xf32>
    %170 = arith.addf %166, %169 : vector<16x32xf32>
    %171 = arith.addf %170, %115 : vector<16x32xf32>
    %c0_77 = arith.constant 0 : index
    %c0_78 = arith.constant 0 : index
    %c0_79 = arith.constant 0 : index
    %172 = vector.load %arg13[%c0_77, %c0_78, %c0_79] : memref<2x1x32xf32, #tpu.memory_space<vmem>>, vector<1x1x32xf32>
    %173 = vector.shape_cast %172 : vector<1x1x32xf32> to vector<1x32xf32>
    %c0_80 = arith.constant 0 : index
    %c0_81 = arith.constant 0 : index
    %c0_82 = arith.constant 0 : index
    %174 = vector.load %arg14[%c0_80, %c0_81, %c0_82] : memref<2x1x32xf32, #tpu.memory_space<vmem>>, vector<1x1x32xf32>
    %175 = vector.shape_cast %174 : vector<1x1x32xf32> to vector<1x32xf32>
    %cst_83 = arith.constant dense<0.000000e+00> : vector<16xf32>
    %176 = vector.multi_reduction <add>, %171, %cst_83 [1] : vector<16x32xf32> to vector<16xf32>
    %177 = vector.shape_cast %176 : vector<16xf32> to vector<16x1xf32>
    %cst_84 = arith.constant 3.200000e+01 : f32
    %178 = vector.broadcast %cst_84 : f32 to vector<16x1xf32>
    %179 = arith.divf %177, %178 : vector<16x1xf32>
    %180 = vector.broadcast %179 : vector<16x1xf32> to vector<16x32xf32>
    %181 = arith.subf %171, %180 : vector<16x32xf32>
    %182 = arith.mulf %181, %181 : vector<16x32xf32>
    %cst_85 = arith.constant dense<0.000000e+00> : vector<16xf32>
    %183 = vector.multi_reduction <add>, %182, %cst_85 [1] : vector<16x32xf32> to vector<16xf32>
    %184 = vector.shape_cast %183 : vector<16xf32> to vector<16x1xf32>
    %cst_86 = arith.constant 3.200000e+01 : f32
    %185 = vector.broadcast %cst_86 : f32 to vector<16x1xf32>
    %186 = arith.divf %184, %185 : vector<16x1xf32>
    %187 = vector.broadcast %179 : vector<16x1xf32> to vector<16x32xf32>
    %188 = arith.subf %171, %187 : vector<16x32xf32>
    %cst_87 = arith.constant 9.99999996E-13 : f32
    %189 = vector.broadcast %cst_87 : f32 to vector<16x1xf32>
    %190 = arith.addf %186, %189 : vector<16x1xf32>
    %191 = math.rsqrt %190 : vector<16x1xf32>
    %192 = vector.broadcast %191 : vector<16x1xf32> to vector<16x32xf32>
    %193 = arith.mulf %188, %192 : vector<16x32xf32>
    %194 = vector.broadcast %173 : vector<1x32xf32> to vector<16x32xf32>
    %195 = arith.mulf %193, %194 : vector<16x32xf32>
    %196 = vector.broadcast %175 : vector<1x32xf32> to vector<16x32xf32>
    %197 = arith.addf %195, %196 : vector<16x32xf32>
    %c1 = arith.constant 1 : index
    %c0_88 = arith.constant 0 : index
    %c0_89 = arith.constant 0 : index
    %198 = vector.load %arg3[%c1, %c0_88, %c0_89] : memref<2x32x96xf32, #tpu.memory_space<vmem>>, vector<1x32x96xf32>
    %199 = vector.shape_cast %198 : vector<1x32x96xf32> to vector<32x96xf32>
    %cst_90 = arith.constant dense<0.000000e+00> : vector<16x96xf32>
    %200 = tpu.matmul %197, %199, %cst_90 {dimension_numbers = #tpu.dot_dimension_numbers<[1], [0], [0], [1], [0, 0, 1, 1], [], []>} : vector<16x32xf32>, vector<32x96xf32>, vector<16x96xf32> -> vector<16x96xf32>
    %c1_91 = arith.constant 1 : index
    %c0_92 = arith.constant 0 : index
    %c0_93 = arith.constant 0 : index
    %201 = vector.load %arg4[%c1_91, %c0_92, %c0_93] : memref<2x1x96xf32, #tpu.memory_space<vmem>>, vector<1x1x96xf32>
    %202 = vector.shape_cast %201 : vector<1x1x96xf32> to vector<1x96xf32>
    %203 = vector.broadcast %202 : vector<1x96xf32> to vector<16x96xf32>
    %204 = arith.addf %200, %203 : vector<16x96xf32>
    %205 = vector.extract_strided_slice %204 {offsets = [0, 0], sizes = [16, 8], strides = [1, 1]} : vector<16x96xf32> to vector<16x8xf32>
    %206 = vector.extract_strided_slice %204 {offsets = [0, 32], sizes = [16, 8], strides = [1, 1]} : vector<16x96xf32> to vector<16x8xf32>
    %207 = vector.extract_strided_slice %204 {offsets = [0, 64], sizes = [16, 8], strides = [1, 1]} : vector<16x96xf32> to vector<16x8xf32>
    %cst_94 = arith.constant dense<0.000000e+00> : vector<16x16xf32>
    %208 = tpu.matmul %205, %206, %cst_94 {dimension_numbers = #tpu.dot_dimension_numbers<[1], [1], [0], [0], [0, 0, 1, 0], [], []>} : vector<16x8xf32>, vector<16x8xf32>, vector<16x16xf32> -> vector<16x16xf32>
    %cst_95 = arith.constant 0.353553385 : f32
    %209 = vector.broadcast %cst_95 : f32 to vector<16x16xf32>
    %210 = arith.mulf %208, %209 : vector<16x16xf32>
    %211 = arith.addf %210, %1 : vector<16x16xf32>
    %cst_96 = arith.constant dense<0xFF800000> : vector<16xf32>
    %212 = vector.multi_reduction <maximumf>, %211, %cst_96 [1] : vector<16x16xf32> to vector<16xf32>
    %213 = vector.shape_cast %212 : vector<16xf32> to vector<16x1xf32>
    %214 = vector.broadcast %213 : vector<16x1xf32> to vector<16x16xf32>
    %215 = arith.subf %211, %214 : vector<16x16xf32>
    %216 = math.exp %215 : vector<16x16xf32>
    %cst_97 = arith.constant dense<0.000000e+00> : vector<16xf32>
    %217 = vector.multi_reduction <add>, %216, %cst_97 [1] : vector<16x16xf32> to vector<16xf32>
    %218 = vector.shape_cast %217 : vector<16xf32> to vector<16x1xf32>
    %219 = tpu.reciprocal %218 {approx = true} : vector<16x1xf32> -> vector<16x1xf32>
    %220 = vector.broadcast %219 : vector<16x1xf32> to vector<16x16xf32>
    %221 = arith.mulf %216, %220 : vector<16x16xf32>
    %cst_98 = arith.constant dense<0.000000e+00> : vector<16x8xf32>
    %222 = tpu.matmul %221, %207, %cst_98 {dimension_numbers = #tpu.dot_dimension_numbers<[1], [0], [0], [1], [0, 0, 1, 1], [], []>} : vector<16x16xf32>, vector<16x8xf32>, vector<16x8xf32> -> vector<16x8xf32>
    %223 = vector.extract_strided_slice %204 {offsets = [0, 8], sizes = [16, 8], strides = [1, 1]} : vector<16x96xf32> to vector<16x8xf32>
    %224 = vector.extract_strided_slice %204 {offsets = [0, 40], sizes = [16, 8], strides = [1, 1]} : vector<16x96xf32> to vector<16x8xf32>
    %225 = vector.extract_strided_slice %204 {offsets = [0, 72], sizes = [16, 8], strides = [1, 1]} : vector<16x96xf32> to vector<16x8xf32>
    %cst_99 = arith.constant dense<0.000000e+00> : vector<16x16xf32>
    %226 = tpu.matmul %223, %224, %cst_99 {dimension_numbers = #tpu.dot_dimension_numbers<[1], [1], [0], [0], [0, 0, 1, 0], [], []>} : vector<16x8xf32>, vector<16x8xf32>, vector<16x16xf32> -> vector<16x16xf32>
    %cst_100 = arith.constant 0.353553385 : f32
    %227 = vector.broadcast %cst_100 : f32 to vector<16x16xf32>
    %228 = arith.mulf %226, %227 : vector<16x16xf32>
    %229 = arith.addf %228, %1 : vector<16x16xf32>
    %cst_101 = arith.constant dense<0xFF800000> : vector<16xf32>
    %230 = vector.multi_reduction <maximumf>, %229, %cst_101 [1] : vector<16x16xf32> to vector<16xf32>
    %231 = vector.shape_cast %230 : vector<16xf32> to vector<16x1xf32>
    %232 = vector.broadcast %231 : vector<16x1xf32> to vector<16x16xf32>
    %233 = arith.subf %229, %232 : vector<16x16xf32>
    %234 = math.exp %233 : vector<16x16xf32>
    %cst_102 = arith.constant dense<0.000000e+00> : vector<16xf32>
    %235 = vector.multi_reduction <add>, %234, %cst_102 [1] : vector<16x16xf32> to vector<16xf32>
    %236 = vector.shape_cast %235 : vector<16xf32> to vector<16x1xf32>
    %237 = tpu.reciprocal %236 {approx = true} : vector<16x1xf32> -> vector<16x1xf32>
    %238 = vector.broadcast %237 : vector<16x1xf32> to vector<16x16xf32>
    %239 = arith.mulf %234, %238 : vector<16x16xf32>
    %cst_103 = arith.constant dense<0.000000e+00> : vector<16x8xf32>
    %240 = tpu.matmul %239, %225, %cst_103 {dimension_numbers = #tpu.dot_dimension_numbers<[1], [0], [0], [1], [0, 0, 1, 1], [], []>} : vector<16x16xf32>, vector<16x8xf32>, vector<16x8xf32> -> vector<16x8xf32>
    %241 = vector.extract_strided_slice %204 {offsets = [0, 16], sizes = [16, 8], strides = [1, 1]} : vector<16x96xf32> to vector<16x8xf32>
    %242 = vector.extract_strided_slice %204 {offsets = [0, 48], sizes = [16, 8], strides = [1, 1]} : vector<16x96xf32> to vector<16x8xf32>
    %243 = vector.extract_strided_slice %204 {offsets = [0, 80], sizes = [16, 8], strides = [1, 1]} : vector<16x96xf32> to vector<16x8xf32>
    %cst_104 = arith.constant dense<0.000000e+00> : vector<16x16xf32>
    %244 = tpu.matmul %241, %242, %cst_104 {dimension_numbers = #tpu.dot_dimension_numbers<[1], [1], [0], [0], [0, 0, 1, 0], [], []>} : vector<16x8xf32>, vector<16x8xf32>, vector<16x16xf32> -> vector<16x16xf32>
    %cst_105 = arith.constant 0.353553385 : f32
    %245 = vector.broadcast %cst_105 : f32 to vector<16x16xf32>
    %246 = arith.mulf %244, %245 : vector<16x16xf32>
    %247 = arith.addf %246, %1 : vector<16x16xf32>
    %cst_106 = arith.constant dense<0xFF800000> : vector<16xf32>
    %248 = vector.multi_reduction <maximumf>, %247, %cst_106 [1] : vector<16x16xf32> to vector<16xf32>
    %249 = vector.shape_cast %248 : vector<16xf32> to vector<16x1xf32>
    %250 = vector.broadcast %249 : vector<16x1xf32> to vector<16x16xf32>
    %251 = arith.subf %247, %250 : vector<16x16xf32>
    %252 = math.exp %251 : vector<16x16xf32>
    %cst_107 = arith.constant dense<0.000000e+00> : vector<16xf32>
    %253 = vector.multi_reduction <add>, %252, %cst_107 [1] : vector<16x16xf32> to vector<16xf32>
    %254 = vector.shape_cast %253 : vector<16xf32> to vector<16x1xf32>
    %255 = tpu.reciprocal %254 {approx = true} : vector<16x1xf32> -> vector<16x1xf32>
    %256 = vector.broadcast %255 : vector<16x1xf32> to vector<16x16xf32>
    %257 = arith.mulf %252, %256 : vector<16x16xf32>
    %cst_108 = arith.constant dense<0.000000e+00> : vector<16x8xf32>
    %258 = tpu.matmul %257, %243, %cst_108 {dimension_numbers = #tpu.dot_dimension_numbers<[1], [0], [0], [1], [0, 0, 1, 1], [], []>} : vector<16x16xf32>, vector<16x8xf32>, vector<16x8xf32> -> vector<16x8xf32>
    %259 = vector.extract_strided_slice %204 {offsets = [0, 24], sizes = [16, 8], strides = [1, 1]} : vector<16x96xf32> to vector<16x8xf32>
    %260 = vector.extract_strided_slice %204 {offsets = [0, 56], sizes = [16, 8], strides = [1, 1]} : vector<16x96xf32> to vector<16x8xf32>
    %261 = vector.extract_strided_slice %204 {offsets = [0, 88], sizes = [16, 8], strides = [1, 1]} : vector<16x96xf32> to vector<16x8xf32>
    %cst_109 = arith.constant dense<0.000000e+00> : vector<16x16xf32>
    %262 = tpu.matmul %259, %260, %cst_109 {dimension_numbers = #tpu.dot_dimension_numbers<[1], [1], [0], [0], [0, 0, 1, 0], [], []>} : vector<16x8xf32>, vector<16x8xf32>, vector<16x16xf32> -> vector<16x16xf32>
    %cst_110 = arith.constant 0.353553385 : f32
    %263 = vector.broadcast %cst_110 : f32 to vector<16x16xf32>
    %264 = arith.mulf %262, %263 : vector<16x16xf32>
    %265 = arith.addf %264, %1 : vector<16x16xf32>
    %cst_111 = arith.constant dense<0xFF800000> : vector<16xf32>
    %266 = vector.multi_reduction <maximumf>, %265, %cst_111 [1] : vector<16x16xf32> to vector<16xf32>
    %267 = vector.shape_cast %266 : vector<16xf32> to vector<16x1xf32>
    %268 = vector.broadcast %267 : vector<16x1xf32> to vector<16x16xf32>
    %269 = arith.subf %265, %268 : vector<16x16xf32>
    %270 = math.exp %269 : vector<16x16xf32>
    %cst_112 = arith.constant dense<0.000000e+00> : vector<16xf32>
    %271 = vector.multi_reduction <add>, %270, %cst_112 [1] : vector<16x16xf32> to vector<16xf32>
    %272 = vector.shape_cast %271 : vector<16xf32> to vector<16x1xf32>
    %273 = tpu.reciprocal %272 {approx = true} : vector<16x1xf32> -> vector<16x1xf32>
    %274 = vector.broadcast %273 : vector<16x1xf32> to vector<16x16xf32>
    %275 = arith.mulf %270, %274 : vector<16x16xf32>
    %cst_113 = arith.constant dense<0.000000e+00> : vector<16x8xf32>
    %276 = tpu.matmul %275, %261, %cst_113 {dimension_numbers = #tpu.dot_dimension_numbers<[1], [0], [0], [1], [0, 0, 1, 1], [], []>} : vector<16x16xf32>, vector<16x8xf32>, vector<16x8xf32> -> vector<16x8xf32>
    %277 = tpu.concatenate %222, %240, %258, %276 in 1 : vector<16x8xf32>, vector<16x8xf32>, vector<16x8xf32>, vector<16x8xf32> -> vector<16x32xf32>
    %c1_114 = arith.constant 1 : index
    %c0_115 = arith.constant 0 : index
    %c0_116 = arith.constant 0 : index
    %278 = vector.load %arg5[%c1_114, %c0_115, %c0_116] : memref<2x32x32xf32, #tpu.memory_space<vmem>>, vector<1x32x32xf32>
    %279 = vector.shape_cast %278 : vector<1x32x32xf32> to vector<32x32xf32>
    %cst_117 = arith.constant dense<0.000000e+00> : vector<16x32xf32>
    %280 = tpu.matmul %277, %279, %cst_117 {dimension_numbers = #tpu.dot_dimension_numbers<[1], [0], [0], [1], [0, 0, 1, 1], [], []>} : vector<16x32xf32>, vector<32x32xf32>, vector<16x32xf32> -> vector<16x32xf32>
    %c1_118 = arith.constant 1 : index
    %c0_119 = arith.constant 0 : index
    %c0_120 = arith.constant 0 : index
    %281 = vector.load %arg6[%c1_118, %c0_119, %c0_120] : memref<2x1x32xf32, #tpu.memory_space<vmem>>, vector<1x1x32xf32>
    %282 = vector.shape_cast %281 : vector<1x1x32xf32> to vector<1x32xf32>
    %283 = vector.broadcast %282 : vector<1x32xf32> to vector<16x32xf32>
    %284 = arith.addf %280, %283 : vector<16x32xf32>
    %285 = arith.addf %284, %197 : vector<16x32xf32>
    %c1_121 = arith.constant 1 : index
    %c0_122 = arith.constant 0 : index
    %c0_123 = arith.constant 0 : index
    %286 = vector.load %arg7[%c1_121, %c0_122, %c0_123] : memref<2x1x32xf32, #tpu.memory_space<vmem>>, vector<1x1x32xf32>
    %287 = vector.shape_cast %286 : vector<1x1x32xf32> to vector<1x32xf32>
    %c1_124 = arith.constant 1 : index
    %c0_125 = arith.constant 0 : index
    %c0_126 = arith.constant 0 : index
    %288 = vector.load %arg8[%c1_124, %c0_125, %c0_126] : memref<2x1x32xf32, #tpu.memory_space<vmem>>, vector<1x1x32xf32>
    %289 = vector.shape_cast %288 : vector<1x1x32xf32> to vector<1x32xf32>
    %cst_127 = arith.constant dense<0.000000e+00> : vector<16xf32>
    %290 = vector.multi_reduction <add>, %285, %cst_127 [1] : vector<16x32xf32> to vector<16xf32>
    %291 = vector.shape_cast %290 : vector<16xf32> to vector<16x1xf32>
    %cst_128 = arith.constant 3.200000e+01 : f32
    %292 = vector.broadcast %cst_128 : f32 to vector<16x1xf32>
    %293 = arith.divf %291, %292 : vector<16x1xf32>
    %294 = vector.broadcast %293 : vector<16x1xf32> to vector<16x32xf32>
    %295 = arith.subf %285, %294 : vector<16x32xf32>
    %296 = arith.mulf %295, %295 : vector<16x32xf32>
    %cst_129 = arith.constant dense<0.000000e+00> : vector<16xf32>
    %297 = vector.multi_reduction <add>, %296, %cst_129 [1] : vector<16x32xf32> to vector<16xf32>
    %298 = vector.shape_cast %297 : vector<16xf32> to vector<16x1xf32>
    %cst_130 = arith.constant 3.200000e+01 : f32
    %299 = vector.broadcast %cst_130 : f32 to vector<16x1xf32>
    %300 = arith.divf %298, %299 : vector<16x1xf32>
    %301 = vector.broadcast %293 : vector<16x1xf32> to vector<16x32xf32>
    %302 = arith.subf %285, %301 : vector<16x32xf32>
    %cst_131 = arith.constant 9.99999996E-13 : f32
    %303 = vector.broadcast %cst_131 : f32 to vector<16x1xf32>
    %304 = arith.addf %300, %303 : vector<16x1xf32>
    %305 = math.rsqrt %304 : vector<16x1xf32>
    %306 = vector.broadcast %305 : vector<16x1xf32> to vector<16x32xf32>
    %307 = arith.mulf %302, %306 : vector<16x32xf32>
    %308 = vector.broadcast %287 : vector<1x32xf32> to vector<16x32xf32>
    %309 = arith.mulf %307, %308 : vector<16x32xf32>
    %310 = vector.broadcast %289 : vector<1x32xf32> to vector<16x32xf32>
    %311 = arith.addf %309, %310 : vector<16x32xf32>
    %c1_132 = arith.constant 1 : index
    %c0_133 = arith.constant 0 : index
    %c0_134 = arith.constant 0 : index
    %312 = vector.load %arg9[%c1_132, %c0_133, %c0_134] : memref<2x32x64xf32, #tpu.memory_space<vmem>>, vector<1x32x64xf32>
    %313 = vector.shape_cast %312 : vector<1x32x64xf32> to vector<32x64xf32>
    %cst_135 = arith.constant dense<0.000000e+00> : vector<16x64xf32>
    %314 = tpu.matmul %311, %313, %cst_135 {dimension_numbers = #tpu.dot_dimension_numbers<[1], [0], [0], [1], [0, 0, 1, 1], [], []>} : vector<16x32xf32>, vector<32x64xf32>, vector<16x64xf32> -> vector<16x64xf32>
    %c1_136 = arith.constant 1 : index
    %c0_137 = arith.constant 0 : index
    %c0_138 = arith.constant 0 : index
    %315 = vector.load %arg10[%c1_136, %c0_137, %c0_138] : memref<2x1x64xf32, #tpu.memory_space<vmem>>, vector<1x1x64xf32>
    %316 = vector.shape_cast %315 : vector<1x1x64xf32> to vector<1x64xf32>
    %317 = vector.broadcast %316 : vector<1x64xf32> to vector<16x64xf32>
    %318 = arith.addf %314, %317 : vector<16x64xf32>
    %cst_139 = arith.constant 5.000000e-01 : f32
    %319 = vector.broadcast %cst_139 : f32 to vector<16x64xf32>
    %320 = arith.mulf %319, %318 : vector<16x64xf32>
    %cst_140 = arith.constant 0.707106769 : f32
    %321 = vector.broadcast %cst_140 : f32 to vector<16x64xf32>
    %322 = arith.mulf %318, %321 : vector<16x64xf32>
    %cst_141 = arith.constant 0.000000e+00 : f32
    %323 = vector.broadcast %cst_141 : f32 to vector<16x64xf32>
    %324 = arith.cmpf oge, %322, %323 : vector<16x64xf32>
    %cst_142 = arith.constant 1.000000e+00 : f32
    %cst_143 = arith.constant -1.000000e+00 : f32
    %325 = vector.broadcast %cst_142 : f32 to vector<16x64xf32>
    %326 = vector.broadcast %cst_143 : f32 to vector<16x64xf32>
    %327 = arith.select %324, %325, %326 : vector<16x64xi1>, vector<16x64xf32>
    %328 = math.absf %322 : vector<16x64xf32>
    %cst_144 = arith.constant 0.327591091 : f32
    %329 = vector.broadcast %cst_144 : f32 to vector<16x64xf32>
    %330 = arith.mulf %329, %328 : vector<16x64xf32>
    %cst_145 = arith.constant 1.000000e+00 : f32
    %331 = vector.broadcast %cst_145 : f32 to vector<16x64xf32>
    %332 = arith.addf %331, %330 : vector<16x64xf32>
    %cst_146 = arith.constant 1.000000e+00 : f32
    %333 = vector.broadcast %cst_146 : f32 to vector<16x64xf32>
    %334 = arith.divf %333, %332 : vector<16x64xf32>
    %cst_147 = arith.constant 1.06140542 : f32
    %335 = vector.broadcast %cst_147 : f32 to vector<16x64xf32>
    %336 = arith.mulf %335, %334 : vector<16x64xf32>
    %cst_148 = arith.constant -1.45315206 : f32
    %337 = vector.broadcast %cst_148 : f32 to vector<16x64xf32>
    %338 = arith.addf %336, %337 : vector<16x64xf32>
    %339 = arith.mulf %338, %334 : vector<16x64xf32>
    %cst_149 = arith.constant 1.42141378 : f32
    %340 = vector.broadcast %cst_149 : f32 to vector<16x64xf32>
    %341 = arith.addf %339, %340 : vector<16x64xf32>
    %342 = arith.mulf %341, %334 : vector<16x64xf32>
    %cst_150 = arith.constant -0.284496725 : f32
    %343 = vector.broadcast %cst_150 : f32 to vector<16x64xf32>
    %344 = arith.addf %342, %343 : vector<16x64xf32>
    %345 = arith.mulf %344, %334 : vector<16x64xf32>
    %cst_151 = arith.constant 0.254829586 : f32
    %346 = vector.broadcast %cst_151 : f32 to vector<16x64xf32>
    %347 = arith.addf %345, %346 : vector<16x64xf32>
    %348 = arith.mulf %347, %334 : vector<16x64xf32>
    %cst_152 = arith.constant 0.000000e+00 : f32
    %349 = vector.broadcast %cst_152 : f32 to vector<16x64xf32>
    %350 = arith.subf %349, %328 : vector<16x64xf32>
    %351 = arith.mulf %350, %328 : vector<16x64xf32>
    %352 = math.exp %351 : vector<16x64xf32>
    %353 = arith.mulf %348, %352 : vector<16x64xf32>
    %cst_153 = arith.constant 1.000000e+00 : f32
    %354 = vector.broadcast %cst_153 : f32 to vector<16x64xf32>
    %355 = arith.subf %354, %353 : vector<16x64xf32>
    %356 = arith.mulf %327, %355 : vector<16x64xf32>
    %cst_154 = arith.constant 1.000000e+00 : f32
    %357 = vector.broadcast %cst_154 : f32 to vector<16x64xf32>
    %358 = arith.addf %357, %356 : vector<16x64xf32>
    %359 = arith.mulf %320, %358 : vector<16x64xf32>
    %c1_155 = arith.constant 1 : index
    %c0_156 = arith.constant 0 : index
    %c0_157 = arith.constant 0 : index
    %360 = vector.load %arg11[%c1_155, %c0_156, %c0_157] : memref<2x64x32xf32, #tpu.memory_space<vmem>>, vector<1x64x32xf32>
    %361 = vector.shape_cast %360 : vector<1x64x32xf32> to vector<64x32xf32>
    %cst_158 = arith.constant dense<0.000000e+00> : vector<16x32xf32>
    %362 = tpu.matmul %359, %361, %cst_158 {dimension_numbers = #tpu.dot_dimension_numbers<[1], [0], [0], [1], [0, 0, 1, 1], [], []>} : vector<16x64xf32>, vector<64x32xf32>, vector<16x32xf32> -> vector<16x32xf32>
    %c1_159 = arith.constant 1 : index
    %c0_160 = arith.constant 0 : index
    %c0_161 = arith.constant 0 : index
    %363 = vector.load %arg12[%c1_159, %c0_160, %c0_161] : memref<2x1x32xf32, #tpu.memory_space<vmem>>, vector<1x1x32xf32>
    %364 = vector.shape_cast %363 : vector<1x1x32xf32> to vector<1x32xf32>
    %365 = vector.broadcast %364 : vector<1x32xf32> to vector<16x32xf32>
    %366 = arith.addf %362, %365 : vector<16x32xf32>
    %367 = arith.addf %366, %311 : vector<16x32xf32>
    %c1_162 = arith.constant 1 : index
    %c0_163 = arith.constant 0 : index
    %c0_164 = arith.constant 0 : index
    %368 = vector.load %arg13[%c1_162, %c0_163, %c0_164] : memref<2x1x32xf32, #tpu.memory_space<vmem>>, vector<1x1x32xf32>
    %369 = vector.shape_cast %368 : vector<1x1x32xf32> to vector<1x32xf32>
    %c1_165 = arith.constant 1 : index
    %c0_166 = arith.constant 0 : index
    %c0_167 = arith.constant 0 : index
    %370 = vector.load %arg14[%c1_165, %c0_166, %c0_167] : memref<2x1x32xf32, #tpu.memory_space<vmem>>, vector<1x1x32xf32>
    %371 = vector.shape_cast %370 : vector<1x1x32xf32> to vector<1x32xf32>
    %cst_168 = arith.constant dense<0.000000e+00> : vector<16xf32>
    %372 = vector.multi_reduction <add>, %367, %cst_168 [1] : vector<16x32xf32> to vector<16xf32>
    %373 = vector.shape_cast %372 : vector<16xf32> to vector<16x1xf32>
    %cst_169 = arith.constant 3.200000e+01 : f32
    %374 = vector.broadcast %cst_169 : f32 to vector<16x1xf32>
    %375 = arith.divf %373, %374 : vector<16x1xf32>
    %376 = vector.broadcast %375 : vector<16x1xf32> to vector<16x32xf32>
    %377 = arith.subf %367, %376 : vector<16x32xf32>
    %378 = arith.mulf %377, %377 : vector<16x32xf32>
    %cst_170 = arith.constant dense<0.000000e+00> : vector<16xf32>
    %379 = vector.multi_reduction <add>, %378, %cst_170 [1] : vector<16x32xf32> to vector<16xf32>
    %380 = vector.shape_cast %379 : vector<16xf32> to vector<16x1xf32>
    %cst_171 = arith.constant 3.200000e+01 : f32
    %381 = vector.broadcast %cst_171 : f32 to vector<16x1xf32>
    %382 = arith.divf %380, %381 : vector<16x1xf32>
    %383 = vector.broadcast %375 : vector<16x1xf32> to vector<16x32xf32>
    %384 = arith.subf %367, %383 : vector<16x32xf32>
    %cst_172 = arith.constant 9.99999996E-13 : f32
    %385 = vector.broadcast %cst_172 : f32 to vector<16x1xf32>
    %386 = arith.addf %382, %385 : vector<16x1xf32>
    %387 = math.rsqrt %386 : vector<16x1xf32>
    %388 = vector.broadcast %387 : vector<16x1xf32> to vector<16x32xf32>
    %389 = arith.mulf %384, %388 : vector<16x32xf32>
    %390 = vector.broadcast %369 : vector<1x32xf32> to vector<16x32xf32>
    %391 = arith.mulf %389, %390 : vector<16x32xf32>
    %392 = vector.broadcast %371 : vector<1x32xf32> to vector<16x32xf32>
    %393 = arith.addf %391, %392 : vector<16x32xf32>
    %c0_173 = arith.constant 0 : index
    %c0_174 = arith.constant 0 : index
    %394 = vector.load %arg15[%c0_173, %c0_174] : memref<32x128xf32, #tpu.memory_space<vmem>>, vector<32x128xf32>
    %cst_175 = arith.constant dense<0.000000e+00> : vector<16x128xf32>
    %395 = tpu.matmul %393, %394, %cst_175 {dimension_numbers = #tpu.dot_dimension_numbers<[1], [0], [0], [1], [0, 0, 1, 1], [], []>} : vector<16x32xf32>, vector<32x128xf32>, vector<16x128xf32> -> vector<16x128xf32>
    %c0_176 = arith.constant 0 : index
    %c0_177 = arith.constant 0 : index
    %396 = vector.load %arg16[%c0_176, %c0_177] : memref<1x128xf32, #tpu.memory_space<vmem>>, vector<1x128xf32>
    %397 = vector.broadcast %396 : vector<1x128xf32> to vector<16x128xf32>
    %398 = arith.addf %395, %397 : vector<16x128xf32>
    %c0_178 = arith.constant 0 : index
    %c0_179 = arith.constant 0 : index
    %399 = vector.load %arg17[%c0_178, %c0_179] : memref<16x128xf32, #tpu.memory_space<vmem>>, vector<16x128xf32>
    tpu.vector_store %arg17[%c0_178, %c0_179], %398 {strides = array<i32>} : memref<16x128xf32, #tpu.memory_space<vmem>>, vector<16x128xf32>,
    return
  }
  func.func @transform_0(%arg0: i32) -> (i32, i32) {
    %c0_i32 = arith.constant 0 : i32
    %c0_i32_0 = arith.constant 0 : i32
    %c0_i32_1 = arith.constant 0 : i32
    return %c0_i32, %c0_i32_0 : i32, i32
  }
  func.func @transform_1(%arg0: i32) -> (i32, i32) {
    %c0_i32 = arith.constant 0 : i32
    %c0_i32_0 = arith.constant 0 : i32
    %c0_i32_1 = arith.constant 0 : i32
    return %c0_i32, %c0_i32_0 : i32, i32
  }
  func.func @transform_2(%arg0: i32) -> (i32, i32, i32) {
    %c0_i32 = arith.constant 0 : i32
    %c0_i32_0 = arith.constant 0 : i32
    %c0_i32_1 = arith.constant 0 : i32
    %c0_i32_2 = arith.constant 0 : i32
    return %c0_i32, %c0_i32_0, %c0_i32_1 : i32, i32, i32
  }
  func.func @transform_3(%arg0: i32) -> (i32, i32, i32) {
    %c0_i32 = arith.constant 0 : i32
    %c0_i32_0 = arith.constant 0 : i32
    %c0_i32_1 = arith.constant 0 : i32
    %c0_i32_2 = arith.constant 0 : i32
    return %c0_i32, %c0_i32_0, %c0_i32_1 : i32, i32, i32
  }
  func.func @transform_4(%arg0: i32) -> (i32, i32, i32) {
    %c0_i32 = arith.constant 0 : i32
    %c0_i32_0 = arith.constant 0 : i32
    %c0_i32_1 = arith.constant 0 : i32
    %c0_i32_2 = arith.constant 0 : i32
    return %c0_i32, %c0_i32_0, %c0_i32_1 : i32, i32, i32
  }
  func.func @transform_5(%arg0: i32) -> (i32, i32, i32) {
    %c0_i32 = arith.constant 0 : i32
    %c0_i32_0 = arith.constant 0 : i32
    %c0_i32_1 = arith.constant 0 : i32
    %c0_i32_2 = arith.constant 0 : i32
    return %c0_i32, %c0_i32_0, %c0_i32_1 : i32, i32, i32
  }
  func.func @transform_6(%arg0: i32) -> (i32, i32, i32) {
    %c0_i32 = arith.constant 0 : i32
    %c0_i32_0 = arith.constant 0 : i32
    %c0_i32_1 = arith.constant 0 : i32
    %c0_i32_2 = arith.constant 0 : i32
    return %c0_i32, %c0_i32_0, %c0_i32_1 : i32, i32, i32
  }
  func.func @transform_7(%arg0: i32) -> (i32, i32, i32) {
    %c0_i32 = arith.constant 0 : i32
    %c0_i32_0 = arith.constant 0 : i32
    %c0_i32_1 = arith.constant 0 : i32
    %c0_i32_2 = arith.constant 0 : i32
    return %c0_i32, %c0_i32_0, %c0_i32_1 : i32, i32, i32
  }
  func.func @transform_8(%arg0: i32) -> (i32, i32, i32) {
    %c0_i32 = arith.constant 0 : i32
    %c0_i32_0 = arith.constant 0 : i32
    %c0_i32_1 = arith.constant 0 : i32
    %c0_i32_2 = arith.constant 0 : i32
    return %c0_i32, %c0_i32_0, %c0_i32_1 : i32, i32, i32
  }
  func.func @transform_9(%arg0: i32) -> (i32, i32, i32) {
    %c0_i32 = arith.constant 0 : i32
    %c0_i32_0 = arith.constant 0 : i32
    %c0_i32_1 = arith.constant 0 : i32
    %c0_i32_2 = arith.constant 0 : i32
    return %c0_i32, %c0_i32_0, %c0_i32_1 : i32, i32, i32
  }
  func.func @transform_10(%arg0: i32) -> (i32, i32, i32) {
    %c0_i32 = arith.constant 0 : i32
    %c0_i32_0 = arith.constant 0 : i32
    %c0_i32_1 = arith.constant 0 : i32
    %c0_i32_2 = arith.constant 0 : i32
    return %c0_i32, %c0_i32_0, %c0_i32_1 : i32, i32, i32
  }
  func.func @transform_11(%arg0: i32) -> (i32, i32, i32) {
    %c0_i32 = arith.constant 0 : i32
    %c0_i32_0 = arith.constant 0 : i32
    %c0_i32_1 = arith.constant 0 : i32
    %c0_i32_2 = arith.constant 0 : i32
    return %c0_i32, %c0_i32_0, %c0_i32_1 : i32, i32, i32
  }
  func.func @transform_12(%arg0: i32) -> (i32, i32, i32) {
    %c0_i32 = arith.constant 0 : i32
    %c0_i32_0 = arith.constant 0 : i32
    %c0_i32_1 = arith.constant 0 : i32
    %c0_i32_2 = arith.constant 0 : i32
    return %c0_i32, %c0_i32_0, %c0_i32_1 : i32, i32, i32
  }
  func.func @transform_13(%arg0: i32) -> (i32, i32, i32) {
    %c0_i32 = arith.constant 0 : i32
    %c0_i32_0 = arith.constant 0 : i32
    %c0_i32_1 = arith.constant 0 : i32
    %c0_i32_2 = arith.constant 0 : i32
    return %c0_i32, %c0_i32_0, %c0_i32_1 : i32, i32, i32
  }
  func.func @transform_14(%arg0: i32) -> (i32, i32) {
    %c0_i32 = arith.constant 0 : i32
    %c0_i32_0 = arith.constant 0 : i32
    %c0_i32_1 = arith.constant 0 : i32
    return %c0_i32, %c0_i32_0 : i32, i32
  }
  func.func @transform_15(%arg0: i32) -> (i32, i32) {
    %c0_i32 = arith.constant 0 : i32
    %c0_i32_0 = arith.constant 0 : i32
    %c0_i32_1 = arith.constant 0 : i32
    return %c0_i32, %c0_i32_0 : i32, i32
  }
  func.func @transform_16(%arg0: i32) -> (i32, i32) {
    %c0_i32 = arith.constant 0 : i32
    %c0_i32_0 = arith.constant 0 : i32
    %c0_i32_1 = arith.constant 0 : i32
    return %c0_i32, %c0_i32_0 : i32, i32
  }
}

</mosaic_0001>

<llo_original>
// kernel: distill_bert_classifier_forward.1
$region0: #{distill_bert_classifier_forward.1}
  #allocation0 [shape = 'u32[]', space=smem, size = 0x4, offset = 0x4, fixed_abs, tag = 'smem constant byte address 0x4 - core index']
  #allocation1 [shape = 'u32[144,128]{1,0:T(1,128)}', space=vmem, size = 0x12000, scoped, tag = 'internal scratch']
  %s0 = inlined_call_operand.vmem [shape: f32[16,32], index: 0, kind: input, shape index: {}]
  %s1 = inlined_call_operand.vmem [shape: f32[16,16], index: 1, kind: input, shape index: {}]
  %s2 = inlined_call_operand.vmem [shape: f32[2,32,96], index: 2, kind: input, shape index: {}]
  %s3 = inlined_call_operand.vmem [shape: f32[2,1,96], index: 3, kind: input, shape index: {}]
  %s4 = inlined_call_operand.vmem [shape: f32[2,32,32], index: 4, kind: input, shape index: {}]
  %s5 = inlined_call_operand.vmem [shape: f32[2,1,32], index: 5, kind: input, shape index: {}]
  %s6 = inlined_call_operand.vmem [shape: f32[2,1,32], index: 6, kind: input, shape index: {}]
  %s7 = inlined_call_operand.vmem [shape: f32[2,1,32], index: 7, kind: input, shape index: {}]
  %s8 = inlined_call_operand.vmem [shape: f32[2,32,64], index: 8, kind: input, shape index: {}]
  %s9 = inlined_call_operand.vmem [shape: f32[2,1,64], index: 9, kind: input, shape index: {}]
  %s10 = inlined_call_operand.vmem [shape: f32[2,64,32], index: 10, kind: input, shape index: {}]
  %s11 = inlined_call_operand.vmem [shape: f32[2,1,32], index: 11, kind: input, shape index: {}]
  %s12 = inlined_call_operand.vmem [shape: f32[2,1,32], index: 12, kind: input, shape index: {}]
  %s13 = inlined_call_operand.vmem [shape: f32[2,1,32], index: 13, kind: input, shape index: {}]
  %s14 = inlined_call_operand.vmem [shape: f32[32,128], index: 14, kind: input, shape index: {}]
  %s15 = inlined_call_operand.vmem [shape: f32[1,128], index: 15, kind: input, shape index: {}]
  %s16 = inlined_call_operand.vmem [shape: f32[16,128], index: 16, kind: output, shape index: {}]
  %s17 = sld [smem:[#allocation0]]
  $region74: #{distill_bert_classifier_forward.1} parent=0
    _
  %s19 = ssub.s32 1, %s17
  %s20 = scalar_select 0, %s19, %s17
  // Predicated region
  $region2: #{distill_bert_classifier_forward.1} parent=0 // pred_check
    _
  $region3: #{distill_bert_classifier_forward.1} parent=0 // pred_check_branch
    %22 = sbr.rel (0) target = $region5
  $region4: #{distill_bert_classifier_forward.1} parent=0 // pred_region
    _
  $region5: #{distill_bert_classifier_forward.1} parent=0 // pred_fallthru
    _
  // Predicated region
  $region6: #{distill_bert_classifier_forward.1} parent=0 // pred_check
    _
  $region7: #{distill_bert_classifier_forward.1} parent=0 // pred_check_branch
    %24 = sbr.rel (0) target = $region9
  $region8: #{distill_bert_classifier_forward.1} parent=0 // pred_region
    _
  $region9: #{distill_bert_classifier_forward.1} parent=0 // pred_fallthru
    _
  // Predicated region
  $region10: #{distill_bert_classifier_forward.1} parent=0 // pred_check
    _
  $region11: #{distill_bert_classifier_forward.1} parent=0 // pred_check_branch
    %26 = sbr.rel (0) target = $region13
  $region12: #{distill_bert_classifier_forward.1} parent=0 // pred_region
    _
  $region13: #{distill_bert_classifier_forward.1} parent=0 // pred_fallthru
    _
  // Predicated region
  $region14: #{distill_bert_classifier_forward.1} parent=0 // pred_check
    _
  $region15: #{distill_bert_classifier_forward.1} parent=0 // pred_check_branch
    %28 = sbr.rel (0) target = $region17
  $region16: #{distill_bert_classifier_forward.1} parent=0 // pred_region
    _
  $region17: #{distill_bert_classifier_forward.1} parent=0 // pred_fallthru
    _
  // Predicated region
  $region18: #{distill_bert_classifier_forward.1} parent=0 // pred_check
    _
  $region19: #{distill_bert_classifier_forward.1} parent=0 // pred_check_branch
    %30 = sbr.rel (0) target = $region21
  $region20: #{distill_bert_classifier_forward.1} parent=0 // pred_region
    _
  $region21: #{distill_bert_classifier_forward.1} parent=0 // pred_fallthru
    _
  // Predicated region
  $region22: #{distill_bert_classifier_forward.1} parent=0 // pred_check
    _
  $region23: #{distill_bert_classifier_forward.1} parent=0 // pred_check_branch
    %32 = sbr.rel (0) target = $region25
  $region24: #{distill_bert_classifier_forward.1} parent=0 // pred_region
    _
  $region25: #{distill_bert_classifier_forward.1} parent=0 // pred_fallthru
    _
  // Predicated region
  $region26: #{distill_bert_classifier_forward.1} parent=0 // pred_check
    _
  $region27: #{distill_bert_classifier_forward.1} parent=0 // pred_check_branch
    %34 = sbr.rel (0) target = $region29
  $region28: #{distill_bert_classifier_forward.1} parent=0 // pred_region
    _
  $region29: #{distill_bert_classifier_forward.1} parent=0 // pred_fallthru
    _
  // Predicated region
  $region30: #{distill_bert_classifier_forward.1} parent=0 // pred_check
    _
  $region31: #{distill_bert_classifier_forward.1} parent=0 // pred_check_branch
    %36 = sbr.rel (0) target = $region33
  $region32: #{distill_bert_classifier_forward.1} parent=0 // pred_region
    _
  $region33: #{distill_bert_classifier_forward.1} parent=0 // pred_fallthru
    _
  // Predicated region
  $region34: #{distill_bert_classifier_forward.1} parent=0 // pred_check
    _
  $region35: #{distill_bert_classifier_forward.1} parent=0 // pred_check_branch
    %38 = sbr.rel (0) target = $region37
  $region36: #{distill_bert_classifier_forward.1} parent=0 // pred_region
    _
  $region37: #{distill_bert_classifier_forward.1} parent=0 // pred_fallthru
    _
  // Predicated region
  $region38: #{distill_bert_classifier_forward.1} parent=0 // pred_check
    _
  $region39: #{distill_bert_classifier_forward.1} parent=0 // pred_check_branch
    %40 = sbr.rel (0) target = $region41
  $region40: #{distill_bert_classifier_forward.1} parent=0 // pred_region
    _
  $region41: #{distill_bert_classifier_forward.1} parent=0 // pred_fallthru
    _
  // Predicated region
  $region42: #{distill_bert_classifier_forward.1} parent=0 // pred_check
    _
  $region43: #{distill_bert_classifier_forward.1} parent=0 // pred_check_branch
    %42 = sbr.rel (0) target = $region45
  $region44: #{distill_bert_classifier_forward.1} parent=0 // pred_region
    _
  $region45: #{distill_bert_classifier_forward.1} parent=0 // pred_fallthru
    _
  // Predicated region
  $region46: #{distill_bert_classifier_forward.1} parent=0 // pred_check
    _
  $region47: #{distill_bert_classifier_forward.1} parent=0 // pred_check_branch
    %44 = sbr.rel (0) target = $region49
  $region48: #{distill_bert_classifier_forward.1} parent=0 // pred_region
    _
  $region49: #{distill_bert_classifier_forward.1} parent=0 // pred_fallthru
    _
  // Predicated region
  $region50: #{distill_bert_classifier_forward.1} parent=0 // pred_check
    _
  $region51: #{distill_bert_classifier_forward.1} parent=0 // pred_check_branch
    %46 = sbr.rel (0) target = $region53
  $region52: #{distill_bert_classifier_forward.1} parent=0 // pred_region
    _
  $region53: #{distill_bert_classifier_forward.1} parent=0 // pred_fallthru
    _
  // Predicated region
  $region54: #{distill_bert_classifier_forward.1} parent=0 // pred_check
    _
  $region55: #{distill_bert_classifier_forward.1} parent=0 // pred_check_branch
    %48 = sbr.rel (0) target = $region57
  $region56: #{distill_bert_classifier_forward.1} parent=0 // pred_region
    _
  $region57: #{distill_bert_classifier_forward.1} parent=0 // pred_fallthru
    _
  // Predicated region
  $region58: #{distill_bert_classifier_forward.1} parent=0 // pred_check
    _
  $region59: #{distill_bert_classifier_forward.1} parent=0 // pred_check_branch
    %50 = sbr.rel (0) target = $region61
  $region60: #{distill_bert_classifier_forward.1} parent=0 // pred_region
    _
  $region61: #{distill_bert_classifier_forward.1} parent=0 // pred_fallthru
    _
  // Predicated region
  $region62: #{distill_bert_classifier_forward.1} parent=0 // pred_check
    _
  $region63: #{distill_bert_classifier_forward.1} parent=0 // pred_check_branch
    %52 = sbr.rel (0) target = $region65
  $region64: #{distill_bert_classifier_forward.1} parent=0 // pred_region
    _
  $region65: #{distill_bert_classifier_forward.1} parent=0 // pred_fallthru
    _
  %v53 = vld [vmem:[%s0] sm:$0xff]
  %v54 = vld [vmem:[%s0 + $0x8] sm:$0xff]
  %v55 = vld [vmem:[%s1] sm:$0xff]
  %v56 = vld [vmem:[%s1 + $0x8] sm:$0xff]
  %v57 = vld [vmem:[%s2] sm:$0xff]
  %v58 = vld [vmem:[%s2 + $0x8] sm:$0xff]
  %v59 = vld [vmem:[%s2 + $0x10] sm:$0xff]
  %v60 = vld [vmem:[%s2 + $0x18] sm:$0xff]
  %v61 = vld [vmem:[%s3] sm:$0x1]
  %v63 = vlaneseq
  %v64 = vshrl.u32 %v63, 7
  %v65 = vsub.s32 0, %v64
  %v66 = vrot.slane %v61, %v65
  %vm68 = vcmask 261120
  %v70 = vsel %vm68, %v53, 0
  %v73 = vsel %vm68, %v54, 0
  %75 = vmatprep.subr.mxu0 0.0
  %76 = vmatpush1.msra.mxu0 %v57
  %77 = vmatprep.subr.mxu0 0.0
  %78 = vmatpush1.msra.mxu0 %v58
  %79 = vmatprep.subr.mxu0 0.0
  %80 = vmatpush1.msra.mxu0 %v59
  %81 = vmatprep.subr.mxu0 0.0
  %82 = vmatpush1.msra.mxu0 %v60
  %83 = vmatprep.subr.mxu0 0.0
  %84 = vmatpush1.msra.mxu0 0.0
  %85 = vmatprep.subr.mxu0 0.0
  %86 = vmatpush1.msra.mxu0 0.0
  %87 = vmatprep.subr.mxu0 0.0
  %88 = vmatpush1.msra.mxu0 0.0
  %89 = vmatprep.subr.mxu0 0.0
  %90 = vmatpush1.msra.mxu0 0.0
  %91 = vmatprep.subr.mxu0 0.0
  %92 = vmatpush1.msra.mxu0 0.0
  %93 = vmatprep.subr.mxu0 0.0
  %94 = vmatpush1.msra.mxu0 0.0
  %95 = vmatprep.subr.mxu0 0.0
  %96 = vmatpush1.msra.mxu0 0.0
  %97 = vmatprep.subr.mxu0 0.0
  %98 = vmatpush1.msra.mxu0 0.0
  %99 = vmatprep.subr.mxu0 0.0
  %100 = vmatpush1.msra.mxu0 0.0
  %101 = vmatprep.subr.mxu0 0.0
  %102 = vmatpush1.msra.mxu0 0.0
  %103 = vmatprep.subr.mxu0 0.0
  %104 = vmatpush1.msra.mxu0 0.0
  %105 = vmatprep.subr.mxu0 0.0
  %106 = vmatpush1.msra.mxu0 0.0
  %107 = vmatprep.subr.mxu0 0.0
  %108 = vmatpush1.msra.mxu0 0.0
  %109 = vmatprep.subr.mxu0 0.0
  %110 = vmatpush1.msra.mxu0 0.0
  %111 = vmatprep.subr.mxu0 0.0
  %112 = vmatpush1.msra.mxu0 0.0
  %113 = vmatprep.subr.mxu0 0.0
  %114 = vmatpush1.msra.mxu0 0.0
  %115 = vmatprep.subr.mxu0 0.0
  %116 = vmatpush1.msra.mxu0 0.0
  %117 = vmatprep.subr.mxu0 0.0
  %118 = vmatpush1.msra.mxu0 0.0
  %119 = vmatprep.subr.mxu0 0.0
  %120 = vmatpush1.msra.mxu0 0.0
  %121 = vmatprep.subr.mxu0 0.0
  %122 = vmatpush1.msra.mxu0 0.0
  %123 = vmatprep.subr.mxu0 0.0
  %124 = vmatpush1.msra.mxu0 0.0
  %125 = vmatprep.subr.mxu0 0.0
  %126 = vmatpush1.msra.mxu0 0.0
  %127 = vmatprep.subr.mxu0 0.0
  %128 = vmatpush1.msra.mxu0 0.0
  %129 = vmatprep.subr.mxu0 0.0
  %130 = vmatpush1.msra.mxu0 0.0
  %131 = vmatprep.subr.mxu0 0.0
  %132 = vmatpush1.msra.mxu0 0.0
  %133 = vmatprep.subr.mxu0 0.0
  %134 = vmatpush1.msra.mxu0 0.0
  %135 = vmatprep.subr.mxu0 0.0
  %136 = vmatpush1.msra.mxu0 0.0
  %137 = vmatprep.subr.mxu0 0.0
  %138 = vmatpush1.msra.mxu0 0.0
  %139 = vmatprep.mubr.f32.mxu0 0.0
  %140 = vmatmul.mubr.f32.gmra.mrb[0].mxu0 %v70
  %v141 = vpop.f32.mrb[0].mxu0
  %v142 = vadd.f32 %v66, %v141
  %v143 = vpop.f32.mrb[0].mxu0
  %144 = vmatprep.mubr.f32.mxu0 0.0
  %145 = vmatmul.mubr.f32.gmra.mrb[0].mxu0 %v73
  %v146 = vpop.f32.mrb[0].mxu0
  %v147 = vadd.f32 %v66, %v146
  %v148 = vpop.f32.mrb[0].mxu0
  %149 = vdwg.mxu0
  %152 = vrot.lane.b32.xlu0 %v142, 96
  %v153 = vpop.permute.xlu0 %152
  %154 = vrot.lane.b32.xlu0 %v147, 96
  %v155 = vpop.permute.xlu0 %154
  %vm156 = vcmask 64512
  %v157 = vsel %vm156, %v142, 0
  %v159 = vsel %vm156, %v147, 0
  %v161 = vsel %vm156, %v153, 0
  %v163 = vsel %vm156, %v155, 0
  %165 = vmatprep.subr.mxu0 0.0
  %166 = vmatpush1.xpose.msra.mxu0 %v161
  %167 = vmatprep.subr.mxu0 0.0
  %168 = vmatpush1.xpose.msra.mxu0 %v163
  %169 = vmatprep.subr.mxu0 0.0
  %170 = vmatpush1.xpose.msra.mxu0 0.0
  %171 = vmatprep.subr.mxu0 0.0
  %172 = vmatpush1.xpose.msra.mxu0 0.0
  %173 = vmatprep.subr.mxu0 0.0
  %174 = vmatpush1.xpose.msra.mxu0 0.0
  %175 = vmatprep.subr.mxu0 0.0
  %176 = vmatpush1.xpose.msra.mxu0 0.0
  %177 = vmatprep.subr.mxu0 0.0
  %178 = vmatpush1.xpose.msra.mxu0 0.0
  %179 = vmatprep.subr.mxu0 0.0
  %180 = vmatpush1.xpose.msra.mxu0 0.0
  %181 = vmatprep.subr.mxu0 0.0
  %182 = vmatpush1.xpose.msra.mxu0 0.0
  %183 = vmatprep.subr.mxu0 0.0
  %184 = vmatpush1.xpose.msra.mxu0 0.0
  %185 = vmatprep.subr.mxu0 0.0
  %186 = vmatpush1.xpose.msra.mxu0 0.0
  %187 = vmatprep.subr.mxu0 0.0
  %188 = vmatpush1.xpose.msra.mxu0 0.0
  %189 = vmatprep.subr.mxu0 0.0
  %190 = vmatpush1.xpose.msra.mxu0 0.0
  %191 = vmatprep.subr.mxu0 0.0
  %192 = vmatpush1.xpose.msra.mxu0 0.0
  %193 = vmatprep.subr.mxu0 0.0
  %194 = vmatpush1.xpose.msra.mxu0 0.0
  %195 = vmatprep.subr.mxu0 0.0
  %196 = vmatpush1.xpose.msra.mxu0 0.0
  %197 = vmatprep.subr.mxu0 0.0
  %198 = vmatpush1.xpose.msra.mxu0 0.0
  %199 = vmatprep.subr.mxu0 0.0
  %200 = vmatpush1.xpose.msra.mxu0 0.0
  %201 = vmatprep.subr.mxu0 0.0
  %202 = vmatpush1.xpose.msra.mxu0 0.0
  %203 = vmatprep.subr.mxu0 0.0
  %204 = vmatpush1.xpose.msra.mxu0 0.0
  %205 = vmatprep.subr.mxu0 0.0
  %206 = vmatpush1.xpose.msra.mxu0 0.0
  %207 = vmatprep.subr.mxu0 0.0
  %208 = vmatpush1.xpose.msra.mxu0 0.0
  %209 = vmatprep.subr.mxu0 0.0
  %210 = vmatpush1.xpose.msra.mxu0 0.0
  %211 = vmatprep.subr.mxu0 0.0
  %212 = vmatpush1.xpose.msra.mxu0 0.0
  %213 = vmatprep.subr.mxu0 0.0
  %214 = vmatpush1.xpose.msra.mxu0 0.0
  %215 = vmatprep.subr.mxu0 0.0
  %216 = vmatpush1.xpose.msra.mxu0 0.0
  %217 = vmatprep.subr.mxu0 0.0
  %218 = vmatpush1.xpose.msra.mxu0 0.0
  %219 = vmatprep.subr.mxu0 0.0
  %220 = vmatpush1.xpose.msra.mxu0 0.0
  %221 = vmatprep.subr.mxu0 0.0
  %222 = vmatpush1.xpose.msra.mxu0 0.0
  %223 = vmatprep.subr.mxu0 0.0
  %224 = vmatpush1.xpose.msra.mxu0 0.0
  %225 = vmatprep.subr.mxu0 0.0
  %226 = vmatpush1.xpose.msra.mxu0 0.0
  %227 = vmatprep.subr.mxu0 0.0
  %228 = vmatpush1.xpose.msra.mxu0 0.0
  %229 = vmatprep.mubr.f32.mxu0 0.0
  %230 = vmatmul.mubr.f32.gmra.mrb[0].mxu0 %v157
  %v231 = vpop.f32.mrb[0].mxu0
  %v232 = vadd.f32 0.0, %v231
  %v233 = vpop.f32.mrb[0].mxu0
  %234 = vmatprep.mubr.f32.mxu0 0.0
  %235 = vmatmul.mubr.f32.gmra.mrb[0].mxu0 %v159
  %v236 = vpop.f32.mrb[0].mxu0
  %v237 = vadd.f32 0.0, %v236
  %v238 = vpop.f32.mrb[0].mxu0
  %239 = vdwg.mxu0
  %v240 = vmul.f32 %v232, 0.35355338
  %v241 = vmul.f32 %v237, 0.35355338
  %v242 = vadd.f32 %v240, %v55
  %v243 = vadd.f32 %v241, %v56
  %vm244 = vcmask 130048
  %v245 = vsel %vm244, %v242, -inf
  %246 = vmax.xlane.f32.xlu0 %v245
  %v247 = vpop.xlane.xlu0 %246
  %v248 = vsel %vm244, %v243, -inf
  %249 = vmax.xlane.f32.xlu0 %v248
  %v250 = vpop.xlane.xlu0 %249
  %v251 = vsub.f32 %v242, %v247
  %v252 = vsub.f32 %v243, %v250
  %v253 = vmul.f32 %v251, 1.442695
  %v254 = vpow.pop %v253
  %v255 = vmul.f32 %v252, 1.442695
  %v256 = vpow.pop %v255
  %v257 = vsel %vm244, %v254, 0.0
  %258 = vadd.xlane.f32.xlu0 %v257
  %v259 = vpop.xlane.xlu0 %258
  %v260 = vsel %vm244, %v256, 0.0
  %261 = vadd.xlane.f32.xlu0 %v260
  %v262 = vpop.xlane.xlu0 %261
  %v263 = vrcp.pop %v259
  %v264 = vrcp.pop %v262
  %v265 = vmul.f32 %v254, %v263
  %v266 = vmul.f32 %v256, %v264
  %267 = vrot.lane.b32.xlu0 %v142, 64
  %v268 = vpop.permute.xlu0 %267
  %269 = vrot.lane.b32.xlu0 %v147, 64
  %v270 = vpop.permute.xlu0 %269
  %v274 = vsel %vm244, %v265, 0
  %v277 = vsel %vm244, %v266, 0
  %279 = vmatprep.subr.mxu0 0.0
  %280 = vmatpush1.msra.mxu0 %v268
  %281 = vmatprep.subr.mxu0 0.0
  %282 = vmatpush1.msra.mxu0 %v270
  %283 = vmatprep.subr.mxu0 0.0
  %284 = vmatpush1.msra.mxu0 0.0
  %285 = vmatprep.subr.mxu0 0.0
  %286 = vmatpush1.msra.mxu0 0.0
  %287 = vmatprep.subr.mxu0 0.0
  %288 = vmatpush1.msra.mxu0 0.0
  %289 = vmatprep.subr.mxu0 0.0
  %290 = vmatpush1.msra.mxu0 0.0
  %291 = vmatprep.subr.mxu0 0.0
  %292 = vmatpush1.msra.mxu0 0.0
  %293 = vmatprep.subr.mxu0 0.0
  %294 = vmatpush1.msra.mxu0 0.0
  %295 = vmatprep.subr.mxu0 0.0
  %296 = vmatpush1.msra.mxu0 0.0
  %297 = vmatprep.subr.mxu0 0.0
  %298 = vmatpush1.msra.mxu0 0.0
  %299 = vmatprep.subr.mxu0 0.0
  %300 = vmatpush1.msra.mxu0 0.0
  %301 = vmatprep.subr.mxu0 0.0
  %302 = vmatpush1.msra.mxu0 0.0
  %303 = vmatprep.subr.mxu0 0.0
  %304 = vmatpush1.msra.mxu0 0.0
  %305 = vmatprep.subr.mxu0 0.0
  %306 = vmatpush1.msra.mxu0 0.0
  %307 = vmatprep.subr.mxu0 0.0
  %308 = vmatpush1.msra.mxu0 0.0
  %309 = vmatprep.subr.mxu0 0.0
  %310 = vmatpush1.msra.mxu0 0.0
  %311 = vmatprep.subr.mxu0 0.0
  %312 = vmatpush1.msra.mxu0 0.0
  %313 = vmatprep.subr.mxu0 0.0
  %314 = vmatpush1.msra.mxu0 0.0
  %315 = vmatprep.subr.mxu0 0.0
  %316 = vmatpush1.msra.mxu0 0.0
  %317 = vmatprep.subr.mxu0 0.0
  %318 = vmatpush1.msra.mxu0 0.0
  %319 = vmatprep.subr.mxu0 0.0
  %320 = vmatpush1.msra.mxu0 0.0
  %321 = vmatprep.subr.mxu0 0.0
  %322 = vmatpush1.msra.mxu0 0.0
  %323 = vmatprep.subr.mxu0 0.0
  %324 = vmatpush1.msra.mxu0 0.0
  %325 = vmatprep.subr.mxu0 0.0
  %326 = vmatpush1.msra.mxu0 0.0
  %327 = vmatprep.subr.mxu0 0.0
  %328 = vmatpush1.msra.mxu0 0.0
  %329 = vmatprep.subr.mxu0 0.0
  %330 = vmatpush1.msra.mxu0 0.0
  %331 = vmatprep.subr.mxu0 0.0
  %332 = vmatpush1.msra.mxu0 0.0
  %333 = vmatprep.subr.mxu0 0.0
  %334 = vmatpush1.msra.mxu0 0.0
  %335 = vmatprep.subr.mxu0 0.0
  %336 = vmatpush1.msra.mxu0 0.0
  %337 = vmatprep.subr.mxu0 0.0
  %338 = vmatpush1.msra.mxu0 0.0
  %339 = vmatprep.subr.mxu0 0.0
  %340 = vmatpush1.msra.mxu0 0.0
  %341 = vmatprep.subr.mxu0 0.0
  %342 = vmatpush1.msra.mxu0 0.0
  %343 = vmatprep.mubr.f32.mxu0 0.0
  %344 = vmatmul.mubr.f32.gmra.mrb[0].mxu0 %v274
  %v345 = vpop.f32.mrb[0].mxu0
  %v346 = vadd.f32 0.0, %v345
  %v347 = vpop.f32.mrb[0].mxu0
  %348 = vmatprep.mubr.f32.mxu0 0.0
  %349 = vmatmul.mubr.f32.gmra.mrb[0].mxu0 %v277
  %v350 = vpop.f32.mrb[0].mxu0
  %v351 = vadd.f32 0.0, %v350
  %v352 = vpop.f32.mrb[0].mxu0
  %353 = vdwg.mxu0
  %354 = vrot.lane.b32.xlu0 %v142, 120
  %v355 = vpop.permute.xlu0 %354
  %356 = vrot.lane.b32.xlu0 %v147, 120
  %v357 = vpop.permute.xlu0 %356
  %358 = vrot.lane.b32.xlu0 %v142, 88
  %v359 = vpop.permute.xlu0 %358
  %360 = vrot.lane.b32.xlu0 %v147, 88
  %v361 = vpop.permute.xlu0 %360
  %v362 = vsel %vm156, %v355, 0
  %v364 = vsel %vm156, %v357, 0
  %v366 = vsel %vm156, %v359, 0
  %v368 = vsel %vm156, %v361, 0
  %370 = vmatprep.subr.mxu0 0.0
  %371 = vmatpush1.xpose.msra.mxu0 %v366
  %372 = vmatprep.subr.mxu0 0.0
  %373 = vmatpush1.xpose.msra.mxu0 %v368
  %374 = vmatprep.subr.mxu0 0.0
  %375 = vmatpush1.xpose.msra.mxu0 0.0
  %376 = vmatprep.subr.mxu0 0.0
  %377 = vmatpush1.xpose.msra.mxu0 0.0
  %378 = vmatprep.subr.mxu0 0.0
  %379 = vmatpush1.xpose.msra.mxu0 0.0
  %380 = vmatprep.subr.mxu0 0.0
  %381 = vmatpush1.xpose.msra.mxu0 0.0
  %382 = vmatprep.subr.mxu0 0.0
  %383 = vmatpush1.xpose.msra.mxu0 0.0
  %384 = vmatprep.subr.mxu0 0.0
  %385 = vmatpush1.xpose.msra.mxu0 0.0
  %386 = vmatprep.subr.mxu0 0.0
  %387 = vmatpush1.xpose.msra.mxu0 0.0
  %388 = vmatprep.subr.mxu0 0.0
  %389 = vmatpush1.xpose.msra.mxu0 0.0
  %390 = vmatprep.subr.mxu0 0.0
  %391 = vmatpush1.xpose.msra.mxu0 0.0
  %392 = vmatprep.subr.mxu0 0.0
  %393 = vmatpush1.xpose.msra.mxu0 0.0
  %394 = vmatprep.subr.mxu0 0.0
  %395 = vmatpush1.xpose.msra.mxu0 0.0
  %396 = vmatprep.subr.mxu0 0.0
  %397 = vmatpush1.xpose.msra.mxu0 0.0
  %398 = vmatprep.subr.mxu0 0.0
  %399 = vmatpush1.xpose.msra.mxu0 0.0
  %400 = vmatprep.subr.mxu0 0.0
  %401 = vmatpush1.xpose.msra.mxu0 0.0
  %402 = vmatprep.subr.mxu0 0.0
  %403 = vmatpush1.xpose.msra.mxu0 0.0
  %404 = vmatprep.subr.mxu0 0.0
  %405 = vmatpush1.xpose.msra.mxu0 0.0
  %406 = vmatprep.subr.mxu0 0.0
  %407 = vmatpush1.xpose.msra.mxu0 0.0
  %408 = vmatprep.subr.mxu0 0.0
  %409 = vmatpush1.xpose.msra.mxu0 0.0
  %410 = vmatprep.subr.mxu0 0.0
  %411 = vmatpush1.xpose.msra.mxu0 0.0
  %412 = vmatprep.subr.mxu0 0.0
  %413 = vmatpush1.xpose.msra.mxu0 0.0
  %414 = vmatprep.subr.mxu0 0.0
  %415 = vmatpush1.xpose.msra.mxu0 0.0
  %416 = vmatprep.subr.mxu0 0.0
  %417 = vmatpush1.xpose.msra.mxu0 0.0
  %418 = vmatprep.subr.mxu0 0.0
  %419 = vmatpush1.xpose.msra.mxu0 0.0
  %420 = vmatprep.subr.mxu0 0.0
  %421 = vmatpush1.xpose.msra.mxu0 0.0
  %422 = vmatprep.subr.mxu0 0.0
  %423 = vmatpush1.xpose.msra.mxu0 0.0
  %424 = vmatprep.subr.mxu0 0.0
  %425 = vmatpush1.xpose.msra.mxu0 0.0
  %426 = vmatprep.subr.mxu0 0.0
  %427 = vmatpush1.xpose.msra.mxu0 0.0
  %428 = vmatprep.subr.mxu0 0.0
  %429 = vmatpush1.xpose.msra.mxu0 0.0
  %430 = vmatprep.subr.mxu0 0.0
  %431 = vmatpush1.xpose.msra.mxu0 0.0
  %432 = vmatprep.subr.mxu0 0.0
  %433 = vmatpush1.xpose.msra.mxu0 0.0
  %434 = vmatprep.mubr.f32.mxu0 0.0
  %435 = vmatmul.mubr.f32.gmra.mrb[0].mxu0 %v362
  %v436 = vpop.f32.mrb[0].mxu0
  %v437 = vadd.f32 0.0, %v436
  %v438 = vpop.f32.mrb[0].mxu0
  %439 = vmatprep.mubr.f32.mxu0 0.0
  %440 = vmatmul.mubr.f32.gmra.mrb[0].mxu0 %v364
  %v441 = vpop.f32.mrb[0].mxu0
  %v442 = vadd.f32 0.0, %v441
  %v443 = vpop.f32.mrb[0].mxu0
  %444 = vdwg.mxu0
  %v445 = vmul.f32 %v437, 0.35355338
  %v446 = vmul.f32 %v442, 0.35355338
  %v447 = vadd.f32 %v445, %v55
  %v448 = vadd.f32 %v446, %v56
  %v449 = vsel %vm244, %v447, -inf
  %450 = vmax.xlane.f32.xlu0 %v449
  %v451 = vpop.xlane.xlu0 %450
  %v452 = vsel %vm244, %v448, -inf
  %453 = vmax.xlane.f32.xlu0 %v452
  %v454 = vpop.xlane.xlu0 %453
  %v455 = vsub.f32 %v447, %v451
  %v456 = vsub.f32 %v448, %v454
  %v457 = vmul.f32 %v455, 1.442695
  %v458 = vpow.pop %v457
  %v459 = vmul.f32 %v456, 1.442695
  %v460 = vpow.pop %v459
  %v461 = vsel %vm244, %v458, 0.0
  %462 = vadd.xlane.f32.xlu0 %v461
  %v463 = vpop.xlane.xlu0 %462
  %v464 = vsel %vm244, %v460, 0.0
  %465 = vadd.xlane.f32.xlu0 %v464
  %v466 = vpop.xlane.xlu0 %465
  %v467 = vrcp.pop %v463
  %v468 = vrcp.pop %v466
  %v469 = vmul.f32 %v458, %v467
  %v470 = vmul.f32 %v460, %v468
  %471 = vrot.lane.b32.xlu0 %v142, 56
  %v472 = vpop.permute.xlu0 %471
  %473 = vrot.lane.b32.xlu0 %v147, 56
  %v474 = vpop.permute.xlu0 %473
  %v478 = vsel %vm244, %v469, 0
  %v481 = vsel %vm244, %v470, 0
  %483 = vmatprep.subr.mxu0 0.0
  %484 = vmatpush1.msra.mxu0 %v472
  %485 = vmatprep.subr.mxu0 0.0
  %486 = vmatpush1.msra.mxu0 %v474
  %487 = vmatprep.subr.mxu0 0.0
  %488 = vmatpush1.msra.mxu0 0.0
  %489 = vmatprep.subr.mxu0 0.0
  %490 = vmatpush1.msra.mxu0 0.0
  %491 = vmatprep.subr.mxu0 0.0
  %492 = vmatpush1.msra.mxu0 0.0
  %493 = vmatprep.subr.mxu0 0.0
  %494 = vmatpush1.msra.mxu0 0.0
  %495 = vmatprep.subr.mxu0 0.0
  %496 = vmatpush1.msra.mxu0 0.0
  %497 = vmatprep.subr.mxu0 0.0
  %498 = vmatpush1.msra.mxu0 0.0
  %499 = vmatprep.subr.mxu0 0.0
  %500 = vmatpush1.msra.mxu0 0.0
  %501 = vmatprep.subr.mxu0 0.0
  %502 = vmatpush1.msra.mxu0 0.0
  %503 = vmatprep.subr.mxu0 0.0
  %504 = vmatpush1.msra.mxu0 0.0
  %505 = vmatprep.subr.mxu0 0.0
  %506 = vmatpush1.msra.mxu0 0.0
  %507 = vmatprep.subr.mxu0 0.0
  %508 = vmatpush1.msra.mxu0 0.0
  %509 = vmatprep.subr.mxu0 0.0
  %510 = vmatpush1.msra.mxu0 0.0
  %511 = vmatprep.subr.mxu0 0.0
  %512 = vmatpush1.msra.mxu0 0.0
  %513 = vmatprep.subr.mxu0 0.0
  %514 = vmatpush1.msra.mxu0 0.0
  %515 = vmatprep.subr.mxu0 0.0
  %516 = vmatpush1.msra.mxu0 0.0
  %517 = vmatprep.subr.mxu0 0.0
  %518 = vmatpush1.msra.mxu0 0.0
  %519 = vmatprep.subr.mxu0 0.0
  %520 = vmatpush1.msra.mxu0 0.0
  %521 = vmatprep.subr.mxu0 0.0
  %522 = vmatpush1.msra.mxu0 0.0
  %523 = vmatprep.subr.mxu0 0.0
  %524 = vmatpush1.msra.mxu0 0.0
  %525 = vmatprep.subr.mxu0 0.0
  %526 = vmatpush1.msra.mxu0 0.0
  %527 = vmatprep.subr.mxu0 0.0
  %528 = vmatpush1.msra.mxu0 0.0
  %529 = vmatprep.subr.mxu0 0.0
  %530 = vmatpush1.msra.mxu0 0.0
  %531 = vmatprep.subr.mxu0 0.0
  %532 = vmatpush1.msra.mxu0 0.0
  %533 = vmatprep.subr.mxu0 0.0
  %534 = vmatpush1.msra.mxu0 0.0
  %535 = vmatprep.subr.mxu0 0.0
  %536 = vmatpush1.msra.mxu0 0.0
  %537 = vmatprep.subr.mxu0 0.0
  %538 = vmatpush1.msra.mxu0 0.0
  %539 = vmatprep.subr.mxu0 0.0
  %540 = vmatpush1.msra.mxu0 0.0
  %541 = vmatprep.subr.mxu0 0.0
  %542 = vmatpush1.msra.mxu0 0.0
  %543 = vmatprep.subr.mxu0 0.0
  %544 = vmatpush1.msra.mxu0 0.0
  %545 = vmatprep.subr.mxu0 0.0
  %546 = vmatpush1.msra.mxu0 0.0
  %547 = vmatprep.mubr.f32.mxu0 0.0
  %548 = vmatmul.mubr.f32.gmra.mrb[0].mxu0 %v478
  %v549 = vpop.f32.mrb[0].mxu0
  %v550 = vadd.f32 0.0, %v549
  %v551 = vpop.f32.mrb[0].mxu0
  %552 = vmatprep.mubr.f32.mxu0 0.0
  %553 = vmatmul.mubr.f32.gmra.mrb[0].mxu0 %v481
  %v554 = vpop.f32.mrb[0].mxu0
  %v555 = vadd.f32 0.0, %v554
  %v556 = vpop.f32.mrb[0].mxu0
  %557 = vdwg.mxu0
  %558 = vrot.lane.b32.xlu0 %v142, 112
  %v559 = vpop.permute.xlu0 %558
  %560 = vrot.lane.b32.xlu0 %v147, 112
  %v561 = vpop.permute.xlu0 %560
  %562 = vrot.lane.b32.xlu0 %v142, 80
  %v563 = vpop.permute.xlu0 %562
  %564 = vrot.lane.b32.xlu0 %v147, 80
  %v565 = vpop.permute.xlu0 %564
  %v566 = vsel %vm156, %v559, 0
  %v568 = vsel %vm156, %v561, 0
  %v570 = vsel %vm156, %v563, 0
  %v572 = vsel %vm156, %v565, 0
  %574 = vmatprep.subr.mxu0 0.0
  %575 = vmatpush1.xpose.msra.mxu0 %v570
  %576 = vmatprep.subr.mxu0 0.0
  %577 = vmatpush1.xpose.msra.mxu0 %v572
  %578 = vmatprep.subr.mxu0 0.0
  %579 = vmatpush1.xpose.msra.mxu0 0.0
  %580 = vmatprep.subr.mxu0 0.0
  %581 = vmatpush1.xpose.msra.mxu0 0.0
  %582 = vmatprep.subr.mxu0 0.0
  %583 = vmatpush1.xpose.msra.mxu0 0.0
  %584 = vmatprep.subr.mxu0 0.0
  %585 = vmatpush1.xpose.msra.mxu0 0.0
  %586 = vmatprep.subr.mxu0 0.0
  %587 = vmatpush1.xpose.msra.mxu0 0.0
  %588 = vmatprep.subr.mxu0 0.0
  %589 = vmatpush1.xpose.msra.mxu0 0.0
  %590 = vmatprep.subr.mxu0 0.0
  %591 = vmatpush1.xpose.msra.mxu0 0.0
  %592 = vmatprep.subr.mxu0 0.0
  %593 = vmatpush1.xpose.msra.mxu0 0.0
  %594 = vmatprep.subr.mxu0 0.0
  %595 = vmatpush1.xpose.msra.mxu0 0.0
  %596 = vmatprep.subr.mxu0 0.0
  %597 = vmatpush1.xpose.msra.mxu0 0.0
  %598 = vmatprep.subr.mxu0 0.0
  %599 = vmatpush1.xpose.msra.mxu0 0.0
  %600 = vmatprep.subr.mxu0 0.0
  %601 = vmatpush1.xpose.msra.mxu0 0.0
  %602 = vmatprep.subr.mxu0 0.0
  %603 = vmatpush1.xpose.msra.mxu0 0.0
  %604 = vmatprep.subr.mxu0 0.0
  %605 = vmatpush1.xpose.msra.mxu0 0.0
  %606 = vmatprep.subr.mxu0 0.0
  %607 = vmatpush1.xpose.msra.mxu0 0.0
  %608 = vmatprep.subr.mxu0 0.0
  %609 = vmatpush1.xpose.msra.mxu0 0.0
  %610 = vmatprep.subr.mxu0 0.0
  %611 = vmatpush1.xpose.msra.mxu0 0.0
  %612 = vmatprep.subr.mxu0 0.0
  %613 = vmatpush1.xpose.msra.mxu0 0.0
  %614 = vmatprep.subr.mxu0 0.0
  %615 = vmatpush1.xpose.msra.mxu0 0.0
  %616 = vmatprep.subr.mxu0 0.0
  %617 = vmatpush1.xpose.msra.mxu0 0.0
  %618 = vmatprep.subr.mxu0 0.0
  %619 = vmatpush1.xpose.msra.mxu0 0.0
  %620 = vmatprep.subr.mxu0 0.0
  %621 = vmatpush1.xpose.msra.mxu0 0.0
  %622 = vmatprep.subr.mxu0 0.0
  %623 = vmatpush1.xpose.msra.mxu0 0.0
  %624 = vmatprep.subr.mxu0 0.0
  %625 = vmatpush1.xpose.msra.mxu0 0.0
  %626 = vmatprep.subr.mxu0 0.0
  %627 = vmatpush1.xpose.msra.mxu0 0.0
  %628 = vmatprep.subr.mxu0 0.0
  %629 = vmatpush1.xpose.msra.mxu0 0.0
  %630 = vmatprep.subr.mxu0 0.0
  %631 = vmatpush1.xpose.msra.mxu0 0.0
  %632 = vmatprep.subr.mxu0 0.0
  %633 = vmatpush1.xpose.msra.mxu0 0.0
  %634 = vmatprep.subr.mxu0 0.0
  %635 = vmatpush1.xpose.msra.mxu0 0.0
  %636 = vmatprep.subr.mxu0 0.0
  %637 = vmatpush1.xpose.msra.mxu0 0.0
  %638 = vmatprep.mubr.f32.mxu0 0.0
  %639 = vmatmul.mubr.f32.gmra.mrb[0].mxu0 %v566
  %v640 = vpop.f32.mrb[0].mxu0
  %v641 = vadd.f32 0.0, %v640
  %v642 = vpop.f32.mrb[0].mxu0
  %643 = vmatprep.mubr.f32.mxu0 0.0
  %644 = vmatmul.mubr.f32.gmra.mrb[0].mxu0 %v568
  %v645 = vpop.f32.mrb[0].mxu0
  %v646 = vadd.f32 0.0, %v645
  %v647 = vpop.f32.mrb[0].mxu0
  %648 = vdwg.mxu0
  %v649 = vmul.f32 %v641, 0.35355338
  %v650 = vmul.f32 %v646, 0.35355338
  %v651 = vadd.f32 %v649, %v55
  %v652 = vadd.f32 %v650, %v56
  %v653 = vsel %vm244, %v651, -inf
  %654 = vmax.xlane.f32.xlu0 %v653
  %v655 = vpop.xlane.xlu0 %654
  %v656 = vsel %vm244, %v652, -inf
  %657 = vmax.xlane.f32.xlu0 %v656
  %v658 = vpop.xlane.xlu0 %657
  %v659 = vsub.f32 %v651, %v655
  %v660 = vsub.f32 %v652, %v658
  %v661 = vmul.f32 %v659, 1.442695
  %v662 = vpow.pop %v661
  %v663 = vmul.f32 %v660, 1.442695
  %v664 = vpow.pop %v663
  %v665 = vsel %vm244, %v662, 0.0
  %666 = vadd.xlane.f32.xlu0 %v665
  %v667 = vpop.xlane.xlu0 %666
  %v668 = vsel %vm244, %v664, 0.0
  %669 = vadd.xlane.f32.xlu0 %v668
  %v670 = vpop.xlane.xlu0 %669
  %v671 = vrcp.pop %v667
  %v672 = vrcp.pop %v670
  %v673 = vmul.f32 %v662, %v671
  %v674 = vmul.f32 %v664, %v672
  %675 = vrot.lane.b32.xlu0 %v142, 48
  %v676 = vpop.permute.xlu0 %675
  %677 = vrot.lane.b32.xlu0 %v147, 48
  %v678 = vpop.permute.xlu0 %677
  %v682 = vsel %vm244, %v673, 0
  %v685 = vsel %vm244, %v674, 0
  %687 = vmatprep.subr.mxu0 0.0
  %688 = vmatpush1.msra.mxu0 %v676
  %689 = vmatprep.subr.mxu0 0.0
  %690 = vmatpush1.msra.mxu0 %v678
  %691 = vmatprep.subr.mxu0 0.0
  %692 = vmatpush1.msra.mxu0 0.0
  %693 = vmatprep.subr.mxu0 0.0
  %694 = vmatpush1.msra.mxu0 0.0
  %695 = vmatprep.subr.mxu0 0.0
  %696 = vmatpush1.msra.mxu0 0.0
  %697 = vmatprep.subr.mxu0 0.0
  %698 = vmatpush1.msra.mxu0 0.0
  %699 = vmatprep.subr.mxu0 0.0
  %700 = vmatpush1.msra.mxu0 0.0
  %701 = vmatprep.subr.mxu0 0.0
  %702 = vmatpush1.msra.mxu0 0.0
  %703 = vmatprep.subr.mxu0 0.0
  %704 = vmatpush1.msra.mxu0 0.0
  %705 = vmatprep.subr.mxu0 0.0
  %706 = vmatpush1.msra.mxu0 0.0
  %707 = vmatprep.subr.mxu0 0.0
  %708 = vmatpush1.msra.mxu0 0.0
  %709 = vmatprep.subr.mxu0 0.0
  %710 = vmatpush1.msra.mxu0 0.0
  %711 = vmatprep.subr.mxu0 0.0
  %712 = vmatpush1.msra.mxu0 0.0
  %713 = vmatprep.subr.mxu0 0.0
  %714 = vmatpush1.msra.mxu0 0.0
  %715 = vmatprep.subr.mxu0 0.0
  %716 = vmatpush1.msra.mxu0 0.0
  %717 = vmatprep.subr.mxu0 0.0
  %718 = vmatpush1.msra.mxu0 0.0
  %719 = vmatprep.subr.mxu0 0.0
  %720 = vmatpush1.msra.mxu0 0.0
  %721 = vmatprep.subr.mxu0 0.0
  %722 = vmatpush1.msra.mxu0 0.0
  %723 = vmatprep.subr.mxu0 0.0
  %724 = vmatpush1.msra.mxu0 0.0
  %725 = vmatprep.subr.mxu0 0.0
  %726 = vmatpush1.msra.mxu0 0.0
  %727 = vmatprep.subr.mxu0 0.0
  %728 = vmatpush1.msra.mxu0 0.0
  %729 = vmatprep.subr.mxu0 0.0
  %730 = vmatpush1.msra.mxu0 0.0
  %731 = vmatprep.subr.mxu0 0.0
  %732 = vmatpush1.msra.mxu0 0.0
  %733 = vmatprep.subr.mxu0 0.0
  %734 = vmatpush1.msra.mxu0 0.0
  %735 = vmatprep.subr.mxu0 0.0
  %736 = vmatpush1.msra.mxu0 0.0
  %737 = vmatprep.subr.mxu0 0.0
  %738 = vmatpush1.msra.mxu0 0.0
  %739 = vmatprep.subr.mxu0 0.0
  %740 = vmatpush1.msra.mxu0 0.0
  %741 = vmatprep.subr.mxu0 0.0
  %742 = vmatpush1.msra.mxu0 0.0
  %743 = vmatprep.subr.mxu0 0.0
  %744 = vmatpush1.msra.mxu0 0.0
  %745 = vmatprep.subr.mxu0 0.0
  %746 = vmatpush1.msra.mxu0 0.0
  %747 = vmatprep.subr.mxu0 0.0
  %748 = vmatpush1.msra.mxu0 0.0
  %749 = vmatprep.subr.mxu0 0.0
  %750 = vmatpush1.msra.mxu0 0.0
  %751 = vmatprep.mubr.f32.mxu0 0.0
  %752 = vmatmul.mubr.f32.gmra.mrb[0].mxu0 %v682
  %v753 = vpop.f32.mrb[0].mxu0
  %v754 = vadd.f32 0.0, %v753
  %v755 = vpop.f32.mrb[0].mxu0
  %756 = vmatprep.mubr.f32.mxu0 0.0
  %757 = vmatmul.mubr.f32.gmra.mrb[0].mxu0 %v685
  %v758 = vpop.f32.mrb[0].mxu0
  %v759 = vadd.f32 0.0, %v758
  %v760 = vpop.f32.mrb[0].mxu0
  %761 = vdwg.mxu0
  %762 = vrot.lane.b32.xlu0 %v142, 104
  %v763 = vpop.permute.xlu0 %762
  %764 = vrot.lane.b32.xlu0 %v147, 104
  %v765 = vpop.permute.xlu0 %764
  %766 = vrot.lane.b32.xlu0 %v142, 72
  %v767 = vpop.permute.xlu0 %766
  %768 = vrot.lane.b32.xlu0 %v147, 72
  %v769 = vpop.permute.xlu0 %768
  %v770 = vsel %vm156, %v763, 0
  %v772 = vsel %vm156, %v765, 0
  %v774 = vsel %vm156, %v767, 0
  %v776 = vsel %vm156, %v769, 0
  %778 = vmatprep.subr.mxu0 0.0
  %779 = vmatpush1.xpose.msra.mxu0 %v774
  %780 = vmatprep.subr.mxu0 0.0
  %781 = vmatpush1.xpose.msra.mxu0 %v776
  %782 = vmatprep.subr.mxu0 0.0
  %783 = vmatpush1.xpose.msra.mxu0 0.0
  %784 = vmatprep.subr.mxu0 0.0
  %785 = vmatpush1.xpose.msra.mxu0 0.0
  %786 = vmatprep.subr.mxu0 0.0
  %787 = vmatpush1.xpose.msra.mxu0 0.0
  %788 = vmatprep.subr.mxu0 0.0
  %789 = vmatpush1.xpose.msra.mxu0 0.0
  %790 = vmatprep.subr.mxu0 0.0
  %791 = vmatpush1.xpose.msra.mxu0 0.0
  %792 = vmatprep.subr.mxu0 0.0
  %793 = vmatpush1.xpose.msra.mxu0 0.0
  %794 = vmatprep.subr.mxu0 0.0
  %795 = vmatpush1.xpose.msra.mxu0 0.0
  %796 = vmatprep.subr.mxu0 0.0
  %797 = vmatpush1.xpose.msra.mxu0 0.0
  %798 = vmatprep.subr.mxu0 0.0
  %799 = vmatpush1.xpose.msra.mxu0 0.0
  %800 = vmatprep.subr.mxu0 0.0
  %801 = vmatpush1.xpose.msra.mxu0 0.0
  %802 = vmatprep.subr.mxu0 0.0
  %803 = vmatpush1.xpose.msra.mxu0 0.0
  %804 = vmatprep.subr.mxu0 0.0
  %805 = vmatpush1.xpose.msra.mxu0 0.0
  %806 = vmatprep.subr.mxu0 0.0
  %807 = vmatpush1.xpose.msra.mxu0 0.0
  %808 = vmatprep.subr.mxu0 0.0
  %809 = vmatpush1.xpose.msra.mxu0 0.0
  %810 = vmatprep.subr.mxu0 0.0
  %811 = vmatpush1.xpose.msra.mxu0 0.0
  %812 = vmatprep.subr.mxu0 0.0
  %813 = vmatpush1.xpose.msra.mxu0 0.0
  %814 = vmatprep.subr.mxu0 0.0
  %815 = vmatpush1.xpose.msra.mxu0 0.0
  %816 = vmatprep.subr.mxu0 0.0
  %817 = vmatpush1.xpose.msra.mxu0 0.0
  %818 = vmatprep.subr.mxu0 0.0
  %819 = vmatpush1.xpose.msra.mxu0 0.0
  %820 = vmatprep.subr.mxu0 0.0
  %821 = vmatpush1.xpose.msra.mxu0 0.0
  %822 = vmatprep.subr.mxu0 0.0
  %823 = vmatpush1.xpose.msra.mxu0 0.0
  %824 = vmatprep.subr.mxu0 0.0
  %825 = vmatpush1.xpose.msra.mxu0 0.0
  %826 = vmatprep.subr.mxu0 0.0
  %827 = vmatpush1.xpose.msra.mxu0 0.0
  %828 = vmatprep.subr.mxu0 0.0
  %829 = vmatpush1.xpose.msra.mxu0 0.0
  %830 = vmatprep.subr.mxu0 0.0
  %831 = vmatpush1.xpose.msra.mxu0 0.0
  %832 = vmatprep.subr.mxu0 0.0
  %833 = vmatpush1.xpose.msra.mxu0 0.0
  %834 = vmatprep.subr.mxu0 0.0
  %835 = vmatpush1.xpose.msra.mxu0 0.0
  %836 = vmatprep.subr.mxu0 0.0
  %837 = vmatpush1.xpose.msra.mxu0 0.0
  %838 = vmatprep.subr.mxu0 0.0
  %839 = vmatpush1.xpose.msra.mxu0 0.0
  %840 = vmatprep.subr.mxu0 0.0
  %841 = vmatpush1.xpose.msra.mxu0 0.0
  %842 = vmatprep.mubr.f32.mxu0 0.0
  %843 = vmatmul.mubr.f32.gmra.mrb[0].mxu0 %v770
  %v844 = vpop.f32.mrb[0].mxu0
  %v845 = vadd.f32 0.0, %v844
  %v846 = vpop.f32.mrb[0].mxu0
  %847 = vmatprep.mubr.f32.mxu0 0.0
  %848 = vmatmul.mubr.f32.gmra.mrb[0].mxu0 %v772
  %v849 = vpop.f32.mrb[0].mxu0
  %v850 = vadd.f32 0.0, %v849
  %v851 = vpop.f32.mrb[0].mxu0
  %852 = vdwg.mxu0
  %v853 = vmul.f32 %v845, 0.35355338
  %v854 = vmul.f32 %v850, 0.35355338
  %v855 = vadd.f32 %v853, %v55
  %v856 = vadd.f32 %v854, %v56
  %v857 = vsel %vm244, %v855, -inf
  %858 = vmax.xlane.f32.xlu0 %v857
  %v859 = vpop.xlane.xlu0 %858
  %v860 = vsel %vm244, %v856, -inf
  %861 = vmax.xlane.f32.xlu0 %v860
  %v862 = vpop.xlane.xlu0 %861
  %v863 = vsub.f32 %v855, %v859
  %v864 = vsub.f32 %v856, %v862
  %v865 = vmul.f32 %v863, 1.442695
  %v866 = vpow.pop %v865
  %v867 = vmul.f32 %v864, 1.442695
  %v868 = vpow.pop %v867
  %v869 = vsel %vm244, %v866, 0.0
  %870 = vadd.xlane.f32.xlu0 %v869
  %v871 = vpop.xlane.xlu0 %870
  %v872 = vsel %vm244, %v868, 0.0
  %873 = vadd.xlane.f32.xlu0 %v872
  %v874 = vpop.xlane.xlu0 %873
  %v875 = vrcp.pop %v871
  %v876 = vrcp.pop %v874
  %v877 = vmul.f32 %v866, %v875
  %v878 = vmul.f32 %v868, %v876
  %879 = vrot.lane.b32.xlu0 %v142, 40
  %v880 = vpop.permute.xlu0 %879
  %881 = vrot.lane.b32.xlu0 %v147, 40
  %v882 = vpop.permute.xlu0 %881
  %v886 = vsel %vm244, %v877, 0
  %v889 = vsel %vm244, %v878, 0
  %891 = vmatprep.subr.mxu0 0.0
  %892 = vmatpush1.msra.mxu0 %v880
  %893 = vmatprep.subr.mxu0 0.0
  %894 = vmatpush1.msra.mxu0 %v882
  %895 = vmatprep.subr.mxu0 0.0
  %896 = vmatpush1.msra.mxu0 0.0
  %897 = vmatprep.subr.mxu0 0.0
  %898 = vmatpush1.msra.mxu0 0.0
  %899 = vmatprep.subr.mxu0 0.0
  %900 = vmatpush1.msra.mxu0 0.0
  %901 = vmatprep.subr.mxu0 0.0
  %902 = vmatpush1.msra.mxu0 0.0
  %903 = vmatprep.subr.mxu0 0.0
  %904 = vmatpush1.msra.mxu0 0.0
  %905 = vmatprep.subr.mxu0 0.0
  %906 = vmatpush1.msra.mxu0 0.0
  %907 = vmatprep.subr.mxu0 0.0
  %908 = vmatpush1.msra.mxu0 0.0
  %909 = vmatprep.subr.mxu0 0.0
  %910 = vmatpush1.msra.mxu0 0.0
  %911 = vmatprep.subr.mxu0 0.0
  %912 = vmatpush1.msra.mxu0 0.0
  %913 = vmatprep.subr.mxu0 0.0
  %914 = vmatpush1.msra.mxu0 0.0
  %915 = vmatprep.subr.mxu0 0.0
  %916 = vmatpush1.msra.mxu0 0.0
  %917 = vmatprep.subr.mxu0 0.0
  %918 = vmatpush1.msra.mxu0 0.0
  %919 = vmatprep.subr.mxu0 0.0
  %920 = vmatpush1.msra.mxu0 0.0
  %921 = vmatprep.subr.mxu0 0.0
  %922 = vmatpush1.msra.mxu0 0.0
  %923 = vmatprep.subr.mxu0 0.0
  %924 = vmatpush1.msra.mxu0 0.0
  %925 = vmatprep.subr.mxu0 0.0
  %926 = vmatpush1.msra.mxu0 0.0
  %927 = vmatprep.subr.mxu0 0.0
  %928 = vmatpush1.msra.mxu0 0.0
  %929 = vmatprep.subr.mxu0 0.0
  %930 = vmatpush1.msra.mxu0 0.0
  %931 = vmatprep.subr.mxu0 0.0
  %932 = vmatpush1.msra.mxu0 0.0
  %933 = vmatprep.subr.mxu0 0.0
  %934 = vmatpush1.msra.mxu0 0.0
  %935 = vmatprep.subr.mxu0 0.0
  %936 = vmatpush1.msra.mxu0 0.0
  %937 = vmatprep.subr.mxu0 0.0
  %938 = vmatpush1.msra.mxu0 0.0
  %939 = vmatprep.subr.mxu0 0.0
  %940 = vmatpush1.msra.mxu0 0.0
  %941 = vmatprep.subr.mxu0 0.0
  %942 = vmatpush1.msra.mxu0 0.0
  %943 = vmatprep.subr.mxu0 0.0
  %944 = vmatpush1.msra.mxu0 0.0
  %945 = vmatprep.subr.mxu0 0.0
  %946 = vmatpush1.msra.mxu0 0.0
  %947 = vmatprep.subr.mxu0 0.0
  %948 = vmatpush1.msra.mxu0 0.0
  %949 = vmatprep.subr.mxu0 0.0
  %950 = vmatpush1.msra.mxu0 0.0
  %951 = vmatprep.subr.mxu0 0.0
  %952 = vmatpush1.msra.mxu0 0.0
  %953 = vmatprep.subr.mxu0 0.0
  %954 = vmatpush1.msra.mxu0 0.0
  %955 = vmatprep.mubr.f32.mxu0 0.0
  %956 = vmatmul.mubr.f32.gmra.mrb[0].mxu0 %v886
  %v957 = vpop.f32.mrb[0].mxu0
  %v958 = vadd.f32 0.0, %v957
  %v959 = vpop.f32.mrb[0].mxu0
  %960 = vmatprep.mubr.f32.mxu0 0.0
  %961 = vmatmul.mubr.f32.gmra.mrb[0].mxu0 %v889
  %v962 = vpop.f32.mrb[0].mxu0
  %v963 = vadd.f32 0.0, %v962
  %v964 = vpop.f32.mrb[0].mxu0
  %965 = vdwg.mxu0
  %968 = vrot.lane.b32.xlu0 %v550, 8
  %v969 = vpop.permute.xlu0 %968
  %970 = vrot.lane.b32.xlu0 %v555, 8
  %v971 = vpop.permute.xlu0 %970
  %976 = vrot.lane.b32.xlu0 %v754, 16
  %v977 = vpop.permute.xlu0 %976
  %978 = vrot.lane.b32.xlu0 %v759, 16
  %v979 = vpop.permute.xlu0 %978
  %984 = vrot.lane.b32.xlu0 %v958, 24
  %v985 = vpop.permute.xlu0 %984
  %986 = vrot.lane.b32.xlu0 %v963, 24
  %v987 = vpop.permute.xlu0 %986
  %v990 = vsel %vm156, %v346, %v969
  %v991 = vsel %vm156, %v351, %v971
  %v992 = vsel %vm244, %v990, %v977
  %v993 = vsel %vm244, %v991, %v979
  %vm994 = vcmask 195584
  %v995 = vsel %vm994, %v992, %v985
  %v996 = vsel %vm994, %v993, %v987
  %v997 = vld [vmem:[%s4] sm:$0xff]
  %v998 = vld [vmem:[%s4 + $0x8] sm:$0xff]
  %v999 = vld [vmem:[%s4 + $0x10] sm:$0xff]
  %v1000 = vld [vmem:[%s4 + $0x18] sm:$0xff]
  %v1001 = vld [vmem:[%s5] sm:$0x1]
  %v1003 = vlaneseq
  %v1004 = vshrl.u32 %v1003, 7
  %v1005 = vsub.s32 0, %v1004
  %v1006 = vrot.slane %v1001, %v1005
  %v1009 = vsel %vm68, %v995, 0
  %v1012 = vsel %vm68, %v996, 0
  %1014 = vmatprep.subr.mxu0 0.0
  %1015 = vmatpush1.msra.mxu0 %v997
  %1016 = vmatprep.subr.mxu0 0.0
  %1017 = vmatpush1.msra.mxu0 %v998
  %1018 = vmatprep.subr.mxu0 0.0
  %1019 = vmatpush1.msra.mxu0 %v999
  %1020 = vmatprep.subr.mxu0 0.0
  %1021 = vmatpush1.msra.mxu0 %v1000
  %1022 = vmatprep.subr.mxu0 0.0
  %1023 = vmatpush1.msra.mxu0 0.0
  %1024 = vmatprep.subr.mxu0 0.0
  %1025 = vmatpush1.msra.mxu0 0.0
  %1026 = vmatprep.subr.mxu0 0.0
  %1027 = vmatpush1.msra.mxu0 0.0
  %1028 = vmatprep.subr.mxu0 0.0
  %1029 = vmatpush1.msra.mxu0 0.0
  %1030 = vmatprep.subr.mxu0 0.0
  %1031 = vmatpush1.msra.mxu0 0.0
  %1032 = vmatprep.subr.mxu0 0.0
  %1033 = vmatpush1.msra.mxu0 0.0
  %1034 = vmatprep.subr.mxu0 0.0
  %1035 = vmatpush1.msra.mxu0 0.0
  %1036 = vmatprep.subr.mxu0 0.0
  %1037 = vmatpush1.msra.mxu0 0.0
  %1038 = vmatprep.subr.mxu0 0.0
  %1039 = vmatpush1.msra.mxu0 0.0
  %1040 = vmatprep.subr.mxu0 0.0
  %1041 = vmatpush1.msra.mxu0 0.0
  %1042 = vmatprep.subr.mxu0 0.0
  %1043 = vmatpush1.msra.mxu0 0.0
  %1044 = vmatprep.subr.mxu0 0.0
  %1045 = vmatpush1.msra.mxu0 0.0
  %1046 = vmatprep.subr.mxu0 0.0
  %1047 = vmatpush1.msra.mxu0 0.0
  %1048 = vmatprep.subr.mxu0 0.0
  %1049 = vmatpush1.msra.mxu0 0.0
  %1050 = vmatprep.subr.mxu0 0.0
  %1051 = vmatpush1.msra.mxu0 0.0
  %1052 = vmatprep.subr.mxu0 0.0
  %1053 = vmatpush1.msra.mxu0 0.0
  %1054 = vmatprep.subr.mxu0 0.0
  %1055 = vmatpush1.msra.mxu0 0.0
  %1056 = vmatprep.subr.mxu0 0.0
  %1057 = vmatpush1.msra.mxu0 0.0
  %1058 = vmatprep.subr.mxu0 0.0
  %1059 = vmatpush1.msra.mxu0 0.0
  %1060 = vmatprep.subr.mxu0 0.0
  %1061 = vmatpush1.msra.mxu0 0.0
  %1062 = vmatprep.subr.mxu0 0.0
  %1063 = vmatpush1.msra.mxu0 0.0
  %1064 = vmatprep.subr.mxu0 0.0
  %1065 = vmatpush1.msra.mxu0 0.0
  %1066 = vmatprep.subr.mxu0 0.0
  %1067 = vmatpush1.msra.mxu0 0.0
  %1068 = vmatprep.subr.mxu0 0.0
  %1069 = vmatpush1.msra.mxu0 0.0
  %1070 = vmatprep.subr.mxu0 0.0
  %1071 = vmatpush1.msra.mxu0 0.0
  %1072 = vmatprep.subr.mxu0 0.0
  %1073 = vmatpush1.msra.mxu0 0.0
  %1074 = vmatprep.subr.mxu0 0.0
  %1075 = vmatpush1.msra.mxu0 0.0
  %1076 = vmatprep.subr.mxu0 0.0
  %1077 = vmatpush1.msra.mxu0 0.0
  %1078 = vmatprep.mubr.f32.mxu0 0.0
  %1079 = vmatmul.mubr.f32.gmra.mrb[0].mxu0 %v1009
  %v1080 = vpop.f32.mrb[0].mxu0
  %v1081 = vadd.f32 %v1006, %v1080
  %v1082 = vpop.f32.mrb[0].mxu0
  %1083 = vmatprep.mubr.f32.mxu0 0.0
  %1084 = vmatmul.mubr.f32.gmra.mrb[0].mxu0 %v1012
  %v1085 = vpop.f32.mrb[0].mxu0
  %v1086 = vadd.f32 %v1006, %v1085
  %v1087 = vpop.f32.mrb[0].mxu0
  %1088 = vdwg.mxu0
  %v1089 = vadd.f32 %v1081, %v53
  %v1090 = vadd.f32 %v1086, %v54
  %v1091 = vld [vmem:[%s6] sm:$0x1]
  %v1092 = vld [vmem:[%s7] sm:$0x1]
  %v1093 = vsel %vm68, %v1089, 0.0
  %1094 = vadd.xlane.f32.xlu0 %v1093
  %v1095 = vpop.xlane.xlu0 %1094
  %v1096 = vsel %vm68, %v1090, 0.0
  %1097 = vadd.xlane.f32.xlu0 %v1096
  %v1098 = vpop.xlane.xlu0 %1097
  %v1099 = vrcp.pop 32.0
  %v1100 = vmul.f32 %v1095, %v1099
  %v1101 = vmul.f32 %v1098, %v1099
  %v1102 = vsub.f32 %v1089, %v1100
  %v1103 = vsub.f32 %v1090, %v1101
  %v1104 = vmul.f32 %v1102, %v1102
  %v1105 = vmul.f32 %v1103, %v1103
  %v1106 = vsel %vm68, %v1104, 0.0
  %1107 = vadd.xlane.f32.xlu0 %v1106
  %v1108 = vpop.xlane.xlu0 %1107
  %v1109 = vsel %vm68, %v1105, 0.0
  %1110 = vadd.xlane.f32.xlu0 %v1109
  %v1111 = vpop.xlane.xlu0 %1110
  %v1112 = vmul.f32 %v1108, %v1099
  %v1113 = vmul.f32 %v1111, %v1099
  %v1114 = vadd.f32 %v1112, 1e-12
  %v1115 = vadd.f32 %v1113, 1e-12
  %v1116 = vrsqrt.pop %v1114
  %v1117 = vrsqrt.pop %v1115
  %v1118 = vmul.f32 %v1102, %v1116
  %v1119 = vmul.f32 %v1103, %v1117
  %v1121 = vlaneseq
  %v1122 = vshrl.u32 %v1121, 7
  %v1123 = vsub.s32 0, %v1122
  %v1124 = vrot.slane %v1091, %v1123
  %v1126 = vmul.f32 %v1118, %v1124
  %v1127 = vmul.f32 %v1119, %v1124
  %v1129 = vlaneseq
  %v1130 = vshrl.u32 %v1129, 7
  %v1131 = vsub.s32 0, %v1130
  %v1132 = vrot.slane %v1092, %v1131
  %v1134 = vadd.f32 %v1126, %v1132
  %v1135 = vadd.f32 %v1127, %v1132
  %v1136 = vld [vmem:[%s8] sm:$0xff]
  %v1137 = vld [vmem:[%s8 + $0x8] sm:$0xff]
  %v1138 = vld [vmem:[%s8 + $0x10] sm:$0xff]
  %v1139 = vld [vmem:[%s8 + $0x18] sm:$0xff]
  %v1140 = vld [vmem:[%s9] sm:$0x1]
  %v1142 = vlaneseq
  %v1143 = vshrl.u32 %v1142, 7
  %v1144 = vsub.s32 0, %v1143
  %v1145 = vrot.slane %v1140, %v1144
  %v1148 = vsel %vm68, %v1134, 0
  %v1151 = vsel %vm68, %v1135, 0
  %1153 = vmatprep.subr.mxu0 0.0
  %1154 = vmatpush1.msra.mxu0 %v1136
  %1155 = vmatprep.subr.mxu0 0.0
  %1156 = vmatpush1.msra.mxu0 %v1137
  %1157 = vmatprep.subr.mxu0 0.0
  %1158 = vmatpush1.msra.mxu0 %v1138
  %1159 = vmatprep.subr.mxu0 0.0
  %1160 = vmatpush1.msra.mxu0 %v1139
  %1161 = vmatprep.subr.mxu0 0.0
  %1162 = vmatpush1.msra.mxu0 0.0
  %1163 = vmatprep.subr.mxu0 0.0
  %1164 = vmatpush1.msra.mxu0 0.0
  %1165 = vmatprep.subr.mxu0 0.0
  %1166 = vmatpush1.msra.mxu0 0.0
  %1167 = vmatprep.subr.mxu0 0.0
  %1168 = vmatpush1.msra.mxu0 0.0
  %1169 = vmatprep.subr.mxu0 0.0
  %1170 = vmatpush1.msra.mxu0 0.0
  %1171 = vmatprep.subr.mxu0 0.0
  %1172 = vmatpush1.msra.mxu0 0.0
  %1173 = vmatprep.subr.mxu0 0.0
  %1174 = vmatpush1.msra.mxu0 0.0
  %1175 = vmatprep.subr.mxu0 0.0
  %1176 = vmatpush1.msra.mxu0 0.0
  %1177 = vmatprep.subr.mxu0 0.0
  %1178 = vmatpush1.msra.mxu0 0.0
  %1179 = vmatprep.subr.mxu0 0.0
  %1180 = vmatpush1.msra.mxu0 0.0
  %1181 = vmatprep.subr.mxu0 0.0
  %1182 = vmatpush1.msra.mxu0 0.0
  %1183 = vmatprep.subr.mxu0 0.0
  %1184 = vmatpush1.msra.mxu0 0.0
  %1185 = vmatprep.subr.mxu0 0.0
  %1186 = vmatpush1.msra.mxu0 0.0
  %1187 = vmatprep.subr.mxu0 0.0
  %1188 = vmatpush1.msra.mxu0 0.0
  %1189 = vmatprep.subr.mxu0 0.0
  %1190 = vmatpush1.msra.mxu0 0.0
  %1191 = vmatprep.subr.mxu0 0.0
  %1192 = vmatpush1.msra.mxu0 0.0
  %1193 = vmatprep.subr.mxu0 0.0
  %1194 = vmatpush1.msra.mxu0 0.0
  %1195 = vmatprep.subr.mxu0 0.0
  %1196 = vmatpush1.msra.mxu0 0.0
  %1197 = vmatprep.subr.mxu0 0.0
  %1198 = vmatpush1.msra.mxu0 0.0
  %1199 = vmatprep.subr.mxu0 0.0
  %1200 = vmatpush1.msra.mxu0 0.0
  %1201 = vmatprep.subr.mxu0 0.0
  %1202 = vmatpush1.msra.mxu0 0.0
  %1203 = vmatprep.subr.mxu0 0.0
  %1204 = vmatpush1.msra.mxu0 0.0
  %1205 = vmatprep.subr.mxu0 0.0
  %1206 = vmatpush1.msra.mxu0 0.0
  %1207 = vmatprep.subr.mxu0 0.0
  %1208 = vmatpush1.msra.mxu0 0.0
  %1209 = vmatprep.subr.mxu0 0.0
  %1210 = vmatpush1.msra.mxu0 0.0
  %1211 = vmatprep.subr.mxu0 0.0
  %1212 = vmatpush1.msra.mxu0 0.0
  %1213 = vmatprep.subr.mxu0 0.0
  %1214 = vmatpush1.msra.mxu0 0.0
  %1215 = vmatprep.subr.mxu0 0.0
  %1216 = vmatpush1.msra.mxu0 0.0
  %1217 = vmatprep.mubr.f32.mxu0 0.0
  %1218 = vmatmul.mubr.f32.gmra.mrb[0].mxu0 %v1148
  %v1219 = vpop.f32.mrb[0].mxu0
  %v1220 = vadd.f32 %v1145, %v1219
  %v1221 = vpop.f32.mrb[0].mxu0
  %1222 = vmatprep.mubr.f32.mxu0 0.0
  %1223 = vmatmul.mubr.f32.gmra.mrb[0].mxu0 %v1151
  %v1224 = vpop.f32.mrb[0].mxu0
  %v1225 = vadd.f32 %v1145, %v1224
  %v1226 = vpop.f32.mrb[0].mxu0
  %1227 = vdwg.mxu0
  %v1228 = vmul.f32 %v1220, 0.5
  %v1229 = vmul.f32 %v1225, 0.5
  %v1230 = vmul.f32 %v1220, 0.70710677
  %v1231 = vmul.f32 %v1225, 0.70710677
  %vm1232 = vcmp.ge.f32.partialorder %v1230, 0.0
  %vm1233 = vcmp.ge.f32.partialorder %v1231, 0.0
  %v1234 = vsel %vm1232, 1.0, -1.0
  %v1235 = vsel %vm1233, 1.0, -1.0
  %v1236 = vand.u32 2147483647, %v1230
  %v1237 = vand.u32 2147483647, %v1231
  %v1238 = vmul.f32 %v1236, 0.3275911
  %v1239 = vmul.f32 %v1237, 0.3275911
  %v1240 = vadd.f32 %v1238, 1.0
  %v1241 = vadd.f32 %v1239, 1.0
  %v1242 = vrcp.pop %v1240
  %v1243 = vmul.f32 1.0, %v1242
  %v1244 = vrcp.pop %v1241
  %v1245 = vmul.f32 1.0, %v1244
  %v1246 = vmul.f32 %v1243, 1.0614054
  %v1247 = vmul.f32 %v1245, 1.0614054
  %v1248 = vadd.f32 %v1246, -1.4531521
  %v1249 = vadd.f32 %v1247, -1.4531521
  %v1250 = vmul.f32 %v1248, %v1243
  %v1251 = vmul.f32 %v1249, %v1245
  %v1252 = vadd.f32 %v1250, 1.4214138
  %v1253 = vadd.f32 %v1251, 1.4214138
  %v1254 = vmul.f32 %v1252, %v1243
  %v1255 = vmul.f32 %v1253, %v1245
  %v1256 = vadd.f32 %v1254, -0.28449672
  %v1257 = vadd.f32 %v1255, -0.28449672
  %v1258 = vmul.f32 %v1256, %v1243
  %v1259 = vmul.f32 %v1257, %v1245
  %v1260 = vadd.f32 %v1258, 0.2548296
  %v1261 = vadd.f32 %v1259, 0.2548296
  %v1262 = vmul.f32 %v1260, %v1243
  %v1263 = vmul.f32 %v1261, %v1245
  %v1264 = vsub.f32 0.0, %v1236
  %v1265 = vsub.f32 0.0, %v1237
  %v1266 = vmul.f32 %v1264, %v1236
  %v1267 = vmul.f32 %v1265, %v1237
  %v1268 = vmul.f32 %v1266, 1.442695
  %v1269 = vpow.pop %v1268
  %v1270 = vmul.f32 %v1267, 1.442695
  %v1271 = vpow.pop %v1270
  %v1272 = vmul.f32 %v1262, %v1269
  %v1273 = vmul.f32 %v1263, %v1271
  %v1274 = vsub.f32 1.0, %v1272
  %v1275 = vsub.f32 1.0, %v1273
  %v1276 = vmul.f32 %v1234, %v1274
  %v1277 = vmul.f32 %v1235, %v1275
  %v1278 = vadd.f32 %v1276, 1.0
  %v1279 = vadd.f32 %v1277, 1.0
  %v1280 = vmul.f32 %v1228, %v1278
  %v1281 = vmul.f32 %v1229, %v1279
  %v1282 = vld [vmem:[%s10] sm:$0xff]
  %v1283 = vld [vmem:[%s10 + $0x8] sm:$0xff]
  %v1284 = vld [vmem:[%s10 + $0x10] sm:$0xff]
  %v1285 = vld [vmem:[%s10 + $0x18] sm:$0xff]
  %v1286 = vld [vmem:[%s10 + $0x20] sm:$0xff]
  %v1287 = vld [vmem:[%s10 + $0x28] sm:$0xff]
  %v1288 = vld [vmem:[%s10 + $0x30] sm:$0xff]
  %v1289 = vld [vmem:[%s10 + $0x38] sm:$0xff]
  %v1290 = vld [vmem:[%s11] sm:$0x1]
  %v1292 = vlaneseq
  %v1293 = vshrl.u32 %v1292, 7
  %v1294 = vsub.s32 0, %v1293
  %v1295 = vrot.slane %v1290, %v1294
  %vm1297 = vcmask 523264
  %v1299 = vsel %vm1297, %v1280, 0
  %v1302 = vsel %vm1297, %v1281, 0
  %1304 = vmatprep.subr.mxu0 0.0
  %1305 = vmatpush1.msra.mxu0 %v1282
  %1306 = vmatprep.subr.mxu0 0.0
  %1307 = vmatpush1.msra.mxu0 %v1283
  %1308 = vmatprep.subr.mxu0 0.0
  %1309 = vmatpush1.msra.mxu0 %v1284
  %1310 = vmatprep.subr.mxu0 0.0
  %1311 = vmatpush1.msra.mxu0 %v1285
  %1312 = vmatprep.subr.mxu0 0.0
  %1313 = vmatpush1.msra.mxu0 %v1286
  %1314 = vmatprep.subr.mxu0 0.0
  %1315 = vmatpush1.msra.mxu0 %v1287
  %1316 = vmatprep.subr.mxu0 0.0
  %1317 = vmatpush1.msra.mxu0 %v1288
  %1318 = vmatprep.subr.mxu0 0.0
  %1319 = vmatpush1.msra.mxu0 %v1289
  %1320 = vmatprep.subr.mxu0 0.0
  %1321 = vmatpush1.msra.mxu0 0.0
  %1322 = vmatprep.subr.mxu0 0.0
  %1323 = vmatpush1.msra.mxu0 0.0
  %1324 = vmatprep.subr.mxu0 0.0
  %1325 = vmatpush1.msra.mxu0 0.0
  %1326 = vmatprep.subr.mxu0 0.0
  %1327 = vmatpush1.msra.mxu0 0.0
  %1328 = vmatprep.subr.mxu0 0.0
  %1329 = vmatpush1.msra.mxu0 0.0
  %1330 = vmatprep.subr.mxu0 0.0
  %1331 = vmatpush1.msra.mxu0 0.0
  %1332 = vmatprep.subr.mxu0 0.0
  %1333 = vmatpush1.msra.mxu0 0.0
  %1334 = vmatprep.subr.mxu0 0.0
  %1335 = vmatpush1.msra.mxu0 0.0
  %1336 = vmatprep.subr.mxu0 0.0
  %1337 = vmatpush1.msra.mxu0 0.0
  %1338 = vmatprep.subr.mxu0 0.0
  %1339 = vmatpush1.msra.mxu0 0.0
  %1340 = vmatprep.subr.mxu0 0.0
  %1341 = vmatpush1.msra.mxu0 0.0
  %1342 = vmatprep.subr.mxu0 0.0
  %1343 = vmatpush1.msra.mxu0 0.0
  %1344 = vmatprep.subr.mxu0 0.0
  %1345 = vmatpush1.msra.mxu0 0.0
  %1346 = vmatprep.subr.mxu0 0.0
  %1347 = vmatpush1.msra.mxu0 0.0
  %1348 = vmatprep.subr.mxu0 0.0
  %1349 = vmatpush1.msra.mxu0 0.0
  %1350 = vmatprep.subr.mxu0 0.0
  %1351 = vmatpush1.msra.mxu0 0.0
  %1352 = vmatprep.subr.mxu0 0.0
  %1353 = vmatpush1.msra.mxu0 0.0
  %1354 = vmatprep.subr.mxu0 0.0
  %1355 = vmatpush1.msra.mxu0 0.0
  %1356 = vmatprep.subr.mxu0 0.0
  %1357 = vmatpush1.msra.mxu0 0.0
  %1358 = vmatprep.subr.mxu0 0.0
  %1359 = vmatpush1.msra.mxu0 0.0
  %1360 = vmatprep.subr.mxu0 0.0
  %1361 = vmatpush1.msra.mxu0 0.0
  %1362 = vmatprep.subr.mxu0 0.0
  %1363 = vmatpush1.msra.mxu0 0.0
  %1364 = vmatprep.subr.mxu0 0.0
  %1365 = vmatpush1.msra.mxu0 0.0
  %1366 = vmatprep.subr.mxu0 0.0
  %1367 = vmatpush1.msra.mxu0 0.0
  %1368 = vmatprep.mubr.f32.mxu0 0.0
  %1369 = vmatmul.mubr.f32.gmra.mrb[0].mxu0 %v1299
  %v1370 = vpop.f32.mrb[0].mxu0
  %v1371 = vadd.f32 %v1295, %v1370
  %v1372 = vpop.f32.mrb[0].mxu0
  %1373 = vmatprep.mubr.f32.mxu0 0.0
  %1374 = vmatmul.mubr.f32.gmra.mrb[0].mxu0 %v1302
  %v1375 = vpop.f32.mrb[0].mxu0
  %v1376 = vadd.f32 %v1295, %v1375
  %v1377 = vpop.f32.mrb[0].mxu0
  %1378 = vdwg.mxu0
  %v1379 = vadd.f32 %v1371, %v1134
  %v1380 = vadd.f32 %v1376, %v1135
  %v1381 = vld [vmem:[%s12] sm:$0x1]
  %v1382 = vld [vmem:[%s13] sm:$0x1]
  %v1383 = vsel %vm68, %v1379, 0.0
  %1384 = vadd.xlane.f32.xlu0 %v1383
  %v1385 = vpop.xlane.xlu0 %1384
  %v1386 = vsel %vm68, %v1380, 0.0
  %1387 = vadd.xlane.f32.xlu0 %v1386
  %v1388 = vpop.xlane.xlu0 %1387
  %v1389 = vmul.f32 %v1385, %v1099
  %v1390 = vmul.f32 %v1388, %v1099
  %v1391 = vsub.f32 %v1379, %v1389
  %v1392 = vsub.f32 %v1380, %v1390
  %v1393 = vmul.f32 %v1391, %v1391
  %v1394 = vmul.f32 %v1392, %v1392
  %v1395 = vsel %vm68, %v1393, 0.0
  %1396 = vadd.xlane.f32.xlu0 %v1395
  %v1397 = vpop.xlane.xlu0 %1396
  %v1398 = vsel %vm68, %v1394, 0.0
  %1399 = vadd.xlane.f32.xlu0 %v1398
  %v1400 = vpop.xlane.xlu0 %1399
  %v1401 = vmul.f32 %v1397, %v1099
  %v1402 = vmul.f32 %v1400, %v1099
  %v1403 = vadd.f32 %v1401, 1e-12
  %v1404 = vadd.f32 %v1402, 1e-12
  %v1405 = vrsqrt.pop %v1403
  %v1406 = vrsqrt.pop %v1404
  %v1407 = vmul.f32 %v1391, %v1405
  %v1408 = vmul.f32 %v1392, %v1406
  %v1410 = vlaneseq
  %v1411 = vshrl.u32 %v1410, 7
  %v1412 = vsub.s32 0, %v1411
  %v1413 = vrot.slane %v1381, %v1412
  %v1415 = vmul.f32 %v1407, %v1413
  %v1416 = vmul.f32 %v1408, %v1413
  %v1418 = vlaneseq
  %v1419 = vshrl.u32 %v1418, 7
  %v1420 = vsub.s32 0, %v1419
  %v1421 = vrot.slane %v1382, %v1420
  %v1423 = vadd.f32 %v1415, %v1421
  %v1424 = vadd.f32 %v1416, %v1421
  %s1425 = scalar_lea.vmem %s2, 32
  %v1426 = vld [vmem:[%s1425] sm:$0xff]
  %v1427 = vld [vmem:[%s1425 + $0x8] sm:$0xff]
  %v1428 = vld [vmem:[%s1425 + $0x10] sm:$0xff]
  %v1429 = vld [vmem:[%s1425 + $0x18] sm:$0xff]
  %s1430 = scalar_lea.vmem %s3, 1
  %v1431 = vld [vmem:[%s1430] sm:$0x1]
  %v1433 = vlaneseq
  %v1434 = vshrl.u32 %v1433, 7
  %v1435 = vsub.s32 0, %v1434
  %v1436 = vrot.slane %v1431, %v1435
  %v1439 = vsel %vm68, %v1423, 0
  %v1442 = vsel %vm68, %v1424, 0
  %1444 = vmatprep.subr.mxu0 0.0
  %1445 = vmatpush1.msra.mxu0 %v1426
  %1446 = vmatprep.subr.mxu0 0.0
  %1447 = vmatpush1.msra.mxu0 %v1427
  %1448 = vmatprep.subr.mxu0 0.0
  %1449 = vmatpush1.msra.mxu0 %v1428
  %1450 = vmatprep.subr.mxu0 0.0
  %1451 = vmatpush1.msra.mxu0 %v1429
  %1452 = vmatprep.subr.mxu0 0.0
  %1453 = vmatpush1.msra.mxu0 0.0
  %1454 = vmatprep.subr.mxu0 0.0
  %1455 = vmatpush1.msra.mxu0 0.0
  %1456 = vmatprep.subr.mxu0 0.0
  %1457 = vmatpush1.msra.mxu0 0.0
  %1458 = vmatprep.subr.mxu0 0.0
  %1459 = vmatpush1.msra.mxu0 0.0
  %1460 = vmatprep.subr.mxu0 0.0
  %1461 = vmatpush1.msra.mxu0 0.0
  %1462 = vmatprep.subr.mxu0 0.0
  %1463 = vmatpush1.msra.mxu0 0.0
  %1464 = vmatprep.subr.mxu0 0.0
  %1465 = vmatpush1.msra.mxu0 0.0
  %1466 = vmatprep.subr.mxu0 0.0
  %1467 = vmatpush1.msra.mxu0 0.0
  %1468 = vmatprep.subr.mxu0 0.0
  %1469 = vmatpush1.msra.mxu0 0.0
  %1470 = vmatprep.subr.mxu0 0.0
  %1471 = vmatpush1.msra.mxu0 0.0
  %1472 = vmatprep.subr.mxu0 0.0
  %1473 = vmatpush1.msra.mxu0 0.0
  %1474 = vmatprep.subr.mxu0 0.0
  %1475 = vmatpush1.msra.mxu0 0.0
  %1476 = vmatprep.subr.mxu0 0.0
  %1477 = vmatpush1.msra.mxu0 0.0
  %1478 = vmatprep.subr.mxu0 0.0
  %1479 = vmatpush1.msra.mxu0 0.0
  %1480 = vmatprep.subr.mxu0 0.0
  %1481 = vmatpush1.msra.mxu0 0.0
  %1482 = vmatprep.subr.mxu0 0.0
  %1483 = vmatpush1.msra.mxu0 0.0
  %1484 = vmatprep.subr.mxu0 0.0
  %1485 = vmatpush1.msra.mxu0 0.0
  %1486 = vmatprep.subr.mxu0 0.0
  %1487 = vmatpush1.msra.mxu0 0.0
  %1488 = vmatprep.subr.mxu0 0.0
  %1489 = vmatpush1.msra.mxu0 0.0
  %1490 = vmatprep.subr.mxu0 0.0
  %1491 = vmatpush1.msra.mxu0 0.0
  %1492 = vmatprep.subr.mxu0 0.0
  %1493 = vmatpush1.msra.mxu0 0.0
  %1494 = vmatprep.subr.mxu0 0.0
  %1495 = vmatpush1.msra.mxu0 0.0
  %1496 = vmatprep.subr.mxu0 0.0
  %1497 = vmatpush1.msra.mxu0 0.0
  %1498 = vmatprep.subr.mxu0 0.0
  %1499 = vmatpush1.msra.mxu0 0.0
  %1500 = vmatprep.subr.mxu0 0.0
  %1501 = vmatpush1.msra.mxu0 0.0
  %1502 = vmatprep.subr.mxu0 0.0
  %1503 = vmatpush1.msra.mxu0 0.0
  %1504 = vmatprep.subr.mxu0 0.0
  %1505 = vmatpush1.msra.mxu0 0.0
  %1506 = vmatprep.subr.mxu0 0.0
  %1507 = vmatpush1.msra.mxu0 0.0
  %1508 = vmatprep.mubr.f32.mxu0 0.0
  %1509 = vmatmul.mubr.f32.gmra.mrb[0].mxu0 %v1439
  %v1510 = vpop.f32.mrb[0].mxu0
  %v1511 = vadd.f32 %v1436, %v1510
  %v1512 = vpop.f32.mrb[0].mxu0
  %1513 = vmatprep.mubr.f32.mxu0 0.0
  %1514 = vmatmul.mubr.f32.gmra.mrb[0].mxu0 %v1442
  %v1515 = vpop.f32.mrb[0].mxu0
  %v1516 = vadd.f32 %v1436, %v1515
  %v1517 = vpop.f32.mrb[0].mxu0
  %1518 = vdwg.mxu0
  %1521 = vrot.lane.b32.xlu0 %v1511, 96
  %v1522 = vpop.permute.xlu0 %1521
  %1523 = vrot.lane.b32.xlu0 %v1516, 96
  %v1524 = vpop.permute.xlu0 %1523
  %v1525 = vsel %vm156, %v1511, 0
  %v1527 = vsel %vm156, %v1516, 0
  %v1529 = vsel %vm156, %v1522, 0
  %v1531 = vsel %vm156, %v1524, 0
  %1533 = vmatprep.subr.mxu0 0.0
  %1534 = vmatpush1.xpose.msra.mxu0 %v1529
  %1535 = vmatprep.subr.mxu0 0.0
  %1536 = vmatpush1.xpose.msra.mxu0 %v1531
  %1537 = vmatprep.subr.mxu0 0.0
  %1538 = vmatpush1.xpose.msra.mxu0 0.0
  %1539 = vmatprep.subr.mxu0 0.0
  %1540 = vmatpush1.xpose.msra.mxu0 0.0
  %1541 = vmatprep.subr.mxu0 0.0
  %1542 = vmatpush1.xpose.msra.mxu0 0.0
  %1543 = vmatprep.subr.mxu0 0.0
  %1544 = vmatpush1.xpose.msra.mxu0 0.0
  %1545 = vmatprep.subr.mxu0 0.0
  %1546 = vmatpush1.xpose.msra.mxu0 0.0
  %1547 = vmatprep.subr.mxu0 0.0
  %1548 = vmatpush1.xpose.msra.mxu0 0.0
  %1549 = vmatprep.subr.mxu0 0.0
  %1550 = vmatpush1.xpose.msra.mxu0 0.0
  %1551 = vmatprep.subr.mxu0 0.0
  %1552 = vmatpush1.xpose.msra.mxu0 0.0
  %1553 = vmatprep.subr.mxu0 0.0
  %1554 = vmatpush1.xpose.msra.mxu0 0.0
  %1555 = vmatprep.subr.mxu0 0.0
  %1556 = vmatpush1.xpose.msra.mxu0 0.0
  %1557 = vmatprep.subr.mxu0 0.0
  %1558 = vmatpush1.xpose.msra.mxu0 0.0
  %1559 = vmatprep.subr.mxu0 0.0
  %1560 = vmatpush1.xpose.msra.mxu0 0.0
  %1561 = vmatprep.subr.mxu0 0.0
  %1562 = vmatpush1.xpose.msra.mxu0 0.0
  %1563 = vmatprep.subr.mxu0 0.0
  %1564 = vmatpush1.xpose.msra.mxu0 0.0
  %1565 = vmatprep.subr.mxu0 0.0
  %1566 = vmatpush1.xpose.msra.mxu0 0.0
  %1567 = vmatprep.subr.mxu0 0.0
  %1568 = vmatpush1.xpose.msra.mxu0 0.0
  %1569 = vmatprep.subr.mxu0 0.0
  %1570 = vmatpush1.xpose.msra.mxu0 0.0
  %1571 = vmatprep.subr.mxu0 0.0
  %1572 = vmatpush1.xpose.msra.mxu0 0.0
  %1573 = vmatprep.subr.mxu0 0.0
  %1574 = vmatpush1.xpose.msra.mxu0 0.0
  %1575 = vmatprep.subr.mxu0 0.0
  %1576 = vmatpush1.xpose.msra.mxu0 0.0
  %1577 = vmatprep.subr.mxu0 0.0
  %1578 = vmatpush1.xpose.msra.mxu0 0.0
  %1579 = vmatprep.subr.mxu0 0.0
  %1580 = vmatpush1.xpose.msra.mxu0 0.0
  %1581 = vmatprep.subr.mxu0 0.0
  %1582 = vmatpush1.xpose.msra.mxu0 0.0
  %1583 = vmatprep.subr.mxu0 0.0
  %1584 = vmatpush1.xpose.msra.mxu0 0.0
  %1585 = vmatprep.subr.mxu0 0.0
  %1586 = vmatpush1.xpose.msra.mxu0 0.0
  %1587 = vmatprep.subr.mxu0 0.0
  %1588 = vmatpush1.xpose.msra.mxu0 0.0
  %1589 = vmatprep.subr.mxu0 0.0
  %1590 = vmatpush1.xpose.msra.mxu0 0.0
  %1591 = vmatprep.subr.mxu0 0.0
  %1592 = vmatpush1.xpose.msra.mxu0 0.0
  %1593 = vmatprep.subr.mxu0 0.0
  %1594 = vmatpush1.xpose.msra.mxu0 0.0
  %1595 = vmatprep.subr.mxu0 0.0
  %1596 = vmatpush1.xpose.msra.mxu0 0.0
  %1597 = vmatprep.mubr.f32.mxu0 0.0
  %1598 = vmatmul.mubr.f32.gmra.mrb[0].mxu0 %v1525
  %v1599 = vpop.f32.mrb[0].mxu0
  %v1600 = vadd.f32 0.0, %v1599
  %v1601 = vpop.f32.mrb[0].mxu0
  %1602 = vmatprep.mubr.f32.mxu0 0.0
  %1603 = vmatmul.mubr.f32.gmra.mrb[0].mxu0 %v1527
  %v1604 = vpop.f32.mrb[0].mxu0
  %v1605 = vadd.f32 0.0, %v1604
  %v1606 = vpop.f32.mrb[0].mxu0
  %1607 = vdwg.mxu0
  %v1608 = vmul.f32 %v1600, 0.35355338
  %v1609 = vmul.f32 %v1605, 0.35355338
  %v1610 = vadd.f32 %v1608, %v55
  %v1611 = vadd.f32 %v1609, %v56
  %v1612 = vsel %vm244, %v1610, -inf
  %1613 = vmax.xlane.f32.xlu0 %v1612
  %v1614 = vpop.xlane.xlu0 %1613
  %v1615 = vsel %vm244, %v1611, -inf
  %1616 = vmax.xlane.f32.xlu0 %v1615
  %v1617 = vpop.xlane.xlu0 %1616
  %v1618 = vsub.f32 %v1610, %v1614
  %v1619 = vsub.f32 %v1611, %v1617
  %v1620 = vmul.f32 %v1618, 1.442695
  %v1621 = vpow.pop %v1620
  %v1622 = vmul.f32 %v1619, 1.442695
  %v1623 = vpow.pop %v1622
  %v1624 = vsel %vm244, %v1621, 0.0
  %1625 = vadd.xlane.f32.xlu0 %v1624
  %v1626 = vpop.xlane.xlu0 %1625
  %v1627 = vsel %vm244, %v1623, 0.0
  %1628 = vadd.xlane.f32.xlu0 %v1627
  %v1629 = vpop.xlane.xlu0 %1628
  %v1630 = vrcp.pop %v1626
  %v1631 = vrcp.pop %v1629
  %v1632 = vmul.f32 %v1621, %v1630
  %v1633 = vmul.f32 %v1623, %v1631
  %1634 = vrot.lane.b32.xlu0 %v1511, 64
  %v1635 = vpop.permute.xlu0 %1634
  %1636 = vrot.lane.b32.xlu0 %v1516, 64
  %v1637 = vpop.permute.xlu0 %1636
  %v1641 = vsel %vm244, %v1632, 0
  %v1644 = vsel %vm244, %v1633, 0
  %1646 = vmatprep.subr.mxu0 0.0
  %1647 = vmatpush1.msra.mxu0 %v1635
  %1648 = vmatprep.subr.mxu0 0.0
  %1649 = vmatpush1.msra.mxu0 %v1637
  %1650 = vmatprep.subr.mxu0 0.0
  %1651 = vmatpush1.msra.mxu0 0.0
  %1652 = vmatprep.subr.mxu0 0.0
  %1653 = vmatpush1.msra.mxu0 0.0
  %1654 = vmatprep.subr.mxu0 0.0
  %1655 = vmatpush1.msra.mxu0 0.0
  %1656 = vmatprep.subr.mxu0 0.0
  %1657 = vmatpush1.msra.mxu0 0.0
  %1658 = vmatprep.subr.mxu0 0.0
  %1659 = vmatpush1.msra.mxu0 0.0
  %1660 = vmatprep.subr.mxu0 0.0
  %1661 = vmatpush1.msra.mxu0 0.0
  %1662 = vmatprep.subr.mxu0 0.0
  %1663 = vmatpush1.msra.mxu0 0.0
  %1664 = vmatprep.subr.mxu0 0.0
  %1665 = vmatpush1.msra.mxu0 0.0
  %1666 = vmatprep.subr.mxu0 0.0
  %1667 = vmatpush1.msra.mxu0 0.0
  %1668 = vmatprep.subr.mxu0 0.0
  %1669 = vmatpush1.msra.mxu0 0.0
  %1670 = vmatprep.subr.mxu0 0.0
  %1671 = vmatpush1.msra.mxu0 0.0
  %1672 = vmatprep.subr.mxu0 0.0
  %1673 = vmatpush1.msra.mxu0 0.0
  %1674 = vmatprep.subr.mxu0 0.0
  %1675 = vmatpush1.msra.mxu0 0.0
  %1676 = vmatprep.subr.mxu0 0.0
  %1677 = vmatpush1.msra.mxu0 0.0
  %1678 = vmatprep.subr.mxu0 0.0
  %1679 = vmatpush1.msra.mxu0 0.0
  %1680 = vmatprep.subr.mxu0 0.0
  %1681 = vmatpush1.msra.mxu0 0.0
  %1682 = vmatprep.subr.mxu0 0.0
  %1683 = vmatpush1.msra.mxu0 0.0
  %1684 = vmatprep.subr.mxu0 0.0
  %1685 = vmatpush1.msra.mxu0 0.0
  %1686 = vmatprep.subr.mxu0 0.0
  %1687 = vmatpush1.msra.mxu0 0.0
  %1688 = vmatprep.subr.mxu0 0.0
  %1689 = vmatpush1.msra.mxu0 0.0
  %1690 = vmatprep.subr.mxu0 0.0
  %1691 = vmatpush1.msra.mxu0 0.0
  %1692 = vmatprep.subr.mxu0 0.0
  %1693 = vmatpush1.msra.mxu0 0.0
  %1694 = vmatprep.subr.mxu0 0.0
  %1695 = vmatpush1.msra.mxu0 0.0
  %1696 = vmatprep.subr.mxu0 0.0
  %1697 = vmatpush1.msra.mxu0 0.0
  %1698 = vmatprep.subr.mxu0 0.0
  %1699 = vmatpush1.msra.mxu0 0.0
  %1700 = vmatprep.subr.mxu0 0.0
  %1701 = vmatpush1.msra.mxu0 0.0
  %1702 = vmatprep.subr.mxu0 0.0
  %1703 = vmatpush1.msra.mxu0 0.0
  %1704 = vmatprep.subr.mxu0 0.0
  %1705 = vmatpush1.msra.mxu0 0.0
  %1706 = vmatprep.subr.mxu0 0.0
  %1707 = vmatpush1.msra.mxu0 0.0
  %1708 = vmatprep.subr.mxu0 0.0
  %1709 = vmatpush1.msra.mxu0 0.0
  %1710 = vmatprep.mubr.f32.mxu0 0.0
  %1711 = vmatmul.mubr.f32.gmra.mrb[0].mxu0 %v1641
  %v1712 = vpop.f32.mrb[0].mxu0
  %v1713 = vadd.f32 0.0, %v1712
  %v1714 = vpop.f32.mrb[0].mxu0
  %1715 = vmatprep.mubr.f32.mxu0 0.0
  %1716 = vmatmul.mubr.f32.gmra.mrb[0].mxu0 %v1644
  %v1717 = vpop.f32.mrb[0].mxu0
  %v1718 = vadd.f32 0.0, %v1717
  %v1719 = vpop.f32.mrb[0].mxu0
  %1720 = vdwg.mxu0
  %1721 = vrot.lane.b32.xlu0 %v1511, 120
  %v1722 = vpop.permute.xlu0 %1721
  %1723 = vrot.lane.b32.xlu0 %v1516, 120
  %v1724 = vpop.permute.xlu0 %1723
  %1725 = vrot.lane.b32.xlu0 %v1511, 88
  %v1726 = vpop.permute.xlu0 %1725
  %1727 = vrot.lane.b32.xlu0 %v1516, 88
  %v1728 = vpop.permute.xlu0 %1727
  %v1729 = vsel %vm156, %v1722, 0
  %v1731 = vsel %vm156, %v1724, 0
  %v1733 = vsel %vm156, %v1726, 0
  %v1735 = vsel %vm156, %v1728, 0
  %1737 = vmatprep.subr.mxu0 0.0
  %1738 = vmatpush1.xpose.msra.mxu0 %v1733
  %1739 = vmatprep.subr.mxu0 0.0
  %1740 = vmatpush1.xpose.msra.mxu0 %v1735
  %1741 = vmatprep.subr.mxu0 0.0
  %1742 = vmatpush1.xpose.msra.mxu0 0.0
  %1743 = vmatprep.subr.mxu0 0.0
  %1744 = vmatpush1.xpose.msra.mxu0 0.0
  %1745 = vmatprep.subr.mxu0 0.0
  %1746 = vmatpush1.xpose.msra.mxu0 0.0
  %1747 = vmatprep.subr.mxu0 0.0
  %1748 = vmatpush1.xpose.msra.mxu0 0.0
  %1749 = vmatprep.subr.mxu0 0.0
  %1750 = vmatpush1.xpose.msra.mxu0 0.0
  %1751 = vmatprep.subr.mxu0 0.0
  %1752 = vmatpush1.xpose.msra.mxu0 0.0
  %1753 = vmatprep.subr.mxu0 0.0
  %1754 = vmatpush1.xpose.msra.mxu0 0.0
  %1755 = vmatprep.subr.mxu0 0.0
  %1756 = vmatpush1.xpose.msra.mxu0 0.0
  %1757 = vmatprep.subr.mxu0 0.0
  %1758 = vmatpush1.xpose.msra.mxu0 0.0
  %1759 = vmatprep.subr.mxu0 0.0
  %1760 = vmatpush1.xpose.msra.mxu0 0.0
  %1761 = vmatprep.subr.mxu0 0.0
  %1762 = vmatpush1.xpose.msra.mxu0 0.0
  %1763 = vmatprep.subr.mxu0 0.0
  %1764 = vmatpush1.xpose.msra.mxu0 0.0
  %1765 = vmatprep.subr.mxu0 0.0
  %1766 = vmatpush1.xpose.msra.mxu0 0.0
  %1767 = vmatprep.subr.mxu0 0.0
  %1768 = vmatpush1.xpose.msra.mxu0 0.0
  %1769 = vmatprep.subr.mxu0 0.0
  %1770 = vmatpush1.xpose.msra.mxu0 0.0
  %1771 = vmatprep.subr.mxu0 0.0
  %1772 = vmatpush1.xpose.msra.mxu0 0.0
  %1773 = vmatprep.subr.mxu0 0.0
  %1774 = vmatpush1.xpose.msra.mxu0 0.0
  %1775 = vmatprep.subr.mxu0 0.0
  %1776 = vmatpush1.xpose.msra.mxu0 0.0
  %1777 = vmatprep.subr.mxu0 0.0
  %1778 = vmatpush1.xpose.msra.mxu0 0.0
  %1779 = vmatprep.subr.mxu0 0.0
  %1780 = vmatpush1.xpose.msra.mxu0 0.0
  %1781 = vmatprep.subr.mxu0 0.0
  %1782 = vmatpush1.xpose.msra.mxu0 0.0
  %1783 = vmatprep.subr.mxu0 0.0
  %1784 = vmatpush1.xpose.msra.mxu0 0.0
  %1785 = vmatprep.subr.mxu0 0.0
  %1786 = vmatpush1.xpose.msra.mxu0 0.0
  %1787 = vmatprep.subr.mxu0 0.0
  %1788 = vmatpush1.xpose.msra.mxu0 0.0
  %1789 = vmatprep.subr.mxu0 0.0
  %1790 = vmatpush1.xpose.msra.mxu0 0.0
  %1791 = vmatprep.subr.mxu0 0.0
  %1792 = vmatpush1.xpose.msra.mxu0 0.0
  %1793 = vmatprep.subr.mxu0 0.0
  %1794 = vmatpush1.xpose.msra.mxu0 0.0
  %1795 = vmatprep.subr.mxu0 0.0
  %1796 = vmatpush1.xpose.msra.mxu0 0.0
  %1797 = vmatprep.subr.mxu0 0.0
  %1798 = vmatpush1.xpose.msra.mxu0 0.0
  %1799 = vmatprep.subr.mxu0 0.0
  %1800 = vmatpush1.xpose.msra.mxu0 0.0
  %1801 = vmatprep.mubr.f32.mxu0 0.0
  %1802 = vmatmul.mubr.f32.gmra.mrb[0].mxu0 %v1729
  %v1803 = vpop.f32.mrb[0].mxu0
  %v1804 = vadd.f32 0.0, %v1803
  %v1805 = vpop.f32.mrb[0].mxu0
  %1806 = vmatprep.mubr.f32.mxu0 0.0
  %1807 = vmatmul.mubr.f32.gmra.mrb[0].mxu0 %v1731
  %v1808 = vpop.f32.mrb[0].mxu0
  %v1809 = vadd.f32 0.0, %v1808
  %v1810 = vpop.f32.mrb[0].mxu0
  %1811 = vdwg.mxu0
  %v1812 = vmul.f32 %v1804, 0.35355338
  %v1813 = vmul.f32 %v1809, 0.35355338
  %v1814 = vadd.f32 %v1812, %v55
  %v1815 = vadd.f32 %v1813, %v56
  %v1816 = vsel %vm244, %v1814, -inf
  %1817 = vmax.xlane.f32.xlu0 %v1816
  %v1818 = vpop.xlane.xlu0 %1817
  %v1819 = vsel %vm244, %v1815, -inf
  %1820 = vmax.xlane.f32.xlu0 %v1819
  %v1821 = vpop.xlane.xlu0 %1820
  %v1822 = vsub.f32 %v1814, %v1818
  %v1823 = vsub.f32 %v1815, %v1821
  %v1824 = vmul.f32 %v1822, 1.442695
  %v1825 = vpow.pop %v1824
  %v1826 = vmul.f32 %v1823, 1.442695
  %v1827 = vpow.pop %v1826
  %v1828 = vsel %vm244, %v1825, 0.0
  %1829 = vadd.xlane.f32.xlu0 %v1828
  %v1830 = vpop.xlane.xlu0 %1829
  %v1831 = vsel %vm244, %v1827, 0.0
  %1832 = vadd.xlane.f32.xlu0 %v1831
  %v1833 = vpop.xlane.xlu0 %1832
  %v1834 = vrcp.pop %v1830
  %v1835 = vrcp.pop %v1833
  %v1836 = vmul.f32 %v1825, %v1834
  %v1837 = vmul.f32 %v1827, %v1835
  %1838 = vrot.lane.b32.xlu0 %v1511, 56
  %v1839 = vpop.permute.xlu0 %1838
  %1840 = vrot.lane.b32.xlu0 %v1516, 56
  %v1841 = vpop.permute.xlu0 %1840
  %v1845 = vsel %vm244, %v1836, 0
  %v1848 = vsel %vm244, %v1837, 0
  %1850 = vmatprep.subr.mxu0 0.0
  %1851 = vmatpush1.msra.mxu0 %v1839
  %1852 = vmatprep.subr.mxu0 0.0
  %1853 = vmatpush1.msra.mxu0 %v1841
  %1854 = vmatprep.subr.mxu0 0.0
  %1855 = vmatpush1.msra.mxu0 0.0
  %1856 = vmatprep.subr.mxu0 0.0
  %1857 = vmatpush1.msra.mxu0 0.0
  %1858 = vmatprep.subr.mxu0 0.0
  %1859 = vmatpush1.msra.mxu0 0.0
  %1860 = vmatprep.subr.mxu0 0.0
  %1861 = vmatpush1.msra.mxu0 0.0
  %1862 = vmatprep.subr.mxu0 0.0
  %1863 = vmatpush1.msra.mxu0 0.0
  %1864 = vmatprep.subr.mxu0 0.0
  %1865 = vmatpush1.msra.mxu0 0.0
  %1866 = vmatprep.subr.mxu0 0.0
  %1867 = vmatpush1.msra.mxu0 0.0
  %1868 = vmatprep.subr.mxu0 0.0
  %1869 = vmatpush1.msra.mxu0 0.0
  %1870 = vmatprep.subr.mxu0 0.0
  %1871 = vmatpush1.msra.mxu0 0.0
  %1872 = vmatprep.subr.mxu0 0.0
  %1873 = vmatpush1.msra.mxu0 0.0
  %1874 = vmatprep.subr.mxu0 0.0
  %1875 = vmatpush1.msra.mxu0 0.0
  %1876 = vmatprep.subr.mxu0 0.0
  %1877 = vmatpush1.msra.mxu0 0.0
  %1878 = vmatprep.subr.mxu0 0.0
  %1879 = vmatpush1.msra.mxu0 0.0
  %1880 = vmatprep.subr.mxu0 0.0
  %1881 = vmatpush1.msra.mxu0 0.0
  %1882 = vmatprep.subr.mxu0 0.0
  %1883 = vmatpush1.msra.mxu0 0.0
  %1884 = vmatprep.subr.mxu0 0.0
  %1885 = vmatpush1.msra.mxu0 0.0
  %1886 = vmatprep.subr.mxu0 0.0
  %1887 = vmatpush1.msra.mxu0 0.0
  %1888 = vmatprep.subr.mxu0 0.0
  %1889 = vmatpush1.msra.mxu0 0.0
  %1890 = vmatprep.subr.mxu0 0.0
  %1891 = vmatpush1.msra.mxu0 0.0
  %1892 = vmatprep.subr.mxu0 0.0
  %1893 = vmatpush1.msra.mxu0 0.0
  %1894 = vmatprep.subr.mxu0 0.0
  %1895 = vmatpush1.msra.mxu0 0.0
  %1896 = vmatprep.subr.mxu0 0.0
  %1897 = vmatpush1.msra.mxu0 0.0
  %1898 = vmatprep.subr.mxu0 0.0
  %1899 = vmatpush1.msra.mxu0 0.0
  %1900 = vmatprep.subr.mxu0 0.0
  %1901 = vmatpush1.msra.mxu0 0.0
  %1902 = vmatprep.subr.mxu0 0.0
  %1903 = vmatpush1.msra.mxu0 0.0
  %1904 = vmatprep.subr.mxu0 0.0
  %1905 = vmatpush1.msra.mxu0 0.0
  %1906 = vmatprep.subr.mxu0 0.0
  %1907 = vmatpush1.msra.mxu0 0.0
  %1908 = vmatprep.subr.mxu0 0.0
  %1909 = vmatpush1.msra.mxu0 0.0
  %1910 = vmatprep.subr.mxu0 0.0
  %1911 = vmatpush1.msra.mxu0 0.0
  %1912 = vmatprep.subr.mxu0 0.0
  %1913 = vmatpush1.msra.mxu0 0.0
  %1914 = vmatprep.mubr.f32.mxu0 0.0
  %1915 = vmatmul.mubr.f32.gmra.mrb[0].mxu0 %v1845
  %v1916 = vpop.f32.mrb[0].mxu0
  %v1917 = vadd.f32 0.0, %v1916
  %v1918 = vpop.f32.mrb[0].mxu0
  %1919 = vmatprep.mubr.f32.mxu0 0.0
  %1920 = vmatmul.mubr.f32.gmra.mrb[0].mxu0 %v1848
  %v1921 = vpop.f32.mrb[0].mxu0
  %v1922 = vadd.f32 0.0, %v1921
  %v1923 = vpop.f32.mrb[0].mxu0
  %1924 = vdwg.mxu0
  %1925 = vrot.lane.b32.xlu0 %v1511, 112
  %v1926 = vpop.permute.xlu0 %1925
  %1927 = vrot.lane.b32.xlu0 %v1516, 112
  %v1928 = vpop.permute.xlu0 %1927
  %1929 = vrot.lane.b32.xlu0 %v1511, 80
  %v1930 = vpop.permute.xlu0 %1929
  %1931 = vrot.lane.b32.xlu0 %v1516, 80
  %v1932 = vpop.permute.xlu0 %1931
  %v1933 = vsel %vm156, %v1926, 0
  %v1935 = vsel %vm156, %v1928, 0
  %v1937 = vsel %vm156, %v1930, 0
  %v1939 = vsel %vm156, %v1932, 0
  %1941 = vmatprep.subr.mxu0 0.0
  %1942 = vmatpush1.xpose.msra.mxu0 %v1937
  %1943 = vmatprep.subr.mxu0 0.0
  %1944 = vmatpush1.xpose.msra.mxu0 %v1939
  %1945 = vmatprep.subr.mxu0 0.0
  %1946 = vmatpush1.xpose.msra.mxu0 0.0
  %1947 = vmatprep.subr.mxu0 0.0
  %1948 = vmatpush1.xpose.msra.mxu0 0.0
  %1949 = vmatprep.subr.mxu0 0.0
  %1950 = vmatpush1.xpose.msra.mxu0 0.0
  %1951 = vmatprep.subr.mxu0 0.0
  %1952 = vmatpush1.xpose.msra.mxu0 0.0
  %1953 = vmatprep.subr.mxu0 0.0
  %1954 = vmatpush1.xpose.msra.mxu0 0.0
  %1955 = vmatprep.subr.mxu0 0.0
  %1956 = vmatpush1.xpose.msra.mxu0 0.0
  %1957 = vmatprep.subr.mxu0 0.0
  %1958 = vmatpush1.xpose.msra.mxu0 0.0
  %1959 = vmatprep.subr.mxu0 0.0
  %1960 = vmatpush1.xpose.msra.mxu0 0.0
  %1961 = vmatprep.subr.mxu0 0.0
  %1962 = vmatpush1.xpose.msra.mxu0 0.0
  %1963 = vmatprep.subr.mxu0 0.0
  %1964 = vmatpush1.xpose.msra.mxu0 0.0
  %1965 = vmatprep.subr.mxu0 0.0
  %1966 = vmatpush1.xpose.msra.mxu0 0.0
  %1967 = vmatprep.subr.mxu0 0.0
  %1968 = vmatpush1.xpose.msra.mxu0 0.0
  %1969 = vmatprep.subr.mxu0 0.0
  %1970 = vmatpush1.xpose.msra.mxu0 0.0
  %1971 = vmatprep.subr.mxu0 0.0
  %1972 = vmatpush1.xpose.msra.mxu0 0.0
  %1973 = vmatprep.subr.mxu0 0.0
  %1974 = vmatpush1.xpose.msra.mxu0 0.0
  %1975 = vmatprep.subr.mxu0 0.0
  %1976 = vmatpush1.xpose.msra.mxu0 0.0
  %1977 = vmatprep.subr.mxu0 0.0
  %1978 = vmatpush1.xpose.msra.mxu0 0.0
  %1979 = vmatprep.subr.mxu0 0.0
  %1980 = vmatpush1.xpose.msra.mxu0 0.0
  %1981 = vmatprep.subr.mxu0 0.0
  %1982 = vmatpush1.xpose.msra.mxu0 0.0
  %1983 = vmatprep.subr.mxu0 0.0
  %1984 = vmatpush1.xpose.msra.mxu0 0.0
  %1985 = vmatprep.subr.mxu0 0.0
  %1986 = vmatpush1.xpose.msra.mxu0 0.0
  %1987 = vmatprep.subr.mxu0 0.0
  %1988 = vmatpush1.xpose.msra.mxu0 0.0
  %1989 = vmatprep.subr.mxu0 0.0
  %1990 = vmatpush1.xpose.msra.mxu0 0.0
  %1991 = vmatprep.subr.mxu0 0.0
  %1992 = vmatpush1.xpose.msra.mxu0 0.0
  %1993 = vmatprep.subr.mxu0 0.0
  %1994 = vmatpush1.xpose.msra.mxu0 0.0
  %1995 = vmatprep.subr.mxu0 0.0
  %1996 = vmatpush1.xpose.msra.mxu0 0.0
  %1997 = vmatprep.subr.mxu0 0.0
  %1998 = vmatpush1.xpose.msra.mxu0 0.0
  %1999 = vmatprep.subr.mxu0 0.0
  %2000 = vmatpush1.xpose.msra.mxu0 0.0
  %2001 = vmatprep.subr.mxu0 0.0
  %2002 = vmatpush1.xpose.msra.mxu0 0.0
  %2003 = vmatprep.subr.mxu0 0.0
  %2004 = vmatpush1.xpose.msra.mxu0 0.0
  %2005 = vmatprep.mubr.f32.mxu0 0.0
  %2006 = vmatmul.mubr.f32.gmra.mrb[0].mxu0 %v1933
  %v2007 = vpop.f32.mrb[0].mxu0
  %v2008 = vadd.f32 0.0, %v2007
  %v2009 = vpop.f32.mrb[0].mxu0
  %2010 = vmatprep.mubr.f32.mxu0 0.0
  %2011 = vmatmul.mubr.f32.gmra.mrb[0].mxu0 %v1935
  %v2012 = vpop.f32.mrb[0].mxu0
  %v2013 = vadd.f32 0.0, %v2012
  %v2014 = vpop.f32.mrb[0].mxu0
  %2015 = vdwg.mxu0
  %v2016 = vmul.f32 %v2008, 0.35355338
  %v2017 = vmul.f32 %v2013, 0.35355338
  %v2018 = vadd.f32 %v2016, %v55
  %v2019 = vadd.f32 %v2017, %v56
  %v2020 = vsel %vm244, %v2018, -inf
  %2021 = vmax.xlane.f32.xlu0 %v2020
  %v2022 = vpop.xlane.xlu0 %2021
  %v2023 = vsel %vm244, %v2019, -inf
  %2024 = vmax.xlane.f32.xlu0 %v2023
  %v2025 = vpop.xlane.xlu0 %2024
  %v2026 = vsub.f32 %v2018, %v2022
  %v2027 = vsub.f32 %v2019, %v2025
  %v2028 = vmul.f32 %v2026, 1.442695
  %v2029 = vpow.pop %v2028
  %v2030 = vmul.f32 %v2027, 1.442695
  %v2031 = vpow.pop %v2030
  %v2032 = vsel %vm244, %v2029, 0.0
  %2033 = vadd.xlane.f32.xlu0 %v2032
  %v2034 = vpop.xlane.xlu0 %2033
  %v2035 = vsel %vm244, %v2031, 0.0
  %2036 = vadd.xlane.f32.xlu0 %v2035
  %v2037 = vpop.xlane.xlu0 %2036
  %v2038 = vrcp.pop %v2034
  %v2039 = vrcp.pop %v2037
  %v2040 = vmul.f32 %v2029, %v2038
  %v2041 = vmul.f32 %v2031, %v2039
  %2042 = vrot.lane.b32.xlu0 %v1511, 48
  %v2043 = vpop.permute.xlu0 %2042
  %2044 = vrot.lane.b32.xlu0 %v1516, 48
  %v2045 = vpop.permute.xlu0 %2044
  %v2049 = vsel %vm244, %v2040, 0
  %v2052 = vsel %vm244, %v2041, 0
  %2054 = vmatprep.subr.mxu0 0.0
  %2055 = vmatpush1.msra.mxu0 %v2043
  %2056 = vmatprep.subr.mxu0 0.0
  %2057 = vmatpush1.msra.mxu0 %v2045
  %2058 = vmatprep.subr.mxu0 0.0
  %2059 = vmatpush1.msra.mxu0 0.0
  %2060 = vmatprep.subr.mxu0 0.0
  %2061 = vmatpush1.msra.mxu0 0.0
  %2062 = vmatprep.subr.mxu0 0.0
  %2063 = vmatpush1.msra.mxu0 0.0
  %2064 = vmatprep.subr.mxu0 0.0
  %2065 = vmatpush1.msra.mxu0 0.0
  %2066 = vmatprep.subr.mxu0 0.0
  %2067 = vmatpush1.msra.mxu0 0.0
  %2068 = vmatprep.subr.mxu0 0.0
  %2069 = vmatpush1.msra.mxu0 0.0
  %2070 = vmatprep.subr.mxu0 0.0
  %2071 = vmatpush1.msra.mxu0 0.0
  %2072 = vmatprep.subr.mxu0 0.0
  %2073 = vmatpush1.msra.mxu0 0.0
  %2074 = vmatprep.subr.mxu0 0.0
  %2075 = vmatpush1.msra.mxu0 0.0
  %2076 = vmatprep.subr.mxu0 0.0
  %2077 = vmatpush1.msra.mxu0 0.0
  %2078 = vmatprep.subr.mxu0 0.0
  %2079 = vmatpush1.msra.mxu0 0.0
  %2080 = vmatprep.subr.mxu0 0.0
  %2081 = vmatpush1.msra.mxu0 0.0
  %2082 = vmatprep.subr.mxu0 0.0
  %2083 = vmatpush1.msra.mxu0 0.0
  %2084 = vmatprep.subr.mxu0 0.0
  %2085 = vmatpush1.msra.mxu0 0.0
  %2086 = vmatprep.subr.mxu0 0.0
  %2087 = vmatpush1.msra.mxu0 0.0
  %2088 = vmatprep.subr.mxu0 0.0
  %2089 = vmatpush1.msra.mxu0 0.0
  %2090 = vmatprep.subr.mxu0 0.0
  %2091 = vmatpush1.msra.mxu0 0.0
  %2092 = vmatprep.subr.mxu0 0.0
  %2093 = vmatpush1.msra.mxu0 0.0
  %2094 = vmatprep.subr.mxu0 0.0
  %2095 = vmatpush1.msra.mxu0 0.0
  %2096 = vmatprep.subr.mxu0 0.0
  %2097 = vmatpush1.msra.mxu0 0.0
  %2098 = vmatprep.subr.mxu0 0.0
  %2099 = vmatpush1.msra.mxu0 0.0
  %2100 = vmatprep.subr.mxu0 0.0
  %2101 = vmatpush1.msra.mxu0 0.0
  %2102 = vmatprep.subr.mxu0 0.0
  %2103 = vmatpush1.msra.mxu0 0.0
  %2104 = vmatprep.subr.mxu0 0.0
  %2105 = vmatpush1.msra.mxu0 0.0
  %2106 = vmatprep.subr.mxu0 0.0
  %2107 = vmatpush1.msra.mxu0 0.0
  %2108 = vmatprep.subr.mxu0 0.0
  %2109 = vmatpush1.msra.mxu0 0.0
  %2110 = vmatprep.subr.mxu0 0.0
  %2111 = vmatpush1.msra.mxu0 0.0
  %2112 = vmatprep.subr.mxu0 0.0
  %2113 = vmatpush1.msra.mxu0 0.0
  %2114 = vmatprep.subr.mxu0 0.0
  %2115 = vmatpush1.msra.mxu0 0.0
  %2116 = vmatprep.subr.mxu0 0.0
  %2117 = vmatpush1.msra.mxu0 0.0
  %2118 = vmatprep.mubr.f32.mxu0 0.0
  %2119 = vmatmul.mubr.f32.gmra.mrb[0].mxu0 %v2049
  %v2120 = vpop.f32.mrb[0].mxu0
  %v2121 = vadd.f32 0.0, %v2120
  %v2122 = vpop.f32.mrb[0].mxu0
  %2123 = vmatprep.mubr.f32.mxu0 0.0
  %2124 = vmatmul.mubr.f32.gmra.mrb[0].mxu0 %v2052
  %v2125 = vpop.f32.mrb[0].mxu0
  %v2126 = vadd.f32 0.0, %v2125
  %v2127 = vpop.f32.mrb[0].mxu0
  %2128 = vdwg.mxu0
  %2129 = vrot.lane.b32.xlu0 %v1511, 104
  %v2130 = vpop.permute.xlu0 %2129
  %2131 = vrot.lane.b32.xlu0 %v1516, 104
  %v2132 = vpop.permute.xlu0 %2131
  %2133 = vrot.lane.b32.xlu0 %v1511, 72
  %v2134 = vpop.permute.xlu0 %2133
  %2135 = vrot.lane.b32.xlu0 %v1516, 72
  %v2136 = vpop.permute.xlu0 %2135
  %v2137 = vsel %vm156, %v2130, 0
  %v2139 = vsel %vm156, %v2132, 0
  %v2141 = vsel %vm156, %v2134, 0
  %v2143 = vsel %vm156, %v2136, 0
  %2145 = vmatprep.subr.mxu0 0.0
  %2146 = vmatpush1.xpose.msra.mxu0 %v2141
  %2147 = vmatprep.subr.mxu0 0.0
  %2148 = vmatpush1.xpose.msra.mxu0 %v2143
  %2149 = vmatprep.subr.mxu0 0.0
  %2150 = vmatpush1.xpose.msra.mxu0 0.0
  %2151 = vmatprep.subr.mxu0 0.0
  %2152 = vmatpush1.xpose.msra.mxu0 0.0
  %2153 = vmatprep.subr.mxu0 0.0
  %2154 = vmatpush1.xpose.msra.mxu0 0.0
  %2155 = vmatprep.subr.mxu0 0.0
  %2156 = vmatpush1.xpose.msra.mxu0 0.0
  %2157 = vmatprep.subr.mxu0 0.0
  %2158 = vmatpush1.xpose.msra.mxu0 0.0
  %2159 = vmatprep.subr.mxu0 0.0
  %2160 = vmatpush1.xpose.msra.mxu0 0.0
  %2161 = vmatprep.subr.mxu0 0.0
  %2162 = vmatpush1.xpose.msra.mxu0 0.0
  %2163 = vmatprep.subr.mxu0 0.0
  %2164 = vmatpush1.xpose.msra.mxu0 0.0
  %2165 = vmatprep.subr.mxu0 0.0
  %2166 = vmatpush1.xpose.msra.mxu0 0.0
  %2167 = vmatprep.subr.mxu0 0.0
  %2168 = vmatpush1.xpose.msra.mxu0 0.0
  %2169 = vmatprep.subr.mxu0 0.0
  %2170 = vmatpush1.xpose.msra.mxu0 0.0
  %2171 = vmatprep.subr.mxu0 0.0
  %2172 = vmatpush1.xpose.msra.mxu0 0.0
  %2173 = vmatprep.subr.mxu0 0.0
  %2174 = vmatpush1.xpose.msra.mxu0 0.0
  %2175 = vmatprep.subr.mxu0 0.0
  %2176 = vmatpush1.xpose.msra.mxu0 0.0
  %2177 = vmatprep.subr.mxu0 0.0
  %2178 = vmatpush1.xpose.msra.mxu0 0.0
  %2179 = vmatprep.subr.mxu0 0.0
  %2180 = vmatpush1.xpose.msra.mxu0 0.0
  %2181 = vmatprep.subr.mxu0 0.0
  %2182 = vmatpush1.xpose.msra.mxu0 0.0
  %2183 = vmatprep.subr.mxu0 0.0
  %2184 = vmatpush1.xpose.msra.mxu0 0.0
  %2185 = vmatprep.subr.mxu0 0.0
  %2186 = vmatpush1.xpose.msra.mxu0 0.0
  %2187 = vmatprep.subr.mxu0 0.0
  %2188 = vmatpush1.xpose.msra.mxu0 0.0
  %2189 = vmatprep.subr.mxu0 0.0
  %2190 = vmatpush1.xpose.msra.mxu0 0.0
  %2191 = vmatprep.subr.mxu0 0.0
  %2192 = vmatpush1.xpose.msra.mxu0 0.0
  %2193 = vmatprep.subr.mxu0 0.0
  %2194 = vmatpush1.xpose.msra.mxu0 0.0
  %2195 = vmatprep.subr.mxu0 0.0
  %2196 = vmatpush1.xpose.msra.mxu0 0.0
  %2197 = vmatprep.subr.mxu0 0.0
  %2198 = vmatpush1.xpose.msra.mxu0 0.0
  %2199 = vmatprep.subr.mxu0 0.0
  %2200 = vmatpush1.xpose.msra.mxu0 0.0
  %2201 = vmatprep.subr.mxu0 0.0
  %2202 = vmatpush1.xpose.msra.mxu0 0.0
  %2203 = vmatprep.subr.mxu0 0.0
  %2204 = vmatpush1.xpose.msra.mxu0 0.0
  %2205 = vmatprep.subr.mxu0 0.0
  %2206 = vmatpush1.xpose.msra.mxu0 0.0
  %2207 = vmatprep.subr.mxu0 0.0
  %2208 = vmatpush1.xpose.msra.mxu0 0.0
  %2209 = vmatprep.mubr.f32.mxu0 0.0
  %2210 = vmatmul.mubr.f32.gmra.mrb[0].mxu0 %v2137
  %v2211 = vpop.f32.mrb[0].mxu0
  %v2212 = vadd.f32 0.0, %v2211
  %v2213 = vpop.f32.mrb[0].mxu0
  %2214 = vmatprep.mubr.f32.mxu0 0.0
  %2215 = vmatmul.mubr.f32.gmra.mrb[0].mxu0 %v2139
  %v2216 = vpop.f32.mrb[0].mxu0
  %v2217 = vadd.f32 0.0, %v2216
  %v2218 = vpop.f32.mrb[0].mxu0
  %2219 = vdwg.mxu0
  %v2220 = vmul.f32 %v2212, 0.35355338
  %v2221 = vmul.f32 %v2217, 0.35355338
  %v2222 = vadd.f32 %v2220, %v55
  %v2223 = vadd.f32 %v2221, %v56
  %v2224 = vsel %vm244, %v2222, -inf
  %2225 = vmax.xlane.f32.xlu0 %v2224
  %v2226 = vpop.xlane.xlu0 %2225
  %v2227 = vsel %vm244, %v2223, -inf
  %2228 = vmax.xlane.f32.xlu0 %v2227
  %v2229 = vpop.xlane.xlu0 %2228
  %v2230 = vsub.f32 %v2222, %v2226
  %v2231 = vsub.f32 %v2223, %v2229
  %v2232 = vmul.f32 %v2230, 1.442695
  %v2233 = vpow.pop %v2232
  %v2234 = vmul.f32 %v2231, 1.442695
  %v2235 = vpow.pop %v2234
  %v2236 = vsel %vm244, %v2233, 0.0
  %2237 = vadd.xlane.f32.xlu0 %v2236
  %v2238 = vpop.xlane.xlu0 %2237
  %v2239 = vsel %vm244, %v2235, 0.0
  %2240 = vadd.xlane.f32.xlu0 %v2239
  %v2241 = vpop.xlane.xlu0 %2240
  %v2242 = vrcp.pop %v2238
  %v2243 = vrcp.pop %v2241
  %v2244 = vmul.f32 %v2233, %v2242
  %v2245 = vmul.f32 %v2235, %v2243
  %2246 = vrot.lane.b32.xlu0 %v1511, 40
  %v2247 = vpop.permute.xlu0 %2246
  %2248 = vrot.lane.b32.xlu0 %v1516, 40
  %v2249 = vpop.permute.xlu0 %2248
  %v2253 = vsel %vm244, %v2244, 0
  %v2256 = vsel %vm244, %v2245, 0
  %2258 = vmatprep.subr.mxu0 0.0
  %2259 = vmatpush1.msra.mxu0 %v2247
  %2260 = vmatprep.subr.mxu0 0.0
  %2261 = vmatpush1.msra.mxu0 %v2249
  %2262 = vmatprep.subr.mxu0 0.0
  %2263 = vmatpush1.msra.mxu0 0.0
  %2264 = vmatprep.subr.mxu0 0.0
  %2265 = vmatpush1.msra.mxu0 0.0
  %2266 = vmatprep.subr.mxu0 0.0
  %2267 = vmatpush1.msra.mxu0 0.0
  %2268 = vmatprep.subr.mxu0 0.0
  %2269 = vmatpush1.msra.mxu0 0.0
  %2270 = vmatprep.subr.mxu0 0.0
  %2271 = vmatpush1.msra.mxu0 0.0
  %2272 = vmatprep.subr.mxu0 0.0
  %2273 = vmatpush1.msra.mxu0 0.0
  %2274 = vmatprep.subr.mxu0 0.0
  %2275 = vmatpush1.msra.mxu0 0.0
  %2276 = vmatprep.subr.mxu0 0.0
  %2277 = vmatpush1.msra.mxu0 0.0
  %2278 = vmatprep.subr.mxu0 0.0
  %2279 = vmatpush1.msra.mxu0 0.0
  %2280 = vmatprep.subr.mxu0 0.0
  %2281 = vmatpush1.msra.mxu0 0.0
  %2282 = vmatprep.subr.mxu0 0.0
  %2283 = vmatpush1.msra.mxu0 0.0
  %2284 = vmatprep.subr.mxu0 0.0
  %2285 = vmatpush1.msra.mxu0 0.0
  %2286 = vmatprep.subr.mxu0 0.0
  %2287 = vmatpush1.msra.mxu0 0.0
  %2288 = vmatprep.subr.mxu0 0.0
  %2289 = vmatpush1.msra.mxu0 0.0
  %2290 = vmatprep.subr.mxu0 0.0
  %2291 = vmatpush1.msra.mxu0 0.0
  %2292 = vmatprep.subr.mxu0 0.0
  %2293 = vmatpush1.msra.mxu0 0.0
  %2294 = vmatprep.subr.mxu0 0.0
  %2295 = vmatpush1.msra.mxu0 0.0
  %2296 = vmatprep.subr.mxu0 0.0
  %2297 = vmatpush1.msra.mxu0 0.0
  %2298 = vmatprep.subr.mxu0 0.0
  %2299 = vmatpush1.msra.mxu0 0.0
  %2300 = vmatprep.subr.mxu0 0.0
  %2301 = vmatpush1.msra.mxu0 0.0
  %2302 = vmatprep.subr.mxu0 0.0
  %2303 = vmatpush1.msra.mxu0 0.0
  %2304 = vmatprep.subr.mxu0 0.0
  %2305 = vmatpush1.msra.mxu0 0.0
  %2306 = vmatprep.subr.mxu0 0.0
  %2307 = vmatpush1.msra.mxu0 0.0
  %2308 = vmatprep.subr.mxu0 0.0
  %2309 = vmatpush1.msra.mxu0 0.0
  %2310 = vmatprep.subr.mxu0 0.0
  %2311 = vmatpush1.msra.mxu0 0.0
  %2312 = vmatprep.subr.mxu0 0.0
  %2313 = vmatpush1.msra.mxu0 0.0
  %2314 = vmatprep.subr.mxu0 0.0
  %2315 = vmatpush1.msra.mxu0 0.0
  %2316 = vmatprep.subr.mxu0 0.0
  %2317 = vmatpush1.msra.mxu0 0.0
  %2318 = vmatprep.subr.mxu0 0.0
  %2319 = vmatpush1.msra.mxu0 0.0
  %2320 = vmatprep.subr.mxu0 0.0
  %2321 = vmatpush1.msra.mxu0 0.0
  %2322 = vmatprep.mubr.f32.mxu0 0.0
  %2323 = vmatmul.mubr.f32.gmra.mrb[0].mxu0 %v2253
  %v2324 = vpop.f32.mrb[0].mxu0
  %v2325 = vadd.f32 0.0, %v2324
  %v2326 = vpop.f32.mrb[0].mxu0
  %2327 = vmatprep.mubr.f32.mxu0 0.0
  %2328 = vmatmul.mubr.f32.gmra.mrb[0].mxu0 %v2256
  %v2329 = vpop.f32.mrb[0].mxu0
  %v2330 = vadd.f32 0.0, %v2329
  %v2331 = vpop.f32.mrb[0].mxu0
  %2332 = vdwg.mxu0
  %2335 = vrot.lane.b32.xlu0 %v1917, 8
  %v2336 = vpop.permute.xlu0 %2335
  %2337 = vrot.lane.b32.xlu0 %v1922, 8
  %v2338 = vpop.permute.xlu0 %2337
  %2343 = vrot.lane.b32.xlu0 %v2121, 16
  %v2344 = vpop.permute.xlu0 %2343
  %2345 = vrot.lane.b32.xlu0 %v2126, 16
  %v2346 = vpop.permute.xlu0 %2345
  %2351 = vrot.lane.b32.xlu0 %v2325, 24
  %v2352 = vpop.permute.xlu0 %2351
  %2353 = vrot.lane.b32.xlu0 %v2330, 24
  %v2354 = vpop.permute.xlu0 %2353
  %v2357 = vsel %vm156, %v1713, %v2336
  %v2358 = vsel %vm156, %v1718, %v2338
  %v2359 = vsel %vm244, %v2357, %v2344
  %v2360 = vsel %vm244, %v2358, %v2346
  %v2361 = vsel %vm994, %v2359, %v2352
  %v2362 = vsel %vm994, %v2360, %v2354
  %s2363 = scalar_lea.vmem %s4, 32
  %v2364 = vld [vmem:[%s2363] sm:$0xff]
  %v2365 = vld [vmem:[%s2363 + $0x8] sm:$0xff]
  %v2366 = vld [vmem:[%s2363 + $0x10] sm:$0xff]
  %v2367 = vld [vmem:[%s2363 + $0x18] sm:$0xff]
  %s2368 = scalar_lea.vmem %s5, 1
  %v2369 = vld [vmem:[%s2368] sm:$0x1]
  %v2371 = vlaneseq
  %v2372 = vshrl.u32 %v2371, 7
  %v2373 = vsub.s32 0, %v2372
  %v2374 = vrot.slane %v2369, %v2373
  %v2377 = vsel %vm68, %v2361, 0
  %v2380 = vsel %vm68, %v2362, 0
  %2382 = vmatprep.subr.mxu0 0.0
  %2383 = vmatpush1.msra.mxu0 %v2364
  %2384 = vmatprep.subr.mxu0 0.0
  %2385 = vmatpush1.msra.mxu0 %v2365
  %2386 = vmatprep.subr.mxu0 0.0
  %2387 = vmatpush1.msra.mxu0 %v2366
  %2388 = vmatprep.subr.mxu0 0.0
  %2389 = vmatpush1.msra.mxu0 %v2367
  %2390 = vmatprep.subr.mxu0 0.0
  %2391 = vmatpush1.msra.mxu0 0.0
  %2392 = vmatprep.subr.mxu0 0.0
  %2393 = vmatpush1.msra.mxu0 0.0
  %2394 = vmatprep.subr.mxu0 0.0
  %2395 = vmatpush1.msra.mxu0 0.0
  %2396 = vmatprep.subr.mxu0 0.0
  %2397 = vmatpush1.msra.mxu0 0.0
  %2398 = vmatprep.subr.mxu0 0.0
  %2399 = vmatpush1.msra.mxu0 0.0
  %2400 = vmatprep.subr.mxu0 0.0
  %2401 = vmatpush1.msra.mxu0 0.0
  %2402 = vmatprep.subr.mxu0 0.0
  %2403 = vmatpush1.msra.mxu0 0.0
  %2404 = vmatprep.subr.mxu0 0.0
  %2405 = vmatpush1.msra.mxu0 0.0
  %2406 = vmatprep.subr.mxu0 0.0
  %2407 = vmatpush1.msra.mxu0 0.0
  %2408 = vmatprep.subr.mxu0 0.0
  %2409 = vmatpush1.msra.mxu0 0.0
  %2410 = vmatprep.subr.mxu0 0.0
  %2411 = vmatpush1.msra.mxu0 0.0
  %2412 = vmatprep.subr.mxu0 0.0
  %2413 = vmatpush1.msra.mxu0 0.0
  %2414 = vmatprep.subr.mxu0 0.0
  %2415 = vmatpush1.msra.mxu0 0.0
  %2416 = vmatprep.subr.mxu0 0.0
  %2417 = vmatpush1.msra.mxu0 0.0
  %2418 = vmatprep.subr.mxu0 0.0
  %2419 = vmatpush1.msra.mxu0 0.0
  %2420 = vmatprep.subr.mxu0 0.0
  %2421 = vmatpush1.msra.mxu0 0.0
  %2422 = vmatprep.subr.mxu0 0.0
  %2423 = vmatpush1.msra.mxu0 0.0
  %2424 = vmatprep.subr.mxu0 0.0
  %2425 = vmatpush1.msra.mxu0 0.0
  %2426 = vmatprep.subr.mxu0 0.0
  %2427 = vmatpush1.msra.mxu0 0.0
  %2428 = vmatprep.subr.mxu0 0.0
  %2429 = vmatpush1.msra.mxu0 0.0
  %2430 = vmatprep.subr.mxu0 0.0
  %2431 = vmatpush1.msra.mxu0 0.0
  %2432 = vmatprep.subr.mxu0 0.0
  %2433 = vmatpush1.msra.mxu0 0.0
  %2434 = vmatprep.subr.mxu0 0.0
  %2435 = vmatpush1.msra.mxu0 0.0
  %2436 = vmatprep.subr.mxu0 0.0
  %2437 = vmatpush1.msra.mxu0 0.0
  %2438 = vmatprep.subr.mxu0 0.0
  %2439 = vmatpush1.msra.mxu0 0.0
  %2440 = vmatprep.subr.mxu0 0.0
  %2441 = vmatpush1.msra.mxu0 0.0
  %2442 = vmatprep.subr.mxu0 0.0
  %2443 = vmatpush1.msra.mxu0 0.0
  %2444 = vmatprep.subr.mxu0 0.0
  %2445 = vmatpush1.msra.mxu0 0.0
  %2446 = vmatprep.mubr.f32.mxu0 0.0
  %2447 = vmatmul.mubr.f32.gmra.mrb[0].mxu0 %v2377
  %v2448 = vpop.f32.mrb[0].mxu0
  %v2449 = vadd.f32 %v2374, %v2448
  %v2450 = vpop.f32.mrb[0].mxu0
  %2451 = vmatprep.mubr.f32.mxu0 0.0
  %2452 = vmatmul.mubr.f32.gmra.mrb[0].mxu0 %v2380
  %v2453 = vpop.f32.mrb[0].mxu0
  %v2454 = vadd.f32 %v2374, %v2453
  %v2455 = vpop.f32.mrb[0].mxu0
  %2456 = vdwg.mxu0
  %v2457 = vadd.f32 %v2449, %v1423
  %v2458 = vadd.f32 %v2454, %v1424
  %s2459 = scalar_lea.vmem %s6, 1
  %v2460 = vld [vmem:[%s2459] sm:$0x1]
  %s2461 = scalar_lea.vmem %s7, 1
  %v2462 = vld [vmem:[%s2461] sm:$0x1]
  %v2463 = vsel %vm68, %v2457, 0.0
  %2464 = vadd.xlane.f32.xlu0 %v2463
  %v2465 = vpop.xlane.xlu0 %2464
  %v2466 = vsel %vm68, %v2458, 0.0
  %2467 = vadd.xlane.f32.xlu0 %v2466
  %v2468 = vpop.xlane.xlu0 %2467
  %v2469 = vmul.f32 %v2465, %v1099
  %v2470 = vmul.f32 %v2468, %v1099
  %v2471 = vsub.f32 %v2457, %v2469
  %v2472 = vsub.f32 %v2458, %v2470
  %v2473 = vmul.f32 %v2471, %v2471
  %v2474 = vmul.f32 %v2472, %v2472
  %v2475 = vsel %vm68, %v2473, 0.0
  %2476 = vadd.xlane.f32.xlu0 %v2475
  %v2477 = vpop.xlane.xlu0 %2476
  %v2478 = vsel %vm68, %v2474, 0.0
  %2479 = vadd.xlane.f32.xlu0 %v2478
  %v2480 = vpop.xlane.xlu0 %2479
  %v2481 = vmul.f32 %v2477, %v1099
  %v2482 = vmul.f32 %v2480, %v1099
  %v2483 = vadd.f32 %v2481, 1e-12
  %v2484 = vadd.f32 %v2482, 1e-12
  %v2485 = vrsqrt.pop %v2483
  %v2486 = vrsqrt.pop %v2484
  %v2487 = vmul.f32 %v2471, %v2485
  %v2488 = vmul.f32 %v2472, %v2486
  %v2490 = vlaneseq
  %v2491 = vshrl.u32 %v2490, 7
  %v2492 = vsub.s32 0, %v2491
  %v2493 = vrot.slane %v2460, %v2492
  %v2495 = vmul.f32 %v2487, %v2493
  %v2496 = vmul.f32 %v2488, %v2493
  %v2498 = vlaneseq
  %v2499 = vshrl.u32 %v2498, 7
  %v2500 = vsub.s32 0, %v2499
  %v2501 = vrot.slane %v2462, %v2500
  %v2503 = vadd.f32 %v2495, %v2501
  %v2504 = vadd.f32 %v2496, %v2501
  %s2505 = scalar_lea.vmem %s8, 32
  %v2506 = vld [vmem:[%s2505] sm:$0xff]
  %v2507 = vld [vmem:[%s2505 + $0x8] sm:$0xff]
  %v2508 = vld [vmem:[%s2505 + $0x10] sm:$0xff]
  %v2509 = vld [vmem:[%s2505 + $0x18] sm:$0xff]
  %s2510 = scalar_lea.vmem %s9, 1
  %v2511 = vld [vmem:[%s2510] sm:$0x1]
  %v2513 = vlaneseq
  %v2514 = vshrl.u32 %v2513, 7
  %v2515 = vsub.s32 0, %v2514
  %v2516 = vrot.slane %v2511, %v2515
  %v2519 = vsel %vm68, %v2503, 0
  %v2522 = vsel %vm68, %v2504, 0
  %2524 = vmatprep.subr.mxu0 0.0
  %2525 = vmatpush1.msra.mxu0 %v2506
  %2526 = vmatprep.subr.mxu0 0.0
  %2527 = vmatpush1.msra.mxu0 %v2507
  %2528 = vmatprep.subr.mxu0 0.0
  %2529 = vmatpush1.msra.mxu0 %v2508
  %2530 = vmatprep.subr.mxu0 0.0
  %2531 = vmatpush1.msra.mxu0 %v2509
  %2532 = vmatprep.subr.mxu0 0.0
  %2533 = vmatpush1.msra.mxu0 0.0
  %2534 = vmatprep.subr.mxu0 0.0
  %2535 = vmatpush1.msra.mxu0 0.0
  %2536 = vmatprep.subr.mxu0 0.0
  %2537 = vmatpush1.msra.mxu0 0.0
  %2538 = vmatprep.subr.mxu0 0.0
  %2539 = vmatpush1.msra.mxu0 0.0
  %2540 = vmatprep.subr.mxu0 0.0
  %2541 = vmatpush1.msra.mxu0 0.0
  %2542 = vmatprep.subr.mxu0 0.0
  %2543 = vmatpush1.msra.mxu0 0.0
  %2544 = vmatprep.subr.mxu0 0.0
  %2545 = vmatpush1.msra.mxu0 0.0
  %2546 = vmatprep.subr.mxu0 0.0
  %2547 = vmatpush1.msra.mxu0 0.0
  %2548 = vmatprep.subr.mxu0 0.0
  %2549 = vmatpush1.msra.mxu0 0.0
  %2550 = vmatprep.subr.mxu0 0.0
  %2551 = vmatpush1.msra.mxu0 0.0
  %2552 = vmatprep.subr.mxu0 0.0
  %2553 = vmatpush1.msra.mxu0 0.0
  %2554 = vmatprep.subr.mxu0 0.0
  %2555 = vmatpush1.msra.mxu0 0.0
  %2556 = vmatprep.subr.mxu0 0.0
  %2557 = vmatpush1.msra.mxu0 0.0
  %2558 = vmatprep.subr.mxu0 0.0
  %2559 = vmatpush1.msra.mxu0 0.0
  %2560 = vmatprep.subr.mxu0 0.0
  %2561 = vmatpush1.msra.mxu0 0.0
  %2562 = vmatprep.subr.mxu0 0.0
  %2563 = vmatpush1.msra.mxu0 0.0
  %2564 = vmatprep.subr.mxu0 0.0
  %2565 = vmatpush1.msra.mxu0 0.0
  %2566 = vmatprep.subr.mxu0 0.0
  %2567 = vmatpush1.msra.mxu0 0.0
  %2568 = vmatprep.subr.mxu0 0.0
  %2569 = vmatpush1.msra.mxu0 0.0
  %2570 = vmatprep.subr.mxu0 0.0
  %2571 = vmatpush1.msra.mxu0 0.0
  %2572 = vmatprep.subr.mxu0 0.0
  %2573 = vmatpush1.msra.mxu0 0.0
  %2574 = vmatprep.subr.mxu0 0.0
  %2575 = vmatpush1.msra.mxu0 0.0
  %2576 = vmatprep.subr.mxu0 0.0
  %2577 = vmatpush1.msra.mxu0 0.0
  %2578 = vmatprep.subr.mxu0 0.0
  %2579 = vmatpush1.msra.mxu0 0.0
  %2580 = vmatprep.subr.mxu0 0.0
  %2581 = vmatpush1.msra.mxu0 0.0
  %2582 = vmatprep.subr.mxu0 0.0
  %2583 = vmatpush1.msra.mxu0 0.0
  %2584 = vmatprep.subr.mxu0 0.0
  %2585 = vmatpush1.msra.mxu0 0.0
  %2586 = vmatprep.subr.mxu0 0.0
  %2587 = vmatpush1.msra.mxu0 0.0
  %2588 = vmatprep.mubr.f32.mxu0 0.0
  %2589 = vmatmul.mubr.f32.gmra.mrb[0].mxu0 %v2519
  %v2590 = vpop.f32.mrb[0].mxu0
  %v2591 = vadd.f32 %v2516, %v2590
  %v2592 = vpop.f32.mrb[0].mxu0
  %2593 = vmatprep.mubr.f32.mxu0 0.0
  %2594 = vmatmul.mubr.f32.gmra.mrb[0].mxu0 %v2522
  %v2595 = vpop.f32.mrb[0].mxu0
  %v2596 = vadd.f32 %v2516, %v2595
  %v2597 = vpop.f32.mrb[0].mxu0
  %2598 = vdwg.mxu0
  %v2599 = vmul.f32 %v2591, 0.5
  %v2600 = vmul.f32 %v2596, 0.5
  %v2601 = vmul.f32 %v2591, 0.70710677
  %v2602 = vmul.f32 %v2596, 0.70710677
  %vm2603 = vcmp.ge.f32.partialorder %v2601, 0.0
  %vm2604 = vcmp.ge.f32.partialorder %v2602, 0.0
  %v2605 = vsel %vm2603, 1.0, -1.0
  %v2606 = vsel %vm2604, 1.0, -1.0
  %v2607 = vand.u32 2147483647, %v2601
  %v2608 = vand.u32 2147483647, %v2602
  %v2609 = vmul.f32 %v2607, 0.3275911
  %v2610 = vmul.f32 %v2608, 0.3275911
  %v2611 = vadd.f32 %v2609, 1.0
  %v2612 = vadd.f32 %v2610, 1.0
  %v2613 = vrcp.pop %v2611
  %v2614 = vmul.f32 1.0, %v2613
  %v2615 = vrcp.pop %v2612
  %v2616 = vmul.f32 1.0, %v2615
  %v2617 = vmul.f32 %v2614, 1.0614054
  %v2618 = vmul.f32 %v2616, 1.0614054
  %v2619 = vadd.f32 %v2617, -1.4531521
  %v2620 = vadd.f32 %v2618, -1.4531521
  %v2621 = vmul.f32 %v2619, %v2614
  %v2622 = vmul.f32 %v2620, %v2616
  %v2623 = vadd.f32 %v2621, 1.4214138
  %v2624 = vadd.f32 %v2622, 1.4214138
  %v2625 = vmul.f32 %v2623, %v2614
  %v2626 = vmul.f32 %v2624, %v2616
  %v2627 = vadd.f32 %v2625, -0.28449672
  %v2628 = vadd.f32 %v2626, -0.28449672
  %v2629 = vmul.f32 %v2627, %v2614
  %v2630 = vmul.f32 %v2628, %v2616
  %v2631 = vadd.f32 %v2629, 0.2548296
  %v2632 = vadd.f32 %v2630, 0.2548296
  %v2633 = vmul.f32 %v2631, %v2614
  %v2634 = vmul.f32 %v2632, %v2616
  %v2635 = vsub.f32 0.0, %v2607
  %v2636 = vsub.f32 0.0, %v2608
  %v2637 = vmul.f32 %v2635, %v2607
  %v2638 = vmul.f32 %v2636, %v2608
  %v2639 = vmul.f32 %v2637, 1.442695
  %v2640 = vpow.pop %v2639
  %v2641 = vmul.f32 %v2638, 1.442695
  %v2642 = vpow.pop %v2641
  %v2643 = vmul.f32 %v2633, %v2640
  %v2644 = vmul.f32 %v2634, %v2642
  %v2645 = vsub.f32 1.0, %v2643
  %v2646 = vsub.f32 1.0, %v2644
  %v2647 = vmul.f32 %v2605, %v2645
  %v2648 = vmul.f32 %v2606, %v2646
  %v2649 = vadd.f32 %v2647, 1.0
  %v2650 = vadd.f32 %v2648, 1.0
  %v2651 = vmul.f32 %v2599, %v2649
  %v2652 = vmul.f32 %v2600, %v2650
  %s2653 = scalar_lea.vmem %s10, 64
  %v2654 = vld [vmem:[%s2653] sm:$0xff]
  %v2655 = vld [vmem:[%s2653 + $0x8] sm:$0xff]
  %v2656 = vld [vmem:[%s2653 + $0x10] sm:$0xff]
  %v2657 = vld [vmem:[%s2653 + $0x18] sm:$0xff]
  %v2658 = vld [vmem:[%s2653 + $0x20] sm:$0xff]
  %v2659 = vld [vmem:[%s2653 + $0x28] sm:$0xff]
  %v2660 = vld [vmem:[%s2653 + $0x30] sm:$0xff]
  %v2661 = vld [vmem:[%s2653 + $0x38] sm:$0xff]
  %s2662 = scalar_lea.vmem %s11, 1
  %v2663 = vld [vmem:[%s2662] sm:$0x1]
  %v2665 = vlaneseq
  %v2666 = vshrl.u32 %v2665, 7
  %v2667 = vsub.s32 0, %v2666
  %v2668 = vrot.slane %v2663, %v2667
  %v2671 = vsel %vm1297, %v2651, 0
  %v2674 = vsel %vm1297, %v2652, 0
  %2676 = vmatprep.subr.mxu0 0.0
  %2677 = vmatpush1.msra.mxu0 %v2654
  %2678 = vmatprep.subr.mxu0 0.0
  %2679 = vmatpush1.msra.mxu0 %v2655
  %2680 = vmatprep.subr.mxu0 0.0
  %2681 = vmatpush1.msra.mxu0 %v2656
  %2682 = vmatprep.subr.mxu0 0.0
  %2683 = vmatpush1.msra.mxu0 %v2657
  %2684 = vmatprep.subr.mxu0 0.0
  %2685 = vmatpush1.msra.mxu0 %v2658
  %2686 = vmatprep.subr.mxu0 0.0
  %2687 = vmatpush1.msra.mxu0 %v2659
  %2688 = vmatprep.subr.mxu0 0.0
  %2689 = vmatpush1.msra.mxu0 %v2660
  %2690 = vmatprep.subr.mxu0 0.0
  %2691 = vmatpush1.msra.mxu0 %v2661
  %2692 = vmatprep.subr.mxu0 0.0
  %2693 = vmatpush1.msra.mxu0 0.0
  %2694 = vmatprep.subr.mxu0 0.0
  %2695 = vmatpush1.msra.mxu0 0.0
  %2696 = vmatprep.subr.mxu0 0.0
  %2697 = vmatpush1.msra.mxu0 0.0
  %2698 = vmatprep.subr.mxu0 0.0
  %2699 = vmatpush1.msra.mxu0 0.0
  %2700 = vmatprep.subr.mxu0 0.0
  %2701 = vmatpush1.msra.mxu0 0.0
  %2702 = vmatprep.subr.mxu0 0.0
  %2703 = vmatpush1.msra.mxu0 0.0
  %2704 = vmatprep.subr.mxu0 0.0
  %2705 = vmatpush1.msra.mxu0 0.0
  %2706 = vmatprep.subr.mxu0 0.0
  %2707 = vmatpush1.msra.mxu0 0.0
  %2708 = vmatprep.subr.mxu0 0.0
  %2709 = vmatpush1.msra.mxu0 0.0
  %2710 = vmatprep.subr.mxu0 0.0
  %2711 = vmatpush1.msra.mxu0 0.0
  %2712 = vmatprep.subr.mxu0 0.0
  %2713 = vmatpush1.msra.mxu0 0.0
  %2714 = vmatprep.subr.mxu0 0.0
  %2715 = vmatpush1.msra.mxu0 0.0
  %2716 = vmatprep.subr.mxu0 0.0
  %2717 = vmatpush1.msra.mxu0 0.0
  %2718 = vmatprep.subr.mxu0 0.0
  %2719 = vmatpush1.msra.mxu0 0.0
  %2720 = vmatprep.subr.mxu0 0.0
  %2721 = vmatpush1.msra.mxu0 0.0
  %2722 = vmatprep.subr.mxu0 0.0
  %2723 = vmatpush1.msra.mxu0 0.0
  %2724 = vmatprep.subr.mxu0 0.0
  %2725 = vmatpush1.msra.mxu0 0.0
  %2726 = vmatprep.subr.mxu0 0.0
  %2727 = vmatpush1.msra.mxu0 0.0
  %2728 = vmatprep.subr.mxu0 0.0
  %2729 = vmatpush1.msra.mxu0 0.0
  %2730 = vmatprep.subr.mxu0 0.0
  %2731 = vmatpush1.msra.mxu0 0.0
  %2732 = vmatprep.subr.mxu0 0.0
  %2733 = vmatpush1.msra.mxu0 0.0
  %2734 = vmatprep.subr.mxu0 0.0
  %2735 = vmatpush1.msra.mxu0 0.0
  %2736 = vmatprep.subr.mxu0 0.0
  %2737 = vmatpush1.msra.mxu0 0.0
  %2738 = vmatprep.subr.mxu0 0.0
  %2739 = vmatpush1.msra.mxu0 0.0
  %2740 = vmatprep.mubr.f32.mxu0 0.0
  %2741 = vmatmul.mubr.f32.gmra.mrb[0].mxu0 %v2671
  %v2742 = vpop.f32.mrb[0].mxu0
  %v2743 = vadd.f32 %v2668, %v2742
  %v2744 = vpop.f32.mrb[0].mxu0
  %2745 = vmatprep.mubr.f32.mxu0 0.0
  %2746 = vmatmul.mubr.f32.gmra.mrb[0].mxu0 %v2674
  %v2747 = vpop.f32.mrb[0].mxu0
  %v2748 = vadd.f32 %v2668, %v2747
  %v2749 = vpop.f32.mrb[0].mxu0
  %2750 = vdwg.mxu0
  %v2751 = vadd.f32 %v2743, %v2503
  %v2752 = vadd.f32 %v2748, %v2504
  %s2753 = scalar_lea.vmem %s12, 1
  %v2754 = vld [vmem:[%s2753] sm:$0x1]
  %s2755 = scalar_lea.vmem %s13, 1
  %v2756 = vld [vmem:[%s2755] sm:$0x1]
  %v2757 = vsel %vm68, %v2751, 0.0
  %2758 = vadd.xlane.f32.xlu0 %v2757
  %v2759 = vpop.xlane.xlu0 %2758
  %v2760 = vsel %vm68, %v2752, 0.0
  %2761 = vadd.xlane.f32.xlu0 %v2760
  %v2762 = vpop.xlane.xlu0 %2761
  %v2763 = vmul.f32 %v2759, %v1099
  %v2764 = vmul.f32 %v2762, %v1099
  %v2765 = vsub.f32 %v2751, %v2763
  %v2766 = vsub.f32 %v2752, %v2764
  %v2767 = vmul.f32 %v2765, %v2765
  %v2768 = vmul.f32 %v2766, %v2766
  %v2769 = vsel %vm68, %v2767, 0.0
  %2770 = vadd.xlane.f32.xlu0 %v2769
  %v2771 = vpop.xlane.xlu0 %2770
  %v2772 = vsel %vm68, %v2768, 0.0
  %2773 = vadd.xlane.f32.xlu0 %v2772
  %v2774 = vpop.xlane.xlu0 %2773
  %v2775 = vmul.f32 %v2771, %v1099
  %v2776 = vmul.f32 %v2774, %v1099
  %v2777 = vadd.f32 %v2775, 1e-12
  %v2778 = vadd.f32 %v2776, 1e-12
  %v2779 = vrsqrt.pop %v2777
  %v2780 = vrsqrt.pop %v2778
  %v2781 = vmul.f32 %v2765, %v2779
  %v2782 = vmul.f32 %v2766, %v2780
  %v2784 = vlaneseq
  %v2785 = vshrl.u32 %v2784, 7
  %v2786 = vsub.s32 0, %v2785
  %v2787 = vrot.slane %v2754, %v2786
  %v2789 = vmul.f32 %v2781, %v2787
  %v2790 = vmul.f32 %v2782, %v2787
  %v2792 = vlaneseq
  %v2793 = vshrl.u32 %v2792, 7
  %v2794 = vsub.s32 0, %v2793
  %v2795 = vrot.slane %v2756, %v2794
  %v2797 = vadd.f32 %v2789, %v2795
  %v2798 = vadd.f32 %v2790, %v2795
  %v2799 = vld [vmem:[%s14] sm:$0xff]
  %v2800 = vld [vmem:[%s14 + $0x8] sm:$0xff]
  %v2801 = vld [vmem:[%s14 + $0x10] sm:$0xff]
  %v2802 = vld [vmem:[%s14 + $0x18] sm:$0xff]
  %v2803 = vld [vmem:[%s15] sm:$0x1]
  %v2805 = vlaneseq
  %v2806 = vshrl.u32 %v2805, 7
  %v2807 = vsub.s32 0, %v2806
  %v2808 = vrot.slane %v2803, %v2807
  %v2811 = vsel %vm68, %v2797, 0
  %v2814 = vsel %vm68, %v2798, 0
  %2816 = vmatprep.subr.mxu0 0.0
  %2817 = vmatpush1.msra.mxu0 %v2799
  %2818 = vmatprep.subr.mxu0 0.0
  %2819 = vmatpush1.msra.mxu0 %v2800
  %2820 = vmatprep.subr.mxu0 0.0
  %2821 = vmatpush1.msra.mxu0 %v2801
  %2822 = vmatprep.subr.mxu0 0.0
  %2823 = vmatpush1.msra.mxu0 %v2802
  %2824 = vmatprep.subr.mxu0 0.0
  %2825 = vmatpush1.msra.mxu0 0.0
  %2826 = vmatprep.subr.mxu0 0.0
  %2827 = vmatpush1.msra.mxu0 0.0
  %2828 = vmatprep.subr.mxu0 0.0
  %2829 = vmatpush1.msra.mxu0 0.0
  %2830 = vmatprep.subr.mxu0 0.0
  %2831 = vmatpush1.msra.mxu0 0.0
  %2832 = vmatprep.subr.mxu0 0.0
  %2833 = vmatpush1.msra.mxu0 0.0
  %2834 = vmatprep.subr.mxu0 0.0
  %2835 = vmatpush1.msra.mxu0 0.0
  %2836 = vmatprep.subr.mxu0 0.0
  %2837 = vmatpush1.msra.mxu0 0.0
  %2838 = vmatprep.subr.mxu0 0.0
  %2839 = vmatpush1.msra.mxu0 0.0
  %2840 = vmatprep.subr.mxu0 0.0
  %2841 = vmatpush1.msra.mxu0 0.0
  %2842 = vmatprep.subr.mxu0 0.0
  %2843 = vmatpush1.msra.mxu0 0.0
  %2844 = vmatprep.subr.mxu0 0.0
  %2845 = vmatpush1.msra.mxu0 0.0
  %2846 = vmatprep.subr.mxu0 0.0
  %2847 = vmatpush1.msra.mxu0 0.0
  %2848 = vmatprep.subr.mxu0 0.0
  %2849 = vmatpush1.msra.mxu0 0.0
  %2850 = vmatprep.subr.mxu0 0.0
  %2851 = vmatpush1.msra.mxu0 0.0
  %2852 = vmatprep.subr.mxu0 0.0
  %2853 = vmatpush1.msra.mxu0 0.0
  %2854 = vmatprep.subr.mxu0 0.0
  %2855 = vmatpush1.msra.mxu0 0.0
  %2856 = vmatprep.subr.mxu0 0.0
  %2857 = vmatpush1.msra.mxu0 0.0
  %2858 = vmatprep.subr.mxu0 0.0
  %2859 = vmatpush1.msra.mxu0 0.0
  %2860 = vmatprep.subr.mxu0 0.0
  %2861 = vmatpush1.msra.mxu0 0.0
  %2862 = vmatprep.subr.mxu0 0.0
  %2863 = vmatpush1.msra.mxu0 0.0
  %2864 = vmatprep.subr.mxu0 0.0
  %2865 = vmatpush1.msra.mxu0 0.0
  %2866 = vmatprep.subr.mxu0 0.0
  %2867 = vmatpush1.msra.mxu0 0.0
  %2868 = vmatprep.subr.mxu0 0.0
  %2869 = vmatpush1.msra.mxu0 0.0
  %2870 = vmatprep.subr.mxu0 0.0
  %2871 = vmatpush1.msra.mxu0 0.0
  %2872 = vmatprep.subr.mxu0 0.0
  %2873 = vmatpush1.msra.mxu0 0.0
  %2874 = vmatprep.subr.mxu0 0.0
  %2875 = vmatpush1.msra.mxu0 0.0
  %2876 = vmatprep.subr.mxu0 0.0
  %2877 = vmatpush1.msra.mxu0 0.0
  %2878 = vmatprep.subr.mxu0 0.0
  %2879 = vmatpush1.msra.mxu0 0.0
  %2880 = vmatprep.mubr.f32.mxu0 0.0
  %2881 = vmatmul.mubr.f32.gmra.mrb[0].mxu0 %v2811
  %v2882 = vpop.f32.mrb[0].mxu0
  %v2883 = vadd.f32 %v2808, %v2882
  %v2884 = vpop.f32.mrb[0].mxu0
  %2885 = vmatprep.mubr.f32.mxu0 0.0
  %2886 = vmatmul.mubr.f32.gmra.mrb[0].mxu0 %v2814
  %v2887 = vpop.f32.mrb[0].mxu0
  %v2888 = vadd.f32 %v2808, %v2887
  %v2889 = vpop.f32.mrb[0].mxu0
  %2890 = vdwg.mxu0
  %2891 = vst [vmem:[%s16] sm:$0xff] %v2883
  %2892 = vst [vmem:[%s16 + $0x8] sm:$0xff] %v2888
  // Predicated region
  $region66: #{distill_bert_classifier_forward.1} parent=0 // pred_check
    _
  $region67: #{distill_bert_classifier_forward.1} parent=0 // pred_check_branch
    %2894 = sbr.rel (0) target = $region69
  $region68: #{distill_bert_classifier_forward.1} parent=0 // pred_region
    _
  $region69: #{distill_bert_classifier_forward.1} parent=0 // pred_fallthru
    _
  // Predicated region
  $region70: #{distill_bert_classifier_forward.1} parent=0 // pred_check
    _
  $region71: #{distill_bert_classifier_forward.1} parent=0 // pred_check_branch
    %2896 = sbr.rel (0) target = $region73
  $region72: #{distill_bert_classifier_forward.1} parent=0 // pred_region
    _
  $region73: #{distill_bert_classifier_forward.1} parent=0 // pred_fallthru
    _

</llo_original>
